<compile_context>
chip_gen: v7x
topology: tpu7x:2x2x1
jax: 0.10.0
libtpu: 0.0.40
codegen_flags: <defaults>
</compile_context>

<pallas_src>
import jax
import jax.numpy as jnp
from jax import lax
from jax.experimental import pallas as pl
from jax.experimental.pallas import tpu as pltpu

PADW_L = 16   # left W halo: sublane-tile aligned for bf16 (16) and f32 (8)
PADW_R = 8    # right W halo: >= 1 zero column needed; 8 keeps the store wide


def _pick_strip(Ho):
    for s in (8, 4, 2):
        if Ho % s == 0:
            return s
    return 1


# ----------------------------- Pallas kernel -----------------------------

def _make_fused_kernel(stride, has_expand, use_res, strip, n_strips, H, W):
    """Fused expand -> depthwise(3x3) -> project kernel for one batch element."""

    def kernel(*refs):
        if has_expand:
            (x_ref, we_ref, be_ref, wd_ref, bd_ref,
             wp_ref, bp_ref, o_ref, hpad_ref) = refs
        else:
            (x_ref, wd_ref, bd_ref, wp_ref, bp_ref, o_ref, hpad_ref) = refs

        _, Ho, Wo, oup = o_ref.shape
        Hp, Wp, hidden = hpad_ref.shape
        sdt = hpad_ref.dtype

        # ---- zero the halo of the padded hidden scratch.  Done every grid
        #      step on purpose: the batch axis is "parallel" (v7x megacore
        #      sharding), so gating this on program_id==0 would be unsafe. ----
        hpad_ref[0:1, :, :] = jnp.zeros((1, Wp, hidden), sdt)
        hpad_ref[Hp - 1:Hp, :, :] = jnp.zeros((1, Wp, hidden), sdt)
        hpad_ref[:, 0:PADW_L, :] = jnp.zeros((Hp, PADW_L, hidden), sdt)
        hpad_ref[:, PADW_L + W:Wp, :] = jnp.zeros((Hp, Wp - PADW_L - W, hidden),
                                                  sdt)

        # ---- 1) expand: 1x1 conv (bf16 MXU) + bias (BN folded) + ReLU6 -----
        if has_expand:
            cin = x_ref.shape[-1]
            x2 = x_ref[0].reshape(H * W, cin).astype(jnp.bfloat16)
            h2 = jnp.dot(x2, we_ref[...], preferred_element_type=jnp.float32)
            h2 = jnp.clip(h2 + be_ref[...], 0.0, 6.0)
            h = h2.reshape(H, W, hidden).astype(sdt)
        else:
            h = x_ref[0].astype(sdt)                       # hidden == cin
        # Aligned big store: data starts at sublane-tile-aligned column PADW_L.
        hpad_ref[1:H + 1, PADW_L:PADW_L + W, :] = h

        # ---- loop-invariant loads (hoisted out of the strip loop) ----------
        wd_taps = [wd_ref[k:k + 1, :].reshape(1, 1, hidden).astype(jnp.float32)
                   for k in range(9)]
        bd = bd_ref[...].reshape(1, 1, hidden)
        wp = wp_ref[...]
        bp = bp_ref[...]

        # ---- 2+3) depthwise 3x3 + project 1x1, strip-by-strip over output
        #           rows; the accumulator strip stays small and VMEM/vreg
        #           resident instead of 9 full-tensor passes. -----------------
        def strip_body(si, carry):
            if isinstance(si, int):
                r0 = si * strip
            else:
                r0 = pl.multiple_of(si * strip, strip)
            acc = None
            for kh in range(3):
                for kw in range(3):
                    rs = r0 * stride + kh
                    cs = PADW_L - 1 + kw
                    if stride == 1:
                        tap = hpad_ref[pl.ds(rs, strip), pl.ds(cs, Wo), :]
                    else:
                        tap = hpad_ref[pl.ds(rs, strip, stride=stride),
                                       pl.ds(cs, Wo, stride=stride), :]
                    t = tap.astype(jnp.float32) * wd_taps[kh * 3 + kw]
                    acc = t if acc is None else acc + t    # first tap seeds acc
            d = jnp.clip(acc + bd, 0.0, 6.0)               # (strip, Wo, hidden)
            d2 = d.reshape(strip * Wo, hidden).astype(jnp.bfloat16)
            o2 = jnp.dot(d2, wp, preferred_element_type=jnp.float32) + bp
            o = o2.reshape(strip, Wo, oup)
            if use_res:
                o = o + x_ref[0, pl.ds(r0, strip), :, :].astype(jnp.float32)
            o_ref[0, pl.ds(r0, strip), :, :] = o.astype(o_ref.dtype)
            return carry

        if n_strips == 1:
            strip_body(0, 0)
        else:
            lax.fori_loop(0, n_strips, strip_body, 0, unroll=(n_strips <= 8))

    return kernel


def _vmem_limit_bytes(H, W, inp, oup, hidden, Ho, Wo, Wp, strip, has_expand,
                      scratch_itemsize):
    f32, bf16 = 4, 2
    est = 2 * H * W * inp * f32                    # double-buffered input block
    est += 2 * Ho * Wo * oup * f32                 # double-buffered output block
    est += (H + 2) * Wp * hidden * scratch_itemsize  # padded hidden scratch
    if has_expand:
        est += 2 * H * W * hidden * f32            # expand f32 output + copy
    # per-strip live temporaries (acc / tap / d / d2 / o2 / o)
    est += 4 * strip * Wo * hidden * f32 + 2 * strip * Wo * oup * f32
    wbytes = (9 * hidden + hidden + oup) * f32 + hidden * oup * bf16
    if has_expand:
        wbytes += inp * hidden * bf16 + hidden * f32
    est += 2 * wbytes                              # resident, double-buffered
    est = int(est * 1.5) + (8 << 20)               # compiler-scratch headroom
    try:
        cap = int(pltpu.get_tpu_info().vmem_capacity_bytes) * 3 // 4
    except Exception:                              # pragma: no cover
        cap = 48 << 20                             # safe on v7x's 64 MiB VMEM
    return int(max(16 << 20, min(est, cap)))


# --------------------------- parameters / folding ---------------------------

def _bn_params(key, c):
    k1, k2, k3, k4 = jax.random.split(key, 4)
    gamma = 1.0 + 0.1 * jax.random.normal(k1, (c,), jnp.float32)
    beta = 0.1 * jax.random.normal(k2, (c,), jnp.float32)
    mean = 0.1 * jax.random.normal(k3, (c,), jnp.float32)
    var = jnp.abs(jax.random.normal(k4, (c,), jnp.float32)) + 0.5
    return (gamma, beta, mean, var)


def _fold_bn(bn, eps=1e-5):
    gamma, beta, mean, var = bn
    scale = gamma / jnp.sqrt(var + eps)
    bias = beta - mean * scale
    return scale.reshape(1, -1), bias.reshape(1, -1)


def inverted_residual_params(key, inp, oup, expand_ratio):
    hidden = int(round(inp * expand_ratio))
    keys = jax.random.split(key, 6)
    params = {}
    if expand_ratio != 1:
        params["w_expand"] = 0.1 * jax.random.normal(keys[0], (inp, hidden),
                                                     jnp.float32)
        params["bn1"] = _bn_params(keys[1], hidden)
    params["w_dw"] = 0.1 * jax.random.normal(keys[2], (3, 3, hidden),
                                             jnp.float32)
    params["bn2"] = _bn_params(keys[3], hidden)
    params["w_proj"] = 0.1 * jax.random.normal(keys[4], (hidden, oup),
                                               jnp.float32)
    params["bn3"] = _bn_params(keys[5], oup)
    return params


# ------------------------------ forward (Pallas) ------------------------------

def inverted_residual_forward_nhwc(x_nhwc, params, inp, oup, stride,
                                   expand_ratio):
    assert stride in (1, 2)
    N, H, W, C = x_nhwc.shape
    assert C == inp
    hidden = int(round(inp * expand_ratio))
    has_expand = expand_ratio != 1
    use_res = (stride == 1 and inp == oup)
    Ho = (H + 2 - 3) // stride + 1
    Wo = (W + 2 - 3) // stride + 1
    Hp = H + 2
    Wp = PADW_L + W + PADW_R

    strip = _pick_strip(Ho)
    n_strips = Ho // strip

    # bf16 hidden scratch for stride=1 (halves scratch + tap bytes); f32 for
    # stride=2 to keep the double-strided tap reads on a 32-bit dtype.
    scratch_dtype = jnp.bfloat16 if stride == 1 else jnp.float32

    x = x_nhwc.astype(jnp.float32)

    # Fold eval-mode BN scale into conv weights at trace time; 1x1 weights are
    # stored/DMA'd in bf16 (MXU-native), depthwise weights stay f32 (VPU).
    s2, b2 = _fold_bn(params["bn2"])
    wd = (params["w_dw"].reshape(9, hidden) * s2).astype(jnp.float32)
    s3, b3 = _fold_bn(params["bn3"])
    wp = (params["w_proj"] * s3).astype(jnp.bfloat16)

    def wspec(shape):
        return pl.BlockSpec(shape, lambda n: (0, 0))   # weights stay resident

    operands = [x]
    in_specs = [pl.BlockSpec((1, H, W, inp), lambda n: (n, 0, 0, 0))]
    if has_expand:
        s1, b1 = _fold_bn(params["bn1"])
        we = (params["w_expand"] * s1).astype(jnp.bfloat16)
        operands += [we, b1]
        in_specs += [wspec((inp, hidden)), wspec((1, hidden))]
    operands += [wd, b2, wp, b3]
    in_specs += [wspec((9, hidden)), wspec((1, hidden)),
                 wspec((hidden, oup)), wspec((1, oup))]

    kernel = _make_fused_kernel(stride, has_expand, use_res, strip, n_strips,
                                H, W)
    vmem_limit = _vmem_limit_bytes(H, W, inp, oup, hidden, Ho, Wo, Wp, strip,
                                   has_expand, jnp.dtype(scratch_dtype).itemsize)

    return pl.pallas_call(
        kernel,
        out_shape=jax.ShapeDtypeStruct((N, Ho, Wo, oup), jnp.float32),
        grid=(N,),
        in_specs=in_specs,
        out_specs=pl.BlockSpec((1, Ho, Wo, oup), lambda n: (n, 0, 0, 0)),
        scratch_shapes=[pltpu.VMEM((Hp, Wp, hidden), scratch_dtype)],
        compiler_params=pltpu.CompilerParams(
            dimension_semantics=("parallel",),
            vmem_limit_bytes=vmem_limit),
    )(*operands)


def inverted_residual_forward(x_nchw, params, inp, oup, stride, expand_ratio):
    # NCHW wrapper for PyTorch parity; NHWC-native callers should use
    # inverted_residual_forward_nhwc directly and skip these two HBM passes.
    x = jnp.transpose(x_nchw, (0, 2, 3, 1))
    o = inverted_residual_forward_nhwc(x, params, inp, oup, stride,
                                       expand_ratio)
    return jnp.transpose(o, (0, 3, 1, 2))


# --------------------------- pure-JAX reference (NCHW) ---------------------------

def reference_forward(x_nchw, params, inp, oup, stride, expand_ratio, eps=1e-5):
    hidden = int(round(inp * expand_ratio))
    use_res = (stride == 1 and inp == oup)
    dn = ("NCHW", "OIHW", "NCHW")
    prec = lax.Precision.HIGHEST

    def bn(y, bnp):
        gamma, beta, mean, var = bnp
        rs = lambda a: a.reshape(1, -1, 1, 1)
        return (y - rs(mean)) / jnp.sqrt(rs(var) + eps) * rs(gamma) + rs(beta)

    h = x_nchw.astype(jnp.float32)
    if expand_ratio != 1:
        w = jnp.transpose(params["w_expand"], (1, 0))[:, :, None, None]
        h = lax.conv_general_dilated(h, w, (1, 1), "VALID",
                                     dimension_numbers=dn, precision=prec)
        h = jnp.clip(bn(h, params["bn1"]), 0.0, 6.0)
    wdw = jnp.transpose(params["w_dw"], (2, 0, 1))[:, None, :, :]
    h = lax.conv_general_dilated(h, wdw, (stride, stride), ((1, 1), (1, 1)),
                                 dimension_numbers=dn,
                                 feature_group_count=hidden, precision=prec)
    h = jnp.clip(bn(h, params["bn2"]), 0.0, 6.0)
    wp = jnp.transpose(params["w_proj"], (1, 0))[:, :, None, None]
    h = lax.conv_general_dilated(h, wp, (1, 1), "VALID",
                                 dimension_numbers=dn, precision=prec)
    h = bn(h, params["bn3"])
    return x_nchw + h if use_res else h


# ----------------------------------- main -----------------------------------

if __name__ == "__main__":
    key = jax.random.PRNGKey(0)
    kx, kp1, kp2, kp3 = jax.random.split(key, 4)

    # bf16 MXU operands + bf16 hidden scratch vs f32 HIGHEST-precision
    # reference -> loose (bf16-appropriate) tolerance.
    TOL = dict(atol=3e-2, rtol=3e-2)

    # Case 1: stride=1, inp == oup -> residual connection exercised.
    inp, oup, stride, expand_ratio = 4, 4, 1, 6
    x = jax.random.normal(kx, (2, inp, 16, 16), jnp.float32)
    params = inverted_residual_params(kp1, inp, oup, expand_ratio)
    out = jax.block_until_ready(
        inverted_residual_forward(x, params, inp, oup, stride, expand_ratio))
    ref = reference_forward(x, params, inp, oup, stride, expand_ratio)
    assert out.shape == (2, oup, 16, 16), out.shape
    assert jnp.allclose(out, ref, **TOL), float(jnp.max(jnp.abs(out - ref)))

    # Case 2: stride=2, inp != oup -> no residual, spatial downsampling,
    # strided in-kernel depthwise taps.
    inp2, oup2, stride2, expand2 = 4, 8, 2, 6
    x2 = jax.random.normal(kx, (2, inp2, 16, 16), jnp.float32)
    params2 = inverted_residual_params(kp2, inp2, oup2, expand2)
    out2 = jax.block_until_ready(
        inverted_residual_forward(x2, params2, inp2, oup2, stride2, expand2))
    ref2 = reference_forward(x2, params2, inp2, oup2, stride2, expand2)
    assert out2.shape == (2, oup2, 8, 8), out2.shape
    assert jnp.allclose(out2, ref2, **TOL), float(jnp.max(jnp.abs(out2 - ref2)))

    # Case 3: expand_ratio=1 -> no expand conv, residual connection.
    inp3, oup3, stride3, expand3 = 8, 8, 1, 1
    x3 = jax.random.normal(kx, (2, inp3, 16, 16), jnp.float32)
    params3 = inverted_residual_params(kp3, inp3, oup3, expand3)
    out3 = jax.block_until_ready(
        inverted_residual_forward(x3, params3, inp3, oup3, stride3, expand3))
    ref3 = reference_forward(x3, params3, inp3, oup3, stride3, expand3)
    assert out3.shape == (2, oup3, 16, 16), out3.shape
    assert jnp.allclose(out3, ref3, **TOL), float(jnp.max(jnp.abs(out3 - ref3)))

    print("KERNEL_OK")
</pallas_src>

<mosaic_0001>
module attributes {stable_mosaic.version = 11 : i64} {
  func.func @kernel(%arg0: i32, %arg1: memref<1x16x16x4xf32, #tpu.memory_space<vmem>>, %arg2: memref<4x24xbf16, #tpu.memory_space<vmem>>, %arg3: memref<1x24xf32, #tpu.memory_space<vmem>>, %arg4: memref<9x24xf32, #tpu.memory_space<vmem>>, %arg5: memref<1x24xf32, #tpu.memory_space<vmem>>, %arg6: memref<24x4xbf16, #tpu.memory_space<vmem>>, %arg7: memref<1x4xf32, #tpu.memory_space<vmem>>, %arg8: memref<1x16x16x4xf32, #tpu.memory_space<vmem>>, %arg9: memref<18x40x24xbf16, #tpu.memory_space<vmem>>) attributes {dimension_semantics = [#tpu.dimension_semantics<parallel>], iteration_bounds = array<i64: 2>, scalar_prefetch = 0 : i64, scratch_operands = 1 : i64, tpu.core_type = #tpu.core_type<tc>, window_params = [{transform_indices = @transform_0, window_bounds = array<i64: 1, 16, 16, 4>}, {pipeline_mode = #tpu.pipeline_mode<synchronous>, transform_indices = @transform_1, window_bounds = array<i64: 4, 24>}, {pipeline_mode = #tpu.pipeline_mode<synchronous>, transform_indices = @transform_2, window_bounds = array<i64: 1, 24>}, {pipeline_mode = #tpu.pipeline_mode<synchronous>, transform_indices = @transform_3, window_bounds = array<i64: 9, 24>}, {pipeline_mode = #tpu.pipeline_mode<synchronous>, transform_indices = @transform_4, window_bounds = array<i64: 1, 24>}, {pipeline_mode = #tpu.pipeline_mode<synchronous>, transform_indices = @transform_5, window_bounds = array<i64: 24, 4>}, {pipeline_mode = #tpu.pipeline_mode<synchronous>, transform_indices = @transform_6, window_bounds = array<i64: 1, 4>}, {transform_indices = @transform_7, window_bounds = array<i64: 1, 16, 16, 4>}]} {
    %cst = arith.constant 0.000000e+00 : bf16
    %0 = vector.broadcast %cst : bf16 to vector<1x40x24xbf16>
    %c0 = arith.constant 0 : index
    %c0_0 = arith.constant 0 : index
    %c0_1 = arith.constant 0 : index
    %1 = vector.load %arg9[%c0, %c0_0, %c0_1] : memref<18x40x24xbf16, #tpu.memory_space<vmem>>, vector<1x40x24xbf16>
    tpu.vector_store %arg9[%c0, %c0_0, %c0_1], %0 {strides = array<i32>} : memref<18x40x24xbf16, #tpu.memory_space<vmem>>, vector<1x40x24xbf16>,
    %cst_2 = arith.constant 0.000000e+00 : bf16
    %2 = vector.broadcast %cst_2 : bf16 to vector<1x40x24xbf16>
    %c17 = arith.constant 17 : index
    %c0_3 = arith.constant 0 : index
    %c0_4 = arith.constant 0 : index
    %3 = vector.load %arg9[%c17, %c0_3, %c0_4] : memref<18x40x24xbf16, #tpu.memory_space<vmem>>, vector<1x40x24xbf16>
    tpu.vector_store %arg9[%c17, %c0_3, %c0_4], %2 {strides = array<i32>} : memref<18x40x24xbf16, #tpu.memory_space<vmem>>, vector<1x40x24xbf16>,
    %cst_5 = arith.constant 0.000000e+00 : bf16
    %4 = vector.broadcast %cst_5 : bf16 to vector<18x16x24xbf16>
    %c0_6 = arith.constant 0 : index
    %c0_7 = arith.constant 0 : index
    %c0_8 = arith.constant 0 : index
    %5 = vector.load %arg9[%c0_6, %c0_7, %c0_8] : memref<18x40x24xbf16, #tpu.memory_space<vmem>>, vector<18x16x24xbf16>
    tpu.vector_store %arg9[%c0_6, %c0_7, %c0_8], %4 {strides = array<i32>} : memref<18x40x24xbf16, #tpu.memory_space<vmem>>, vector<18x16x24xbf16>,
    %cst_9 = arith.constant 0.000000e+00 : bf16
    %6 = vector.broadcast %cst_9 : bf16 to vector<18x8x24xbf16>
    %c0_10 = arith.constant 0 : index
    %c32 = arith.constant 32 : index
    %c0_11 = arith.constant 0 : index
    %7 = vector.load %arg9[%c0_10, %c32, %c0_11] : memref<18x40x24xbf16, #tpu.memory_space<vmem>>, vector<18x8x24xbf16>
    tpu.vector_store %arg9[%c0_10, %c32, %c0_11], %6 {strides = array<i32>} : memref<18x40x24xbf16, #tpu.memory_space<vmem>>, vector<18x8x24xbf16>,
    %c0_12 = arith.constant 0 : index
    %c0_13 = arith.constant 0 : index
    %c0_14 = arith.constant 0 : index
    %c0_15 = arith.constant 0 : index
    %8 = vector.load %arg1[%c0_12, %c0_13, %c0_14, %c0_15] : memref<1x16x16x4xf32, #tpu.memory_space<vmem>>, vector<1x16x16x4xf32>
    %9 = vector.shape_cast %8 : vector<1x16x16x4xf32> to vector<16x16x4xf32>
    %10 = vector.shape_cast %9 : vector<16x16x4xf32> to vector<256x4xf32>
    %11 = arith.truncf %10 : vector<256x4xf32> to vector<256x4xbf16>
    %c0_16 = arith.constant 0 : index
    %c0_17 = arith.constant 0 : index
    %12 = vector.load %arg2[%c0_16, %c0_17] : memref<4x24xbf16, #tpu.memory_space<vmem>>, vector<4x24xbf16>
    %cst_18 = arith.constant dense<0.000000e+00> : vector<256x24xf32>
    %13 = tpu.matmul %11, %12, %cst_18 {dimension_numbers = #tpu.dot_dimension_numbers<[1], [0], [0], [1], [0, 0, 1, 1], [], []>} : vector<256x4xbf16>, vector<4x24xbf16>, vector<256x24xf32> -> vector<256x24xf32>
    %c0_19 = arith.constant 0 : index
    %c0_20 = arith.constant 0 : index
    %14 = vector.load %arg3[%c0_19, %c0_20] : memref<1x24xf32, #tpu.memory_space<vmem>>, vector<1x24xf32>
    %15 = vector.broadcast %14 : vector<1x24xf32> to vector<256x24xf32>
    %16 = arith.addf %13, %15 : vector<256x24xf32>
    %cst_21 = arith.constant 0.000000e+00 : f32
    %cst_22 = arith.constant 6.000000e+00 : f32
    %17 = vector.broadcast %cst_21 : f32 to vector<256x24xf32>
    %18 = arith.maximumf %17, %16 : vector<256x24xf32>
    %19 = vector.broadcast %cst_22 : f32 to vector<256x24xf32>
    %20 = arith.minimumf %19, %18 : vector<256x24xf32>
    %21 = vector.shape_cast %20 : vector<256x24xf32> to vector<16x16x24xf32>
    %22 = arith.truncf %21 : vector<16x16x24xf32> to vector<16x16x24xbf16>
    %c1 = arith.constant 1 : index
    %c16 = arith.constant 16 : index
    %c0_23 = arith.constant 0 : index
    %23 = vector.load %arg9[%c1, %c16, %c0_23] : memref<18x40x24xbf16, #tpu.memory_space<vmem>>, vector<16x16x24xbf16>
    tpu.vector_store %arg9[%c1, %c16, %c0_23], %22 {strides = array<i32>} : memref<18x40x24xbf16, #tpu.memory_space<vmem>>, vector<16x16x24xbf16>,
    %c0_24 = arith.constant 0 : index
    %c0_25 = arith.constant 0 : index
    %24 = vector.load %arg4[%c0_24, %c0_25] : memref<9x24xf32, #tpu.memory_space<vmem>>, vector<1x24xf32>
    %25 = vector.shape_cast %24 : vector<1x24xf32> to vector<1x1x24xf32>
    %c1_26 = arith.constant 1 : index
    %c0_27 = arith.constant 0 : index
    %26 = vector.load %arg4[%c1_26, %c0_27] : memref<9x24xf32, #tpu.memory_space<vmem>>, vector<1x24xf32>
    %27 = vector.shape_cast %26 : vector<1x24xf32> to vector<1x1x24xf32>
    %c2 = arith.constant 2 : index
    %c0_28 = arith.constant 0 : index
    %28 = vector.load %arg4[%c2, %c0_28] : memref<9x24xf32, #tpu.memory_space<vmem>>, vector<1x24xf32>
    %29 = vector.shape_cast %28 : vector<1x24xf32> to vector<1x1x24xf32>
    %c3 = arith.constant 3 : index
    %c0_29 = arith.constant 0 : index
    %30 = vector.load %arg4[%c3, %c0_29] : memref<9x24xf32, #tpu.memory_space<vmem>>, vector<1x24xf32>
    %31 = vector.shape_cast %30 : vector<1x24xf32> to vector<1x1x24xf32>
    %c4 = arith.constant 4 : index
    %c0_30 = arith.constant 0 : index
    %32 = vector.load %arg4[%c4, %c0_30] : memref<9x24xf32, #tpu.memory_space<vmem>>, vector<1x24xf32>
    %33 = vector.shape_cast %32 : vector<1x24xf32> to vector<1x1x24xf32>
    %c5 = arith.constant 5 : index
    %c0_31 = arith.constant 0 : index
    %34 = vector.load %arg4[%c5, %c0_31] : memref<9x24xf32, #tpu.memory_space<vmem>>, vector<1x24xf32>
    %35 = vector.shape_cast %34 : vector<1x24xf32> to vector<1x1x24xf32>
    %c6 = arith.constant 6 : index
    %c0_32 = arith.constant 0 : index
    %36 = vector.load %arg4[%c6, %c0_32] : memref<9x24xf32, #tpu.memory_space<vmem>>, vector<1x24xf32>
    %37 = vector.shape_cast %36 : vector<1x24xf32> to vector<1x1x24xf32>
    %c7 = arith.constant 7 : index
    %c0_33 = arith.constant 0 : index
    %38 = vector.load %arg4[%c7, %c0_33] : memref<9x24xf32, #tpu.memory_space<vmem>>, vector<1x24xf32>
    %39 = vector.shape_cast %38 : vector<1x24xf32> to vector<1x1x24xf32>
    %c8 = arith.constant 8 : index
    %c0_34 = arith.constant 0 : index
    %40 = vector.load %arg4[%c8, %c0_34] : memref<9x24xf32, #tpu.memory_space<vmem>>, vector<1x24xf32>
    %41 = vector.shape_cast %40 : vector<1x24xf32> to vector<1x1x24xf32>
    %c0_35 = arith.constant 0 : index
    %c0_36 = arith.constant 0 : index
    %42 = vector.load %arg5[%c0_35, %c0_36] : memref<1x24xf32, #tpu.memory_space<vmem>>, vector<1x24xf32>
    %43 = vector.shape_cast %42 : vector<1x24xf32> to vector<1x1x24xf32>
    %c0_37 = arith.constant 0 : index
    %c0_38 = arith.constant 0 : index
    %44 = vector.load %arg6[%c0_37, %c0_38] : memref<24x4xbf16, #tpu.memory_space<vmem>>, vector<24x4xbf16>
    %c0_39 = arith.constant 0 : index
    %c0_40 = arith.constant 0 : index
    %45 = vector.load %arg7[%c0_39, %c0_40] : memref<1x4xf32, #tpu.memory_space<vmem>>, vector<1x4xf32>
    %c0_i32 = arith.constant 0 : i32
    %c8_i32 = arith.constant 8 : i32
    %46 = arith.muli %c0_i32, %c8_i32 : i32
    %47 = tpu.assume_multiple %46, 8 : i32
    %c1_i32 = arith.constant 1 : i32
    %48 = arith.muli %47, %c1_i32 : i32
    %c0_i32_41 = arith.constant 0 : i32
    %49 = arith.addi %48, %c0_i32_41 : i32
    %50 = arith.index_cast %49 : i32 to index
    %c15 = arith.constant 15 : index
    %c0_42 = arith.constant 0 : index
    %51 = vector.load %arg9[%50, %c15, %c0_42] : memref<18x40x24xbf16, #tpu.memory_space<vmem>>, vector<8x16x24xbf16>
    %52 = arith.extf %51 : vector<8x16x24xbf16> to vector<8x16x24xf32>
    %53 = vector.broadcast %25 : vector<1x1x24xf32> to vector<8x16x24xf32>
    %54 = arith.mulf %52, %53 : vector<8x16x24xf32>
    %c1_i32_43 = arith.constant 1 : i32
    %55 = arith.muli %47, %c1_i32_43 : i32
    %c0_i32_44 = arith.constant 0 : i32
    %56 = arith.addi %55, %c0_i32_44 : i32
    %57 = arith.index_cast %56 : i32 to index
    %c16_45 = arith.constant 16 : index
    %c0_46 = arith.constant 0 : index
    %58 = vector.load %arg9[%57, %c16_45, %c0_46] : memref<18x40x24xbf16, #tpu.memory_space<vmem>>, vector<8x16x24xbf16>
    %59 = arith.extf %58 : vector<8x16x24xbf16> to vector<8x16x24xf32>
    %60 = vector.broadcast %27 : vector<1x1x24xf32> to vector<8x16x24xf32>
    %61 = arith.mulf %59, %60 : vector<8x16x24xf32>
    %62 = arith.addf %54, %61 : vector<8x16x24xf32>
    %c1_i32_47 = arith.constant 1 : i32
    %63 = arith.muli %47, %c1_i32_47 : i32
    %c0_i32_48 = arith.constant 0 : i32
    %64 = arith.addi %63, %c0_i32_48 : i32
    %65 = arith.index_cast %64 : i32 to index
    %c17_49 = arith.constant 17 : index
    %c0_50 = arith.constant 0 : index
    %66 = vector.load %arg9[%65, %c17_49, %c0_50] : memref<18x40x24xbf16, #tpu.memory_space<vmem>>, vector<8x16x24xbf16>
    %67 = arith.extf %66 : vector<8x16x24xbf16> to vector<8x16x24xf32>
    %68 = vector.broadcast %29 : vector<1x1x24xf32> to vector<8x16x24xf32>
    %69 = arith.mulf %67, %68 : vector<8x16x24xf32>
    %70 = arith.addf %62, %69 : vector<8x16x24xf32>
    %c1_i32_51 = arith.constant 1 : i32
    %71 = arith.muli %47, %c1_i32_51 : i32
    %c1_i32_52 = arith.constant 1 : i32
    %72 = arith.addi %71, %c1_i32_52 : i32
    %73 = arith.index_cast %72 : i32 to index
    %c15_53 = arith.constant 15 : index
    %c0_54 = arith.constant 0 : index
    %74 = vector.load %arg9[%73, %c15_53, %c0_54] : memref<18x40x24xbf16, #tpu.memory_space<vmem>>, vector<8x16x24xbf16>
    %75 = arith.extf %74 : vector<8x16x24xbf16> to vector<8x16x24xf32>
    %76 = vector.broadcast %31 : vector<1x1x24xf32> to vector<8x16x24xf32>
    %77 = arith.mulf %75, %76 : vector<8x16x24xf32>
    %78 = arith.addf %70, %77 : vector<8x16x24xf32>
    %c1_i32_55 = arith.constant 1 : i32
    %79 = arith.muli %47, %c1_i32_55 : i32
    %c1_i32_56 = arith.constant 1 : i32
    %80 = arith.addi %79, %c1_i32_56 : i32
    %81 = arith.index_cast %80 : i32 to index
    %c16_57 = arith.constant 16 : index
    %c0_58 = arith.constant 0 : index
    %82 = vector.load %arg9[%81, %c16_57, %c0_58] : memref<18x40x24xbf16, #tpu.memory_space<vmem>>, vector<8x16x24xbf16>
    %83 = arith.extf %82 : vector<8x16x24xbf16> to vector<8x16x24xf32>
    %84 = vector.broadcast %33 : vector<1x1x24xf32> to vector<8x16x24xf32>
    %85 = arith.mulf %83, %84 : vector<8x16x24xf32>
    %86 = arith.addf %78, %85 : vector<8x16x24xf32>
    %c1_i32_59 = arith.constant 1 : i32
    %87 = arith.muli %47, %c1_i32_59 : i32
    %c1_i32_60 = arith.constant 1 : i32
    %88 = arith.addi %87, %c1_i32_60 : i32
    %89 = arith.index_cast %88 : i32 to index
    %c17_61 = arith.constant 17 : index
    %c0_62 = arith.constant 0 : index
    %90 = vector.load %arg9[%89, %c17_61, %c0_62] : memref<18x40x24xbf16, #tpu.memory_space<vmem>>, vector<8x16x24xbf16>
    %91 = arith.extf %90 : vector<8x16x24xbf16> to vector<8x16x24xf32>
    %92 = vector.broadcast %35 : vector<1x1x24xf32> to vector<8x16x24xf32>
    %93 = arith.mulf %91, %92 : vector<8x16x24xf32>
    %94 = arith.addf %86, %93 : vector<8x16x24xf32>
    %c1_i32_63 = arith.constant 1 : i32
    %95 = arith.muli %47, %c1_i32_63 : i32
    %c2_i32 = arith.constant 2 : i32
    %96 = arith.addi %95, %c2_i32 : i32
    %97 = arith.index_cast %96 : i32 to index
    %c15_64 = arith.constant 15 : index
    %c0_65 = arith.constant 0 : index
    %98 = vector.load %arg9[%97, %c15_64, %c0_65] : memref<18x40x24xbf16, #tpu.memory_space<vmem>>, vector<8x16x24xbf16>
    %99 = arith.extf %98 : vector<8x16x24xbf16> to vector<8x16x24xf32>
    %100 = vector.broadcast %37 : vector<1x1x24xf32> to vector<8x16x24xf32>
    %101 = arith.mulf %99, %100 : vector<8x16x24xf32>
    %102 = arith.addf %94, %101 : vector<8x16x24xf32>
    %c1_i32_66 = arith.constant 1 : i32
    %103 = arith.muli %47, %c1_i32_66 : i32
    %c2_i32_67 = arith.constant 2 : i32
    %104 = arith.addi %103, %c2_i32_67 : i32
    %105 = arith.index_cast %104 : i32 to index
    %c16_68 = arith.constant 16 : index
    %c0_69 = arith.constant 0 : index
    %106 = vector.load %arg9[%105, %c16_68, %c0_69] : memref<18x40x24xbf16, #tpu.memory_space<vmem>>, vector<8x16x24xbf16>
    %107 = arith.extf %106 : vector<8x16x24xbf16> to vector<8x16x24xf32>
    %108 = vector.broadcast %39 : vector<1x1x24xf32> to vector<8x16x24xf32>
    %109 = arith.mulf %107, %108 : vector<8x16x24xf32>
    %110 = arith.addf %102, %109 : vector<8x16x24xf32>
    %c1_i32_70 = arith.constant 1 : i32
    %111 = arith.muli %47, %c1_i32_70 : i32
    %c2_i32_71 = arith.constant 2 : i32
    %112 = arith.addi %111, %c2_i32_71 : i32
    %113 = arith.index_cast %112 : i32 to index
    %c17_72 = arith.constant 17 : index
    %c0_73 = arith.constant 0 : index
    %114 = vector.load %arg9[%113, %c17_72, %c0_73] : memref<18x40x24xbf16, #tpu.memory_space<vmem>>, vector<8x16x24xbf16>
    %115 = arith.extf %114 : vector<8x16x24xbf16> to vector<8x16x24xf32>
    %116 = vector.broadcast %41 : vector<1x1x24xf32> to vector<8x16x24xf32>
    %117 = arith.mulf %115, %116 : vector<8x16x24xf32>
    %118 = arith.addf %110, %117 : vector<8x16x24xf32>
    %119 = vector.broadcast %43 : vector<1x1x24xf32> to vector<8x16x24xf32>
    %120 = arith.addf %118, %119 : vector<8x16x24xf32>
    %cst_74 = arith.constant 0.000000e+00 : f32
    %cst_75 = arith.constant 6.000000e+00 : f32
    %121 = vector.broadcast %cst_74 : f32 to vector<8x16x24xf32>
    %122 = arith.maximumf %121, %120 : vector<8x16x24xf32>
    %123 = vector.broadcast %cst_75 : f32 to vector<8x16x24xf32>
    %124 = arith.minimumf %123, %122 : vector<8x16x24xf32>
    %125 = vector.shape_cast %124 : vector<8x16x24xf32> to vector<128x24xf32>
    %126 = arith.truncf %125 : vector<128x24xf32> to vector<128x24xbf16>
    %cst_76 = arith.constant dense<0.000000e+00> : vector<128x4xf32>
    %127 = tpu.matmul %126, %44, %cst_76 {dimension_numbers = #tpu.dot_dimension_numbers<[1], [0], [0], [1], [0, 0, 1, 1], [], []>} : vector<128x24xbf16>, vector<24x4xbf16>, vector<128x4xf32> -> vector<128x4xf32>
    %128 = vector.broadcast %45 : vector<1x4xf32> to vector<128x4xf32>
    %129 = arith.addf %127, %128 : vector<128x4xf32>
    %130 = vector.shape_cast %129 : vector<128x4xf32> to vector<8x16x4xf32>
    %c0_77 = arith.constant 0 : index
    %131 = arith.index_cast %47 : i32 to index
    %c0_78 = arith.constant 0 : index
    %c0_79 = arith.constant 0 : index
    %132 = vector.load %arg1[%c0_77, %131, %c0_78, %c0_79] : memref<1x16x16x4xf32, #tpu.memory_space<vmem>>, vector<1x8x16x4xf32>
    %133 = vector.shape_cast %132 : vector<1x8x16x4xf32> to vector<8x16x4xf32>
    %134 = arith.addf %130, %133 : vector<8x16x4xf32>
    %c0_80 = arith.constant 0 : index
    %135 = arith.index_cast %47 : i32 to index
    %c0_81 = arith.constant 0 : index
    %c0_82 = arith.constant 0 : index
    %136 = vector.load %arg8[%c0_80, %135, %c0_81, %c0_82] : memref<1x16x16x4xf32, #tpu.memory_space<vmem>>, vector<1x8x16x4xf32>
    %137 = vector.shape_cast %136 : vector<1x8x16x4xf32> to vector<8x16x4xf32>
    %138 = vector.shape_cast %134 : vector<8x16x4xf32> to vector<1x8x16x4xf32>
    tpu.vector_store %arg8[%c0_80, %135, %c0_81, %c0_82], %138 {strides = array<i32>} : memref<1x16x16x4xf32, #tpu.memory_space<vmem>>, vector<1x8x16x4xf32>,
    %c1_i32_83 = arith.constant 1 : i32
    %c8_i32_84 = arith.constant 8 : i32
    %139 = arith.muli %c1_i32_83, %c8_i32_84 : i32
    %140 = tpu.assume_multiple %139, 8 : i32
    %c1_i32_85 = arith.constant 1 : i32
    %141 = arith.muli %140, %c1_i32_85 : i32
    %c0_i32_86 = arith.constant 0 : i32
    %142 = arith.addi %141, %c0_i32_86 : i32
    %143 = arith.index_cast %142 : i32 to index
    %c15_87 = arith.constant 15 : index
    %c0_88 = arith.constant 0 : index
    %144 = vector.load %arg9[%143, %c15_87, %c0_88] : memref<18x40x24xbf16, #tpu.memory_space<vmem>>, vector<8x16x24xbf16>
    %145 = arith.extf %144 : vector<8x16x24xbf16> to vector<8x16x24xf32>
    %146 = vector.broadcast %25 : vector<1x1x24xf32> to vector<8x16x24xf32>
    %147 = arith.mulf %145, %146 : vector<8x16x24xf32>
    %c1_i32_89 = arith.constant 1 : i32
    %148 = arith.muli %140, %c1_i32_89 : i32
    %c0_i32_90 = arith.constant 0 : i32
    %149 = arith.addi %148, %c0_i32_90 : i32
    %150 = arith.index_cast %149 : i32 to index
    %c16_91 = arith.constant 16 : index
    %c0_92 = arith.constant 0 : index
    %151 = vector.load %arg9[%150, %c16_91, %c0_92] : memref<18x40x24xbf16, #tpu.memory_space<vmem>>, vector<8x16x24xbf16>
    %152 = arith.extf %151 : vector<8x16x24xbf16> to vector<8x16x24xf32>
    %153 = vector.broadcast %27 : vector<1x1x24xf32> to vector<8x16x24xf32>
    %154 = arith.mulf %152, %153 : vector<8x16x24xf32>
    %155 = arith.addf %147, %154 : vector<8x16x24xf32>
    %c1_i32_93 = arith.constant 1 : i32
    %156 = arith.muli %140, %c1_i32_93 : i32
    %c0_i32_94 = arith.constant 0 : i32
    %157 = arith.addi %156, %c0_i32_94 : i32
    %158 = arith.index_cast %157 : i32 to index
    %c17_95 = arith.constant 17 : index
    %c0_96 = arith.constant 0 : index
    %159 = vector.load %arg9[%158, %c17_95, %c0_96] : memref<18x40x24xbf16, #tpu.memory_space<vmem>>, vector<8x16x24xbf16>
    %160 = arith.extf %159 : vector<8x16x24xbf16> to vector<8x16x24xf32>
    %161 = vector.broadcast %29 : vector<1x1x24xf32> to vector<8x16x24xf32>
    %162 = arith.mulf %160, %161 : vector<8x16x24xf32>
    %163 = arith.addf %155, %162 : vector<8x16x24xf32>
    %c1_i32_97 = arith.constant 1 : i32
    %164 = arith.muli %140, %c1_i32_97 : i32
    %c1_i32_98 = arith.constant 1 : i32
    %165 = arith.addi %164, %c1_i32_98 : i32
    %166 = arith.index_cast %165 : i32 to index
    %c15_99 = arith.constant 15 : index
    %c0_100 = arith.constant 0 : index
    %167 = vector.load %arg9[%166, %c15_99, %c0_100] : memref<18x40x24xbf16, #tpu.memory_space<vmem>>, vector<8x16x24xbf16>
    %168 = arith.extf %167 : vector<8x16x24xbf16> to vector<8x16x24xf32>
    %169 = vector.broadcast %31 : vector<1x1x24xf32> to vector<8x16x24xf32>
    %170 = arith.mulf %168, %169 : vector<8x16x24xf32>
    %171 = arith.addf %163, %170 : vector<8x16x24xf32>
    %c1_i32_101 = arith.constant 1 : i32
    %172 = arith.muli %140, %c1_i32_101 : i32
    %c1_i32_102 = arith.constant 1 : i32
    %173 = arith.addi %172, %c1_i32_102 : i32
    %174 = arith.index_cast %173 : i32 to index
    %c16_103 = arith.constant 16 : index
    %c0_104 = arith.constant 0 : index
    %175 = vector.load %arg9[%174, %c16_103, %c0_104] : memref<18x40x24xbf16, #tpu.memory_space<vmem>>, vector<8x16x24xbf16>
    %176 = arith.extf %175 : vector<8x16x24xbf16> to vector<8x16x24xf32>
    %177 = vector.broadcast %33 : vector<1x1x24xf32> to vector<8x16x24xf32>
    %178 = arith.mulf %176, %177 : vector<8x16x24xf32>
    %179 = arith.addf %171, %178 : vector<8x16x24xf32>
    %c1_i32_105 = arith.constant 1 : i32
    %180 = arith.muli %140, %c1_i32_105 : i32
    %c1_i32_106 = arith.constant 1 : i32
    %181 = arith.addi %180, %c1_i32_106 : i32
    %182 = arith.index_cast %181 : i32 to index
    %c17_107 = arith.constant 17 : index
    %c0_108 = arith.constant 0 : index
    %183 = vector.load %arg9[%182, %c17_107, %c0_108] : memref<18x40x24xbf16, #tpu.memory_space<vmem>>, vector<8x16x24xbf16>
    %184 = arith.extf %183 : vector<8x16x24xbf16> to vector<8x16x24xf32>
    %185 = vector.broadcast %35 : vector<1x1x24xf32> to vector<8x16x24xf32>
    %186 = arith.mulf %184, %185 : vector<8x16x24xf32>
    %187 = arith.addf %179, %186 : vector<8x16x24xf32>
    %c1_i32_109 = arith.constant 1 : i32
    %188 = arith.muli %140, %c1_i32_109 : i32
    %c2_i32_110 = arith.constant 2 : i32
    %189 = arith.addi %188, %c2_i32_110 : i32
    %190 = arith.index_cast %189 : i32 to index
    %c15_111 = arith.constant 15 : index
    %c0_112 = arith.constant 0 : index
    %191 = vector.load %arg9[%190, %c15_111, %c0_112] : memref<18x40x24xbf16, #tpu.memory_space<vmem>>, vector<8x16x24xbf16>
    %192 = arith.extf %191 : vector<8x16x24xbf16> to vector<8x16x24xf32>
    %193 = vector.broadcast %37 : vector<1x1x24xf32> to vector<8x16x24xf32>
    %194 = arith.mulf %192, %193 : vector<8x16x24xf32>
    %195 = arith.addf %187, %194 : vector<8x16x24xf32>
    %c1_i32_113 = arith.constant 1 : i32
    %196 = arith.muli %140, %c1_i32_113 : i32
    %c2_i32_114 = arith.constant 2 : i32
    %197 = arith.addi %196, %c2_i32_114 : i32
    %198 = arith.index_cast %197 : i32 to index
    %c16_115 = arith.constant 16 : index
    %c0_116 = arith.constant 0 : index
    %199 = vector.load %arg9[%198, %c16_115, %c0_116] : memref<18x40x24xbf16, #tpu.memory_space<vmem>>, vector<8x16x24xbf16>
    %200 = arith.extf %199 : vector<8x16x24xbf16> to vector<8x16x24xf32>
    %201 = vector.broadcast %39 : vector<1x1x24xf32> to vector<8x16x24xf32>
    %202 = arith.mulf %200, %201 : vector<8x16x24xf32>
    %203 = arith.addf %195, %202 : vector<8x16x24xf32>
    %c1_i32_117 = arith.constant 1 : i32
    %204 = arith.muli %140, %c1_i32_117 : i32
    %c2_i32_118 = arith.constant 2 : i32
    %205 = arith.addi %204, %c2_i32_118 : i32
    %206 = arith.index_cast %205 : i32 to index
    %c17_119 = arith.constant 17 : index
    %c0_120 = arith.constant 0 : index
    %207 = vector.load %arg9[%206, %c17_119, %c0_120] : memref<18x40x24xbf16, #tpu.memory_space<vmem>>, vector<8x16x24xbf16>
    %208 = arith.extf %207 : vector<8x16x24xbf16> to vector<8x16x24xf32>
    %209 = vector.broadcast %41 : vector<1x1x24xf32> to vector<8x16x24xf32>
    %210 = arith.mulf %208, %209 : vector<8x16x24xf32>
    %211 = arith.addf %203, %210 : vector<8x16x24xf32>
    %212 = vector.broadcast %43 : vector<1x1x24xf32> to vector<8x16x24xf32>
    %213 = arith.addf %211, %212 : vector<8x16x24xf32>
    %cst_121 = arith.constant 0.000000e+00 : f32
    %cst_122 = arith.constant 6.000000e+00 : f32
    %214 = vector.broadcast %cst_121 : f32 to vector<8x16x24xf32>
    %215 = arith.maximumf %214, %213 : vector<8x16x24xf32>
    %216 = vector.broadcast %cst_122 : f32 to vector<8x16x24xf32>
    %217 = arith.minimumf %216, %215 : vector<8x16x24xf32>
    %218 = vector.shape_cast %217 : vector<8x16x24xf32> to vector<128x24xf32>
    %219 = arith.truncf %218 : vector<128x24xf32> to vector<128x24xbf16>
    %cst_123 = arith.constant dense<0.000000e+00> : vector<128x4xf32>
    %220 = tpu.matmul %219, %44, %cst_123 {dimension_numbers = #tpu.dot_dimension_numbers<[1], [0], [0], [1], [0, 0, 1, 1], [], []>} : vector<128x24xbf16>, vector<24x4xbf16>, vector<128x4xf32> -> vector<128x4xf32>
    %221 = vector.broadcast %45 : vector<1x4xf32> to vector<128x4xf32>
    %222 = arith.addf %220, %221 : vector<128x4xf32>
    %223 = vector.shape_cast %222 : vector<128x4xf32> to vector<8x16x4xf32>
    %c0_124 = arith.constant 0 : index
    %224 = arith.index_cast %140 : i32 to index
    %c0_125 = arith.constant 0 : index
    %c0_126 = arith.constant 0 : index
    %225 = vector.load %arg1[%c0_124, %224, %c0_125, %c0_126] : memref<1x16x16x4xf32, #tpu.memory_space<vmem>>, vector<1x8x16x4xf32>
    %226 = vector.shape_cast %225 : vector<1x8x16x4xf32> to vector<8x16x4xf32>
    %227 = arith.addf %223, %226 : vector<8x16x4xf32>
    %c0_127 = arith.constant 0 : index
    %228 = arith.index_cast %140 : i32 to index
    %c0_128 = arith.constant 0 : index
    %c0_129 = arith.constant 0 : index
    %229 = vector.load %arg8[%c0_127, %228, %c0_128, %c0_129] : memref<1x16x16x4xf32, #tpu.memory_space<vmem>>, vector<1x8x16x4xf32>
    %230 = vector.shape_cast %229 : vector<1x8x16x4xf32> to vector<8x16x4xf32>
    %231 = vector.shape_cast %227 : vector<8x16x4xf32> to vector<1x8x16x4xf32>
    tpu.vector_store %arg8[%c0_127, %228, %c0_128, %c0_129], %231 {strides = array<i32>} : memref<1x16x16x4xf32, #tpu.memory_space<vmem>>, vector<1x8x16x4xf32>,
    %c2_i32_130 = arith.constant 2 : i32
    return
  }
  func.func @transform_0(%arg0: i32) -> (i32, i32, i32, i32) {
    %c0_i32 = arith.constant 0 : i32
    %c0_i32_0 = arith.constant 0 : i32
    %c0_i32_1 = arith.constant 0 : i32
    %c0_i32_2 = arith.constant 0 : i32
    return %arg0, %c0_i32, %c0_i32_0, %c0_i32_1 : i32, i32, i32, i32
  }
  func.func @transform_1(%arg0: i32) -> (i32, i32) {
    %c0_i32 = arith.constant 0 : i32
    %c0_i32_0 = arith.constant 0 : i32
    %c0_i32_1 = arith.constant 0 : i32
    return %c0_i32, %c0_i32_0 : i32, i32
  }
  func.func @transform_2(%arg0: i32) -> (i32, i32) {
    %c0_i32 = arith.constant 0 : i32
    %c0_i32_0 = arith.constant 0 : i32
    %c0_i32_1 = arith.constant 0 : i32
    return %c0_i32, %c0_i32_0 : i32, i32
  }
  func.func @transform_3(%arg0: i32) -> (i32, i32) {
    %c0_i32 = arith.constant 0 : i32
    %c0_i32_0 = arith.constant 0 : i32
    %c0_i32_1 = arith.constant 0 : i32
    return %c0_i32, %c0_i32_0 : i32, i32
  }
  func.func @transform_4(%arg0: i32) -> (i32, i32) {
    %c0_i32 = arith.constant 0 : i32
    %c0_i32_0 = arith.constant 0 : i32
    %c0_i32_1 = arith.constant 0 : i32
    return %c0_i32, %c0_i32_0 : i32, i32
  }
  func.func @transform_5(%arg0: i32) -> (i32, i32) {
    %c0_i32 = arith.constant 0 : i32
    %c0_i32_0 = arith.constant 0 : i32
    %c0_i32_1 = arith.constant 0 : i32
    return %c0_i32, %c0_i32_0 : i32, i32
  }
  func.func @transform_6(%arg0: i32) -> (i32, i32) {
    %c0_i32 = arith.constant 0 : i32
    %c0_i32_0 = arith.constant 0 : i32
    %c0_i32_1 = arith.constant 0 : i32
    return %c0_i32, %c0_i32_0 : i32, i32
  }
  func.func @transform_7(%arg0: i32) -> (i32, i32, i32, i32) {
    %c0_i32 = arith.constant 0 : i32
    %c0_i32_0 = arith.constant 0 : i32
    %c0_i32_1 = arith.constant 0 : i32
    %c0_i32_2 = arith.constant 0 : i32
    return %arg0, %c0_i32, %c0_i32_0, %c0_i32_1 : i32, i32, i32, i32
  }
}

</mosaic_0001>

<llo_original>
// kernel: tpu_custom_call.1
$region0: #{tpu_custom_call.1}
  #allocation0 [shape = 'u32[]', space=smem, size = 0x4, offset = 0x4, fixed_abs, tag = 'smem constant byte address 0x4 - core index']
  #allocation1 [shape = 'u32[144,128]{1,0:T(1,128)}', space=vmem, size = 0x12000, scoped, tag = 'internal scratch']
  #allocation2 [shape = 'bf16[18,40,24]{2,1,0:T(8,128)(2,1)}', space=vmem, size = 0x2d000, scoped, tag = 'scratch operand']
  %s0 = inlined_call_operand.vmem [shape: f32[2,16,16,4], index: 0, kind: input, shape index: {}]
  %s1 = inlined_call_operand.vmem [shape: bf16[4,24], index: 1, kind: input, shape index: {}]
  %s2 = inlined_call_operand.vmem [shape: f32[1,24], index: 2, kind: input, shape index: {}]
  %s3 = inlined_call_operand.vmem [shape: f32[9,24], index: 3, kind: input, shape index: {}]
  %s4 = inlined_call_operand.vmem [shape: f32[1,24], index: 4, kind: input, shape index: {}]
  %s5 = inlined_call_operand.vmem [shape: bf16[24,4], index: 5, kind: input, shape index: {}]
  %s6 = inlined_call_operand.vmem [shape: f32[1,4], index: 6, kind: input, shape index: {}]
  %s7 = inlined_call_operand.vmem [shape: f32[2,16,16,4], index: 7, kind: output, shape index: {}]
  %s8 = sld [smem:[#allocation0]]
  $region61: #{tpu_custom_call.1} parent=0
    _
  %s10 = ssub.s32 1, %s8
  %s11 = scalar_select 0, %s10, %s8
  loop: start=0, step=1, limit=4
  $region2: #{tpu_custom_call.1} parent=0 // loop_pre_header
    _
  $region3: #{tpu_custom_call.1} parent=0 // loop_header
    %s13 = sphi 0, %s17
    %p14 = scmp.ge.s32.totalorder %s13, 4
    %s23 = sphi 0, %s25
    %s26 = sphi 0, %s23
    %s27 = sphi 0, %s26
    %s43 = sphi 0, %s27
    %s47 = sphi 0, %s47
    %s49 = sphi 0, %s47
    %s50 = sphi 0, %s49
    %s64 = sphi 0, %s50
    %s68 = sphi 0, %s68
    %s70 = sphi 0, %s68
    %s71 = sphi 0, %s70
    %s85 = sphi 0, %s71
    %s89 = sphi 0, %s89
    %s91 = sphi 0, %s89
    %s92 = sphi 0, %s91
    %s106 = sphi 0, %s92
    %s110 = sphi 0, %s110
    %s112 = sphi 0, %s110
    %s113 = sphi 0, %s112
    %s127 = sphi 0, %s113
    %s131 = sphi 0, %s131
    %s133 = sphi 0, %s131
    %s134 = sphi 0, %s133
    %s148 = sphi 0, %s134
    %s152 = sphi 0, %s152
    %s154 = sphi 0, %s152
    %s155 = sphi 0, %s154
    %s169 = sphi 0, %s155
    %s175 = sphi 0, %s177
    %s178 = sphi 0, %s175
    %s179 = sphi 0, %s178
    %s195 = sphi 0, %s179
  $region4: #{tpu_custom_call.1} parent=0 // loop_header_branch
    %16 = sbr.rel (%p14) target = $region8
  $region5: #{tpu_custom_call.1} parent=0 // loop_body
    %s18 = ssub.s32 %s13, 1
    %s19 = ssub.s32 %s13, 2
    %s20 = sadd.s32 %s13, 1
    %s21 = ssub.s32 %s13, %s20
    %p22 = scmp.eq.s32.totalorder %s21, 0
    %s24 = sadd.s32 %s23, 1
    %s25 = scalar_select %p22, %s23, %s24
    %p28 = pneg %p22
    %p29 = scmp.eq.s32.totalorder %s13, 1
    %p30 = por %p28, %p29
    %p31 = scmp.ne.s32.totalorder %s23, %s26
    %p32 = scmp.eq.s32.totalorder %s13, 0
    %p33 = por %p31, %p32
    %p34 = scmp.ne.s32.totalorder %s23, %s26
    %p35 = scmp.eq.s32.totalorder %s18, 1
    %p36 = por %p34, %p35
    %p37 = scmp.ne.s32.totalorder %s26, %s27
    %p38 = scmp.eq.s32.totalorder %s18, 0
    %p39 = por %p37, %p38
    %p40 = scmp.ne.s32.totalorder %s26, %s27
    %p41 = scmp.eq.s32.totalorder %s19, 1
    %p42 = por %p40, %p41
    %p44 = scmp.ne.s32.totalorder %s27, %s43
    %p45 = scmp.eq.s32.totalorder %s19, 0
    %p46 = por %p44, %p45
    %s48 = sadd.s32 %s47, 1
    %p51 = scmp.eq.s32.totalorder %s13, 1
    %p52 = scmp.ne.s32.totalorder %s47, %s49
    %p53 = scmp.eq.s32.totalorder %s13, 0
    %p54 = por %p52, %p53
    %p55 = scmp.ne.s32.totalorder %s47, %s49
    %p56 = scmp.eq.s32.totalorder %s18, 1
    %p57 = por %p55, %p56
    %p58 = scmp.ne.s32.totalorder %s49, %s50
    %p59 = scmp.eq.s32.totalorder %s18, 0
    %p60 = por %p58, %p59
    %p61 = scmp.ne.s32.totalorder %s49, %s50
    %p62 = scmp.eq.s32.totalorder %s19, 1
    %p63 = por %p61, %p62
    %p65 = scmp.ne.s32.totalorder %s50, %s64
    %p66 = scmp.eq.s32.totalorder %s19, 0
    %p67 = por %p65, %p66
    %s69 = sadd.s32 %s68, 1
    %p72 = scmp.eq.s32.totalorder %s13, 1
    %p73 = scmp.ne.s32.totalorder %s68, %s70
    %p74 = scmp.eq.s32.totalorder %s13, 0
    %p75 = por %p73, %p74
    %p76 = scmp.ne.s32.totalorder %s68, %s70
    %p77 = scmp.eq.s32.totalorder %s18, 1
    %p78 = por %p76, %p77
    %p79 = scmp.ne.s32.totalorder %s70, %s71
    %p80 = scmp.eq.s32.totalorder %s18, 0
    %p81 = por %p79, %p80
    %p82 = scmp.ne.s32.totalorder %s70, %s71
    %p83 = scmp.eq.s32.totalorder %s19, 1
    %p84 = por %p82, %p83
    %p86 = scmp.ne.s32.totalorder %s71, %s85
    %p87 = scmp.eq.s32.totalorder %s19, 0
    %p88 = por %p86, %p87
    %s90 = sadd.s32 %s89, 1
    %p93 = scmp.eq.s32.totalorder %s13, 1
    %p94 = scmp.ne.s32.totalorder %s89, %s91
    %p95 = scmp.eq.s32.totalorder %s13, 0
    %p96 = por %p94, %p95
    %p97 = scmp.ne.s32.totalorder %s89, %s91
    %p98 = scmp.eq.s32.totalorder %s18, 1
    %p99 = por %p97, %p98
    %p100 = scmp.ne.s32.totalorder %s91, %s92
    %p101 = scmp.eq.s32.totalorder %s18, 0
    %p102 = por %p100, %p101
    %p103 = scmp.ne.s32.totalorder %s91, %s92
    %p104 = scmp.eq.s32.totalorder %s19, 1
    %p105 = por %p103, %p104
    %p107 = scmp.ne.s32.totalorder %s92, %s106
    %p108 = scmp.eq.s32.totalorder %s19, 0
    %p109 = por %p107, %p108
    %s111 = sadd.s32 %s110, 1
    %p114 = scmp.eq.s32.totalorder %s13, 1
    %p115 = scmp.ne.s32.totalorder %s110, %s112
    %p116 = scmp.eq.s32.totalorder %s13, 0
    %p117 = por %p115, %p116
    %p118 = scmp.ne.s32.totalorder %s110, %s112
    %p119 = scmp.eq.s32.totalorder %s18, 1
    %p120 = por %p118, %p119
    %p121 = scmp.ne.s32.totalorder %s112, %s113
    %p122 = scmp.eq.s32.totalorder %s18, 0
    %p123 = por %p121, %p122
    %p124 = scmp.ne.s32.totalorder %s112, %s113
    %p125 = scmp.eq.s32.totalorder %s19, 1
    %p126 = por %p124, %p125
    %p128 = scmp.ne.s32.totalorder %s113, %s127
    %p129 = scmp.eq.s32.totalorder %s19, 0
    %p130 = por %p128, %p129
    %s132 = sadd.s32 %s131, 1
    %p135 = scmp.eq.s32.totalorder %s13, 1
    %p136 = scmp.ne.s32.totalorder %s131, %s133
    %p137 = scmp.eq.s32.totalorder %s13, 0
    %p138 = por %p136, %p137
    %p139 = scmp.ne.s32.totalorder %s131, %s133
    %p140 = scmp.eq.s32.totalorder %s18, 1
    %p141 = por %p139, %p140
    %p142 = scmp.ne.s32.totalorder %s133, %s134
    %p143 = scmp.eq.s32.totalorder %s18, 0
    %p144 = por %p142, %p143
    %p145 = scmp.ne.s32.totalorder %s133, %s134
    %p146 = scmp.eq.s32.totalorder %s19, 1
    %p147 = por %p145, %p146
    %p149 = scmp.ne.s32.totalorder %s134, %s148
    %p150 = scmp.eq.s32.totalorder %s19, 0
    %p151 = por %p149, %p150
    %s153 = sadd.s32 %s152, 1
    %p156 = scmp.eq.s32.totalorder %s13, 1
    %p157 = scmp.ne.s32.totalorder %s152, %s154
    %p158 = scmp.eq.s32.totalorder %s13, 0
    %p159 = por %p157, %p158
    %p160 = scmp.ne.s32.totalorder %s152, %s154
    %p161 = scmp.eq.s32.totalorder %s18, 1
    %p162 = por %p160, %p161
    %p163 = scmp.ne.s32.totalorder %s154, %s155
    %p164 = scmp.eq.s32.totalorder %s18, 0
    %p165 = por %p163, %p164
    %p166 = scmp.ne.s32.totalorder %s154, %s155
    %p167 = scmp.eq.s32.totalorder %s19, 1
    %p168 = por %p166, %p167
    %p170 = scmp.ne.s32.totalorder %s155, %s169
    %p171 = scmp.eq.s32.totalorder %s19, 0
    %p172 = por %p170, %p171
    %s173 = ssub.s32 %s13, %s20
    %p174 = scmp.eq.s32.totalorder %s173, 0
    %s176 = sadd.s32 %s175, 1
    %s177 = scalar_select %p174, %s175, %s176
    %p180 = pneg %p174
    %p181 = scmp.eq.s32.totalorder %s13, 1
    %p182 = por %p180, %p181
    %p183 = scmp.ne.s32.totalorder %s175, %s178
    %p184 = scmp.eq.s32.totalorder %s13, 0
    %p185 = por %p183, %p184
    %p186 = scmp.ne.s32.totalorder %s175, %s178
    %p187 = scmp.eq.s32.totalorder %s18, 1
    %p188 = por %p186, %p187
    %p189 = scmp.ne.s32.totalorder %s178, %s179
    %p190 = scmp.eq.s32.totalorder %s18, 0
    %p191 = por %p189, %p190
    %p192 = scmp.ne.s32.totalorder %s178, %s179
    %p193 = scmp.eq.s32.totalorder %s19, 1
    %p194 = por %p192, %p193
    %p196 = scmp.ne.s32.totalorder %s179, %s195
    %p197 = scmp.eq.s32.totalorder %s19, 0
    %p198 = por %p196, %p197
    %p199 = scmp.le.s32.totalorder 1, %s13
    %p200 = scmp.lt.s32.totalorder %s13, 3
    %p201 = pnand %p199, %p200
    %p202 = pneg %p201
    // Predicated region
    $region9: #{tpu_custom_call.1} parent=5 // pred_check
      _
    $region10: #{tpu_custom_call.1} parent=5 // pred_check_branch
      %204 = sbr.rel (%p201) target = $region12
    $region11: #{tpu_custom_call.1} parent=5 // pred_region
      %s205 = ssub.s32 %s13, 1
      // Predicated region
      $region13: #{tpu_custom_call.1} parent=11 // pred_check
        %p206 = pneg %p60
      $region14: #{tpu_custom_call.1} parent=11 // pred_check_branch
        %208 = sbr.rel (%p206) target = $region16
      $region15: #{tpu_custom_call.1} parent=11 // pred_region
        _
      $region16: #{tpu_custom_call.1} parent=11 // pred_fallthru
        _
      // Predicated region
      $region17: #{tpu_custom_call.1} parent=11 // pred_check
        %p209 = pneg %p81
      $region18: #{tpu_custom_call.1} parent=11 // pred_check_branch
        %211 = sbr.rel (%p209) target = $region20
      $region19: #{tpu_custom_call.1} parent=11 // pred_region
        _
      $region20: #{tpu_custom_call.1} parent=11 // pred_fallthru
        _
      // Predicated region
      $region21: #{tpu_custom_call.1} parent=11 // pred_check
        %p212 = pneg %p102
      $region22: #{tpu_custom_call.1} parent=11 // pred_check_branch
        %214 = sbr.rel (%p212) target = $region24
      $region23: #{tpu_custom_call.1} parent=11 // pred_region
        _
      $region24: #{tpu_custom_call.1} parent=11 // pred_fallthru
        _
      // Predicated region
      $region25: #{tpu_custom_call.1} parent=11 // pred_check
        %p215 = pneg %p123
      $region26: #{tpu_custom_call.1} parent=11 // pred_check_branch
        %217 = sbr.rel (%p215) target = $region28
      $region27: #{tpu_custom_call.1} parent=11 // pred_region
        _
      $region28: #{tpu_custom_call.1} parent=11 // pred_fallthru
        _
      // Predicated region
      $region29: #{tpu_custom_call.1} parent=11 // pred_check
        %p218 = pneg %p144
      $region30: #{tpu_custom_call.1} parent=11 // pred_check_branch
        %220 = sbr.rel (%p218) target = $region32
      $region31: #{tpu_custom_call.1} parent=11 // pred_region
        _
      $region32: #{tpu_custom_call.1} parent=11 // pred_fallthru
        _
      // Predicated region
      $region33: #{tpu_custom_call.1} parent=11 // pred_check
        %p221 = pneg %p165
      $region34: #{tpu_custom_call.1} parent=11 // pred_check_branch
        %223 = sbr.rel (%p221) target = $region36
      $region35: #{tpu_custom_call.1} parent=11 // pred_region
        _
      $region36: #{tpu_custom_call.1} parent=11 // pred_fallthru
        _
    $region12: #{tpu_custom_call.1} parent=5 // pred_fallthru
      _
    %p224 = scmp.lt.s32.totalorder %s13, 2
    // Predicated region
    $region37: #{tpu_custom_call.1} parent=5 // pred_check
      %p225 = pneg %p224
    $region38: #{tpu_custom_call.1} parent=5 // pred_check_branch
      %227 = sbr.rel (%p225) target = $region40
    $region39: #{tpu_custom_call.1} parent=5 // pred_region
      // Predicated region
      $region41: #{tpu_custom_call.1} parent=39 // pred_check
        %p228 = pneg %p33
      $region42: #{tpu_custom_call.1} parent=39 // pred_check_branch
        %230 = sbr.rel (%p228) target = $region44
      $region43: #{tpu_custom_call.1} parent=39 // pred_region
        %p231 = scmp.lt.s32.totalorder %s13, 1
        %s232 = scalar_select %p231, %s13, 1
        %s233 = smul.addr %s232, 32
        %s234 = smul.addr %s233, 8
        %s235 = scalar_lea.vmem %s0, %s234
      $region44: #{tpu_custom_call.1} parent=39 // pred_fallthru
        _
    $region40: #{tpu_custom_call.1} parent=5 // pred_fallthru
      _
    %p236 = scmp.le.s32.totalorder 1, %s13
    %p237 = scmp.lt.s32.totalorder %s13, 3
    %p238 = pnand %p236, %p237
    %p239 = pneg %p238
    // Predicated region
    $region45: #{tpu_custom_call.1} parent=5 // pred_check
      _
    $region46: #{tpu_custom_call.1} parent=5 // pred_check_branch
      %241 = sbr.rel (%p238) target = $region48
    $region47: #{tpu_custom_call.1} parent=5 // pred_region
      %s242 = ssub.s32 %s13, 1
      %p243 = scmp.lt.s32.totalorder %s18, 1
      %s244 = scalar_select %p243, %s18, 1
      %s245 = smul.addr %s244, 32
      %s246 = smul.addr %s245, 8
      %s247 = scalar_lea.vmem %s0, %s246
      %p248 = pneg %p39
      %p249 = pneg %p36
      %p250 = pneg %p60
      %p251 = pneg %p57
      %p252 = pneg %p81
      %p253 = pneg %p78
      %p254 = pneg %p102
      %p255 = pneg %p99
      %p256 = pneg %p123
      %p257 = pneg %p120
      %p258 = pneg %p144
      %p259 = pneg %p141
      %p260 = pneg %p165
      %p261 = pneg %p162
      %p262 = pneg %p191
      %p263 = pneg %p188
      %p264 = scmp.lt.s32.totalorder %s18, 1
      %s265 = scalar_select %p264, %s18, 1
      %s266 = smul.addr %s265, 32
      %s267 = smul.addr %s266, 8
      %s268 = scalar_lea.vmem %s7, %s267
      %p269 = scmp.lt.s32.totalorder %s18, 1
      %s270 = scalar_select %p269, %s18, 1
      %s271 = smul.addr %s270, 32
      %s272 = smul.addr %s271, 8
      %s273 = scalar_lea.vmem %s0, %s272
      %p274 = scmp.lt.s32.totalorder %s18, 1
      %s275 = scalar_select %p274, %s18, 1
      %s276 = smul.addr %s275, 32
      %s277 = smul.addr %s276, 8
      %s278 = scalar_lea.vmem %s7, %s277
      %vm280 = vcmask 191488
      %281 = vst.msk [vmem:[#allocation2] sm:$0xf] %vm280, 0
      %282 = vst.msk [vmem:[#allocation2 + $0x4] sm:$0xf] %vm280, 0
      %283 = vst.msk [vmem:[#allocation2 + $0x8] sm:$0xf] %vm280, 0
      %284 = vst.msk [vmem:[#allocation2 + $0xc] sm:$0xf] %vm280, 0
      %285 = vst.msk [vmem:[#allocation2 + $0x10] sm:$0xf] %vm280, 0
      %s286 = scalar_lea.vmem [#allocation2], 340
      %287 = vst.msk [vmem:[%s286] sm:$0xf] %vm280, 0
      %288 = vst.msk [vmem:[%s286 + $0x4] sm:$0xf] %vm280, 0
      %289 = vst.msk [vmem:[%s286 + $0x8] sm:$0xf] %vm280, 0
      %290 = vst.msk [vmem:[%s286 + $0xc] sm:$0xf] %vm280, 0
      %291 = vst.msk [vmem:[%s286 + $0x10] sm:$0xf] %vm280, 0
      %292 = vst.msk [vmem:[#allocation2] sm:$0xf] %vm280, 0
      %293 = vst.msk [vmem:[#allocation2 + $0x4] sm:$0xf] %vm280, 0
      %294 = vst.msk [vmem:[#allocation2 + $0x14] sm:$0xf] %vm280, 0
      %295 = vst.msk [vmem:[#allocation2 + $0x18] sm:$0xf] %vm280, 0
      %296 = vst.msk [vmem:[#allocation2 + $0x28] sm:$0xf] %vm280, 0
      %297 = vst.msk [vmem:[#allocation2 + $0x2c] sm:$0xf] %vm280, 0
      %298 = vst.msk [vmem:[#allocation2 + $0x3c] sm:$0xf] %vm280, 0
      %299 = vst.msk [vmem:[#allocation2 + $0x40] sm:$0xf] %vm280, 0
      %300 = vst.msk [vmem:[#allocation2 + $0x50] sm:$0xf] %vm280, 0
      %301 = vst.msk [vmem:[#allocation2 + $0x54] sm:$0xf] %vm280, 0
      %302 = vst.msk [vmem:[#allocation2 + $0x64] sm:$0xf] %vm280, 0
      %303 = vst.msk [vmem:[#allocation2 + $0x68] sm:$0xf] %vm280, 0
      %304 = vst.msk [vmem:[#allocation2 + $0x78] sm:$0xf] %vm280, 0
      %305 = vst.msk [vmem:[#allocation2 + $0x7c] sm:$0xf] %vm280, 0
      %306 = vst.msk [vmem:[#allocation2 + $0x8c] sm:$0xf] %vm280, 0
      %307 = vst.msk [vmem:[#allocation2 + $0x90] sm:$0xf] %vm280, 0
      %308 = vst.msk [vmem:[#allocation2 + $0xa0] sm:$0xf] %vm280, 0
      %309 = vst.msk [vmem:[#allocation2 + $0xa4] sm:$0xf] %vm280, 0
      %310 = vst.msk [vmem:[#allocation2 + $0xb4] sm:$0xf] %vm280, 0
      %311 = vst.msk [vmem:[#allocation2 + $0xb8] sm:$0xf] %vm280, 0
      %312 = vst.msk [vmem:[#allocation2 + $0xc8] sm:$0xf] %vm280, 0
      %313 = vst.msk [vmem:[#allocation2 + $0xcc] sm:$0xf] %vm280, 0
      %314 = vst.msk [vmem:[#allocation2 + $0xdc] sm:$0xf] %vm280, 0
      %315 = vst.msk [vmem:[#allocation2 + $0xe0] sm:$0xf] %vm280, 0
      %316 = vst.msk [vmem:[#allocation2 + $0xf0] sm:$0xf] %vm280, 0
      %317 = vst.msk [vmem:[#allocation2 + $0xf4] sm:$0xf] %vm280, 0
      %318 = vst.msk [vmem:[#allocation2 + $0x104] sm:$0xf] %vm280, 0
      %319 = vst.msk [vmem:[#allocation2 + $0x108] sm:$0xf] %vm280, 0
      %320 = vst.msk [vmem:[#allocation2 + $0x118] sm:$0xf] %vm280, 0
      %321 = vst.msk [vmem:[#allocation2 + $0x11c] sm:$0xf] %vm280, 0
      %322 = vst.msk [vmem:[#allocation2 + $0x12c] sm:$0xf] %vm280, 0
      %323 = vst.msk [vmem:[#allocation2 + $0x130] sm:$0xf] %vm280, 0
      %324 = vst.msk [vmem:[#allocation2 + $0x140] sm:$0xf] %vm280, 0
      %325 = vst.msk [vmem:[#allocation2 + $0x144] sm:$0xf] %vm280, 0
      %326 = vst.msk [vmem:[#allocation2 + $0x154] sm:$0xf] %vm280, 0
      %327 = vst.msk [vmem:[#allocation2 + $0x158] sm:$0xf] %vm280, 0
      %328 = vst.msk [vmem:[#allocation2 + $0x10] sm:$0xf] %vm280, 0
      %329 = vst.msk [vmem:[#allocation2 + $0x24] sm:$0xf] %vm280, 0
      %330 = vst.msk [vmem:[#allocation2 + $0x38] sm:$0xf] %vm280, 0
      %331 = vst.msk [vmem:[#allocation2 + $0x4c] sm:$0xf] %vm280, 0
      %332 = vst.msk [vmem:[#allocation2 + $0x60] sm:$0xf] %vm280, 0
      %333 = vst.msk [vmem:[#allocation2 + $0x74] sm:$0xf] %vm280, 0
      %334 = vst.msk [vmem:[#allocation2 + $0x88] sm:$0xf] %vm280, 0
      %335 = vst.msk [vmem:[#allocation2 + $0x9c] sm:$0xf] %vm280, 0
      %336 = vst.msk [vmem:[#allocation2 + $0xb0] sm:$0xf] %vm280, 0
      %337 = vst.msk [vmem:[#allocation2 + $0xc4] sm:$0xf] %vm280, 0
      %338 = vst.msk [vmem:[#allocation2 + $0xd8] sm:$0xf] %vm280, 0
      %339 = vst.msk [vmem:[#allocation2 + $0xec] sm:$0xf] %vm280, 0
      %340 = vst.msk [vmem:[#allocation2 + $0x100] sm:$0xf] %vm280, 0
      %341 = vst.msk [vmem:[#allocation2 + $0x114] sm:$0xf] %vm280, 0
      %342 = vst.msk [vmem:[#allocation2 + $0x128] sm:$0xf] %vm280, 0
      %343 = vst.msk [vmem:[#allocation2 + $0x13c] sm:$0xf] %vm280, 0
      %344 = vst.msk [vmem:[#allocation2 + $0x150] sm:$0xf] %vm280, 0
      %345 = vst.msk [vmem:[#allocation2 + $0x164] sm:$0xf] %vm280, 0
      %v346 = vld [vmem:[%s273] sm:$0xff]
      %v347 = vld [vmem:[%s273 + $0x8] sm:$0xff]
      %v348 = vld [vmem:[%s273 + $0x10] sm:$0xff]
      %v349 = vld [vmem:[%s273 + $0x18] sm:$0xff]
      %v350 = vld [vmem:[%s273 + $0x20] sm:$0xff]
      %v351 = vld [vmem:[%s273 + $0x28] sm:$0xff]
      %v352 = vld [vmem:[%s273 + $0x30] sm:$0xff]
      %v353 = vld [vmem:[%s273 + $0x38] sm:$0xff]
      %v354 = vld [vmem:[%s273 + $0x40] sm:$0xff]
      %v355 = vld [vmem:[%s273 + $0x48] sm:$0xff]
      %v356 = vld [vmem:[%s273 + $0x50] sm:$0xff]
      %v357 = vld [vmem:[%s273 + $0x58] sm:$0xff]
      %v358 = vld [vmem:[%s273 + $0x60] sm:$0xff]
      %v359 = vld [vmem:[%s273 + $0x68] sm:$0xff]
      %v360 = vld [vmem:[%s273 + $0x70] sm:$0xff]
      %v361 = vld [vmem:[%s273 + $0x78] sm:$0xff]
      %v362 = vld [vmem:[%s273 + $0x80] sm:$0xff]
      %v363 = vld [vmem:[%s273 + $0x88] sm:$0xff]
      %v364 = vld [vmem:[%s273 + $0x90] sm:$0xff]
      %v365 = vld [vmem:[%s273 + $0x98] sm:$0xff]
      %v366 = vld [vmem:[%s273 + $0xa0] sm:$0xff]
      %v367 = vld [vmem:[%s273 + $0xa8] sm:$0xff]
      %v368 = vld [vmem:[%s273 + $0xb0] sm:$0xff]
      %v369 = vld [vmem:[%s273 + $0xb8] sm:$0xff]
      %v370 = vld [vmem:[%s273 + $0xc0] sm:$0xff]
      %v371 = vld [vmem:[%s273 + $0xc8] sm:$0xff]
      %v372 = vld [vmem:[%s273 + $0xd0] sm:$0xff]
      %v373 = vld [vmem:[%s273 + $0xd8] sm:$0xff]
      %v374 = vld [vmem:[%s273 + $0xe0] sm:$0xff]
      %v375 = vld [vmem:[%s273 + $0xe8] sm:$0xff]
      %v376 = vld [vmem:[%s273 + $0xf0] sm:$0xff]
      %v377 = vld [vmem:[%s273 + $0xf8] sm:$0xff]
      %v378 = vpack.c.bf16 %v347, %v346
      %v379 = vpack.c.bf16 %v349, %v348
      %v380 = vpack.c.bf16 %v351, %v350
      %v381 = vpack.c.bf16 %v353, %v352
      %v382 = vpack.c.bf16 %v355, %v354
      %v383 = vpack.c.bf16 %v357, %v356
      %v384 = vpack.c.bf16 %v359, %v358
      %v385 = vpack.c.bf16 %v361, %v360
      %v386 = vpack.c.bf16 %v363, %v362
      %v387 = vpack.c.bf16 %v365, %v364
      %v388 = vpack.c.bf16 %v367, %v366
      %v389 = vpack.c.bf16 %v369, %v368
      %v390 = vpack.c.bf16 %v371, %v370
      %v391 = vpack.c.bf16 %v373, %v372
      %v392 = vpack.c.bf16 %v375, %v374
      %v393 = vpack.c.bf16 %v377, %v376
      %v394 = vld [vmem:[%s1] sm:$0x3]
      %v395 = vld [vmem:[%s2] sm:$0x1]
      %v397 = vlaneseq
      %v398 = vshrl.u32 %v397, 7
      %v399 = vsub.s32 0, %v398
      %v400 = vrot.slane %v395, %v399
      %vm402 = vcmask 31744
      %v404 = vsel %vm402, %v378, 0
      %v407 = vsel %vm402, %v379, 0
      %v410 = vsel %vm402, %v380, 0
      %v413 = vsel %vm402, %v381, 0
      %v416 = vsel %vm402, %v382, 0
      %v419 = vsel %vm402, %v383, 0
      %v422 = vsel %vm402, %v384, 0
      %v425 = vsel %vm402, %v385, 0
      %v428 = vsel %vm402, %v386, 0
      %v431 = vsel %vm402, %v387, 0
      %v434 = vsel %vm402, %v388, 0
      %v437 = vsel %vm402, %v389, 0
      %v440 = vsel %vm402, %v390, 0
      %v443 = vsel %vm402, %v391, 0
      %v446 = vsel %vm402, %v392, 0
      %v449 = vsel %vm402, %v393, 0
      %vm451 = vcmask 1041408
      %v453 = vsel %vm451, %v394, 0
      %455 = vmatprep.subr.bf16.mxu0 0
      %456 = vmatpush1.bf16.msra.mxu0 %v453
      %457 = vmatprep.subr.bf16.mxu0 0
      %458 = vmatpush1.bf16.msra.mxu0 0
      %459 = vmatprep.subr.bf16.mxu0 0
      %460 = vmatpush1.bf16.msra.mxu0 0
      %461 = vmatprep.subr.bf16.mxu0 0
      %462 = vmatpush1.bf16.msra.mxu0 0
      %463 = vmatprep.subr.bf16.mxu0 0
      %464 = vmatpush1.bf16.msra.mxu0 0
      %465 = vmatprep.subr.bf16.mxu0 0
      %466 = vmatpush1.bf16.msra.mxu0 0
      %467 = vmatprep.subr.bf16.mxu0 0
      %468 = vmatpush1.bf16.msra.mxu0 0
      %469 = vmatprep.subr.bf16.mxu0 0
      %470 = vmatpush1.bf16.msra.mxu0 0
      %471 = vmatprep.subr.bf16.mxu0 0
      %472 = vmatpush1.bf16.msra.mxu0 0
      %473 = vmatprep.subr.bf16.mxu0 0
      %474 = vmatpush1.bf16.msra.mxu0 0
      %475 = vmatprep.subr.bf16.mxu0 0
      %476 = vmatpush1.bf16.msra.mxu0 0
      %477 = vmatprep.subr.bf16.mxu0 0
      %478 = vmatpush1.bf16.msra.mxu0 0
      %479 = vmatprep.subr.bf16.mxu0 0
      %480 = vmatpush1.bf16.msra.mxu0 0
      %481 = vmatprep.subr.bf16.mxu0 0
      %482 = vmatpush1.bf16.msra.mxu0 0
      %483 = vmatprep.subr.bf16.mxu0 0
      %484 = vmatpush1.bf16.msra.mxu0 0
      %485 = vmatprep.subr.bf16.mxu0 0
      %486 = vmatpush1.bf16.msra.mxu0 0
      %487 = vmatprep.mubr.bf16.mxu0 0
      %488 = vmatmul.mubr.bf16.gmra.mrb[0].mxu0 %v404
      %v489 = vpop.f32.mrb[0].mxu0
      %v490 = vadd.f32 %v400, %v489
      %v491 = vpop.f32.mrb[0].mxu0
      %v492 = vpop.f32.mrb[0].mxu0
      %v493 = vadd.f32 %v400, %v492
      %v494 = vpop.f32.mrb[0].mxu0
      %495 = vmatprep.mubr.bf16.mxu0 0
      %496 = vmatmul.mubr.bf16.gmra.mrb[0].mxu0 %v407
      %v497 = vpop.f32.mrb[0].mxu0
      %v498 = vadd.f32 %v400, %v497
      %v499 = vpop.f32.mrb[0].mxu0
      %v500 = vpop.f32.mrb[0].mxu0
      %v501 = vadd.f32 %v400, %v500
      %v502 = vpop.f32.mrb[0].mxu0
      %503 = vmatprep.mubr.bf16.mxu0 0
      %504 = vmatmul.mubr.bf16.gmra.mrb[0].mxu0 %v410
      %v505 = vpop.f32.mrb[0].mxu0
      %v506 = vadd.f32 %v400, %v505
      %v507 = vpop.f32.mrb[0].mxu0
      %v508 = vpop.f32.mrb[0].mxu0
      %v509 = vadd.f32 %v400, %v508
      %v510 = vpop.f32.mrb[0].mxu0
      %511 = vmatprep.mubr.bf16.mxu0 0
      %512 = vmatmul.mubr.bf16.gmra.mrb[0].mxu0 %v413
      %v513 = vpop.f32.mrb[0].mxu0
      %v514 = vadd.f32 %v400, %v513
      %v515 = vpop.f32.mrb[0].mxu0
      %v516 = vpop.f32.mrb[0].mxu0
      %v517 = vadd.f32 %v400, %v516
      %v518 = vpop.f32.mrb[0].mxu0
      %519 = vmatprep.mubr.bf16.mxu0 0
      %520 = vmatmul.mubr.bf16.gmra.mrb[0].mxu0 %v416
      %v521 = vpop.f32.mrb[0].mxu0
      %v522 = vadd.f32 %v400, %v521
      %v523 = vpop.f32.mrb[0].mxu0
      %v524 = vpop.f32.mrb[0].mxu0
      %v525 = vadd.f32 %v400, %v524
      %v526 = vpop.f32.mrb[0].mxu0
      %527 = vmatprep.mubr.bf16.mxu0 0
      %528 = vmatmul.mubr.bf16.gmra.mrb[0].mxu0 %v419
      %v529 = vpop.f32.mrb[0].mxu0
      %v530 = vadd.f32 %v400, %v529
      %v531 = vpop.f32.mrb[0].mxu0
      %v532 = vpop.f32.mrb[0].mxu0
      %v533 = vadd.f32 %v400, %v532
      %v534 = vpop.f32.mrb[0].mxu0
      %535 = vmatprep.mubr.bf16.mxu0 0
      %536 = vmatmul.mubr.bf16.gmra.mrb[0].mxu0 %v422
      %v537 = vpop.f32.mrb[0].mxu0
      %v538 = vadd.f32 %v400, %v537
      %v539 = vpop.f32.mrb[0].mxu0
      %v540 = vpop.f32.mrb[0].mxu0
      %v541 = vadd.f32 %v400, %v540
      %v542 = vpop.f32.mrb[0].mxu0
      %543 = vmatprep.mubr.bf16.mxu0 0
      %544 = vmatmul.mubr.bf16.gmra.mrb[0].mxu0 %v425
      %v545 = vpop.f32.mrb[0].mxu0
      %v546 = vadd.f32 %v400, %v545
      %v547 = vpop.f32.mrb[0].mxu0
      %v548 = vpop.f32.mrb[0].mxu0
      %v549 = vadd.f32 %v400, %v548
      %v550 = vpop.f32.mrb[0].mxu0
      %551 = vmatprep.mubr.bf16.mxu0 0
      %552 = vmatmul.mubr.bf16.gmra.mrb[0].mxu0 %v428
      %v553 = vpop.f32.mrb[0].mxu0
      %v554 = vadd.f32 %v400, %v553
      %v555 = vpop.f32.mrb[0].mxu0
      %v556 = vpop.f32.mrb[0].mxu0
      %v557 = vadd.f32 %v400, %v556
      %v558 = vpop.f32.mrb[0].mxu0
      %559 = vmatprep.mubr.bf16.mxu0 0
      %560 = vmatmul.mubr.bf16.gmra.mrb[0].mxu0 %v431
      %v561 = vpop.f32.mrb[0].mxu0
      %v562 = vadd.f32 %v400, %v561
      %v563 = vpop.f32.mrb[0].mxu0
      %v564 = vpop.f32.mrb[0].mxu0
      %v565 = vadd.f32 %v400, %v564
      %v566 = vpop.f32.mrb[0].mxu0
      %567 = vmatprep.mubr.bf16.mxu0 0
      %568 = vmatmul.mubr.bf16.gmra.mrb[0].mxu0 %v434
      %v569 = vpop.f32.mrb[0].mxu0
      %v570 = vadd.f32 %v400, %v569
      %v571 = vpop.f32.mrb[0].mxu0
      %v572 = vpop.f32.mrb[0].mxu0
      %v573 = vadd.f32 %v400, %v572
      %v574 = vpop.f32.mrb[0].mxu0
      %575 = vmatprep.mubr.bf16.mxu0 0
      %576 = vmatmul.mubr.bf16.gmra.mrb[0].mxu0 %v437
      %v577 = vpop.f32.mrb[0].mxu0
      %v578 = vadd.f32 %v400, %v577
      %v579 = vpop.f32.mrb[0].mxu0
      %v580 = vpop.f32.mrb[0].mxu0
      %v581 = vadd.f32 %v400, %v580
      %v582 = vpop.f32.mrb[0].mxu0
      %583 = vmatprep.mubr.bf16.mxu0 0
      %584 = vmatmul.mubr.bf16.gmra.mrb[0].mxu0 %v440
      %v585 = vpop.f32.mrb[0].mxu0
      %v586 = vadd.f32 %v400, %v585
      %v587 = vpop.f32.mrb[0].mxu0
      %v588 = vpop.f32.mrb[0].mxu0
      %v589 = vadd.f32 %v400, %v588
      %v590 = vpop.f32.mrb[0].mxu0
      %591 = vmatprep.mubr.bf16.mxu0 0
      %592 = vmatmul.mubr.bf16.gmra.mrb[0].mxu0 %v443
      %v593 = vpop.f32.mrb[0].mxu0
      %v594 = vadd.f32 %v400, %v593
      %v595 = vpop.f32.mrb[0].mxu0
      %v596 = vpop.f32.mrb[0].mxu0
      %v597 = vadd.f32 %v400, %v596
      %v598 = vpop.f32.mrb[0].mxu0
      %599 = vmatprep.mubr.bf16.mxu0 0
      %600 = vmatmul.mubr.bf16.gmra.mrb[0].mxu0 %v446
      %v601 = vpop.f32.mrb[0].mxu0
      %v602 = vadd.f32 %v400, %v601
      %v603 = vpop.f32.mrb[0].mxu0
      %v604 = vpop.f32.mrb[0].mxu0
      %v605 = vadd.f32 %v400, %v604
      %v606 = vpop.f32.mrb[0].mxu0
      %607 = vmatprep.mubr.bf16.mxu0 0
      %608 = vmatmul.mubr.bf16.gmra.mrb[0].mxu0 %v449
      %v609 = vpop.f32.mrb[0].mxu0
      %v610 = vadd.f32 %v400, %v609
      %v611 = vpop.f32.mrb[0].mxu0
      %v612 = vpop.f32.mrb[0].mxu0
      %v613 = vadd.f32 %v400, %v612
      %v614 = vpop.f32.mrb[0].mxu0
      %615 = vdwg.mxu0
      %v616 = vmax.f32 %v490, 0.0
      %v617 = vmax.f32 %v493, 0.0
      %v618 = vmax.f32 %v498, 0.0
      %v619 = vmax.f32 %v501, 0.0
      %v620 = vmax.f32 %v506, 0.0
      %v621 = vmax.f32 %v509, 0.0
      %v622 = vmax.f32 %v514, 0.0
      %v623 = vmax.f32 %v517, 0.0
      %v624 = vmax.f32 %v522, 0.0
      %v625 = vmax.f32 %v525, 0.0
      %v626 = vmax.f32 %v530, 0.0
      %v627 = vmax.f32 %v533, 0.0
      %v628 = vmax.f32 %v538, 0.0
      %v629 = vmax.f32 %v541, 0.0
      %v630 = vmax.f32 %v546, 0.0
      %v631 = vmax.f32 %v549, 0.0
      %v632 = vmax.f32 %v554, 0.0
      %v633 = vmax.f32 %v557, 0.0
      %v634 = vmax.f32 %v562, 0.0
      %v635 = vmax.f32 %v565, 0.0
      %v636 = vmax.f32 %v570, 0.0
      %v637 = vmax.f32 %v573, 0.0
      %v638 = vmax.f32 %v578, 0.0
      %v639 = vmax.f32 %v581, 0.0
      %v640 = vmax.f32 %v586, 0.0
      %v641 = vmax.f32 %v589, 0.0
      %v642 = vmax.f32 %v594, 0.0
      %v643 = vmax.f32 %v597, 0.0
      %v644 = vmax.f32 %v602, 0.0
      %v645 = vmax.f32 %v605, 0.0
      %v646 = vmax.f32 %v610, 0.0
      %v647 = vmax.f32 %v613, 0.0
      %v648 = vmin.f32 %v616, 6.0
      %v649 = vmin.f32 %v617, 6.0
      %v650 = vmin.f32 %v618, 6.0
      %v651 = vmin.f32 %v619, 6.0
      %v652 = vmin.f32 %v620, 6.0
      %v653 = vmin.f32 %v621, 6.0
      %v654 = vmin.f32 %v622, 6.0
      %v655 = vmin.f32 %v623, 6.0
      %v656 = vmin.f32 %v624, 6.0
      %v657 = vmin.f32 %v625, 6.0
      %v658 = vmin.f32 %v626, 6.0
      %v659 = vmin.f32 %v627, 6.0
      %v660 = vmin.f32 %v628, 6.0
      %v661 = vmin.f32 %v629, 6.0
      %v662 = vmin.f32 %v630, 6.0
      %v663 = vmin.f32 %v631, 6.0
      %v664 = vmin.f32 %v632, 6.0
      %v665 = vmin.f32 %v633, 6.0
      %v666 = vmin.f32 %v634, 6.0
      %v667 = vmin.f32 %v635, 6.0
      %v668 = vmin.f32 %v636, 6.0
      %v669 = vmin.f32 %v637, 6.0
      %v670 = vmin.f32 %v638, 6.0
      %v671 = vmin.f32 %v639, 6.0
      %v672 = vmin.f32 %v640, 6.0
      %v673 = vmin.f32 %v641, 6.0
      %v674 = vmin.f32 %v642, 6.0
      %v675 = vmin.f32 %v643, 6.0
      %v676 = vmin.f32 %v644, 6.0
      %v677 = vmin.f32 %v645, 6.0
      %v678 = vmin.f32 %v646, 6.0
      %v679 = vmin.f32 %v647, 6.0
      %v680 = vpack.c.bf16 %v649, %v648
      %v681 = vpack.c.bf16 %v651, %v650
      %v682 = vpack.c.bf16 %v653, %v652
      %v683 = vpack.c.bf16 %v655, %v654
      %v684 = vpack.c.bf16 %v657, %v656
      %v685 = vpack.c.bf16 %v659, %v658
      %v686 = vpack.c.bf16 %v661, %v660
      %v687 = vpack.c.bf16 %v663, %v662
      %v688 = vpack.c.bf16 %v665, %v664
      %v689 = vpack.c.bf16 %v667, %v666
      %v690 = vpack.c.bf16 %v669, %v668
      %v691 = vpack.c.bf16 %v671, %v670
      %v692 = vpack.c.bf16 %v673, %v672
      %v693 = vpack.c.bf16 %v675, %v674
      %v694 = vpack.c.bf16 %v677, %v676
      %v695 = vpack.c.bf16 %v679, %v678
      %v712 = vunpack.c.l.b16 %v680
      %v713 = vunpack.c.h.b16 %v680
      %v714 = vunpack.c.l.b16 %v681
      %v715 = vunpack.c.h.b16 %v681
      %v716 = vunpack.c.l.b16 %v682
      %v717 = vunpack.c.h.b16 %v682
      %v718 = vunpack.c.l.b16 %v683
      %v719 = vunpack.c.h.b16 %v683
      %v720 = vunpack.c.l.b16 %v684
      %v721 = vunpack.c.h.b16 %v684
      %v722 = vunpack.c.l.b16 %v685
      %v723 = vunpack.c.h.b16 %v685
      %v724 = vunpack.c.l.b16 %v686
      %v725 = vunpack.c.h.b16 %v686
      %v726 = vunpack.c.l.b16 %v687
      %v727 = vunpack.c.h.b16 %v687
      %v728 = vunpack.c.l.b16 %v688
      %v729 = vunpack.c.h.b16 %v688
      %v730 = vunpack.c.l.b16 %v689
      %v731 = vunpack.c.h.b16 %v689
      %v732 = vunpack.c.l.b16 %v690
      %v733 = vunpack.c.h.b16 %v690
      %v734 = vunpack.c.l.b16 %v691
      %v735 = vunpack.c.h.b16 %v691
      %v736 = vunpack.c.l.b16 %v692
      %v737 = vunpack.c.h.b16 %v692
      %v738 = vunpack.c.l.b16 %v693
      %v739 = vunpack.c.h.b16 %v693
      %v740 = vunpack.c.l.b16 %v694
      %v741 = vunpack.c.h.b16 %v694
      %v742 = vunpack.c.l.b16 %v695
      %v743 = vunpack.c.h.b16 %v695
      %v744 = vpack.c.b16 %v712, %v712
      %v745 = vpack.c.b16 %v713, %v713
      %v746 = vpack.c.b16 %v714, %v714
      %v747 = vpack.c.b16 %v715, %v715
      %v748 = vpack.c.b16 %v716, %v716
      %v749 = vpack.c.b16 %v717, %v717
      %v750 = vpack.c.b16 %v718, %v718
      %v751 = vpack.c.b16 %v719, %v719
      %v752 = vpack.c.b16 %v720, %v720
      %v753 = vpack.c.b16 %v721, %v721
      %v754 = vpack.c.b16 %v722, %v722
      %v755 = vpack.c.b16 %v723, %v723
      %v756 = vpack.c.b16 %v724, %v724
      %v757 = vpack.c.b16 %v725, %v725
      %v758 = vpack.c.b16 %v726, %v726
      %v759 = vpack.c.b16 %v727, %v727
      %v760 = vpack.c.b16 %v728, %v728
      %v761 = vpack.c.b16 %v729, %v729
      %v762 = vpack.c.b16 %v730, %v730
      %v763 = vpack.c.b16 %v731, %v731
      %v764 = vpack.c.b16 %v732, %v732
      %v765 = vpack.c.b16 %v733, %v733
      %v766 = vpack.c.b16 %v734, %v734
      %v767 = vpack.c.b16 %v735, %v735
      %v768 = vpack.c.b16 %v736, %v736
      %v769 = vpack.c.b16 %v737, %v737
      %v770 = vpack.c.b16 %v738, %v738
      %v771 = vpack.c.b16 %v739, %v739
      %v772 = vpack.c.b16 %v740, %v740
      %v773 = vpack.c.b16 %v741, %v741
      %v774 = vpack.c.b16 %v742, %v742
      %v775 = vpack.c.b16 %v743, %v743
      %s808 = scalar_lea.vmem [#allocation2], 20
      %809 = vst.msk [vmem:[%s808 + $0x8] sm:$0xf] %vm280, %v744
      %810 = vst.msk [vmem:[%s808 + $0xc] sm:$0xf] %vm280, %v745
      %811 = vst.msk [vmem:[%s808 + $0x1c] sm:$0xf] %vm280, %v746
      %812 = vst.msk [vmem:[%s808 + $0x20] sm:$0xf] %vm280, %v747
      %813 = vst.msk [vmem:[%s808 + $0x30] sm:$0xf] %vm280, %v748
      %814 = vst.msk [vmem:[%s808 + $0x34] sm:$0xf] %vm280, %v749
      %815 = vst.msk [vmem:[%s808 + $0x44] sm:$0xf] %vm280, %v750
      %816 = vst.msk [vmem:[%s808 + $0x48] sm:$0xf] %vm280, %v751
      %817 = vst.msk [vmem:[%s808 + $0x58] sm:$0xf] %vm280, %v752
      %818 = vst.msk [vmem:[%s808 + $0x5c] sm:$0xf] %vm280, %v753
      %819 = vst.msk [vmem:[%s808 + $0x6c] sm:$0xf] %vm280, %v754
      %820 = vst.msk [vmem:[%s808 + $0x70] sm:$0xf] %vm280, %v755
      %821 = vst.msk [vmem:[%s808 + $0x80] sm:$0xf] %vm280, %v756
      %822 = vst.msk [vmem:[%s808 + $0x84] sm:$0xf] %vm280, %v757
      %823 = vst.msk [vmem:[%s808 + $0x94] sm:$0xf] %vm280, %v758
      %824 = vst.msk [vmem:[%s808 + $0x98] sm:$0xf] %vm280, %v759
      %825 = vst.msk [vmem:[%s808 + $0xa8] sm:$0xf] %vm280, %v760
      %826 = vst.msk [vmem:[%s808 + $0xac] sm:$0xf] %vm280, %v761
      %827 = vst.msk [vmem:[%s808 + $0xbc] sm:$0xf] %vm280, %v762
      %828 = vst.msk [vmem:[%s808 + $0xc0] sm:$0xf] %vm280, %v763
      %829 = vst.msk [vmem:[%s808 + $0xd0] sm:$0xf] %vm280, %v764
      %830 = vst.msk [vmem:[%s808 + $0xd4] sm:$0xf] %vm280, %v765
      %831 = vst.msk [vmem:[%s808 + $0xe4] sm:$0xf] %vm280, %v766
      %832 = vst.msk [vmem:[%s808 + $0xe8] sm:$0xf] %vm280, %v767
      %833 = vst.msk [vmem:[%s808 + $0xf8] sm:$0xf] %vm280, %v768
      %834 = vst.msk [vmem:[%s808 + $0xfc] sm:$0xf] %vm280, %v769
      %835 = vst.msk [vmem:[%s808 + $0x10c] sm:$0xf] %vm280, %v770
      %836 = vst.msk [vmem:[%s808 + $0x110] sm:$0xf] %vm280, %v771
      %837 = vst.msk [vmem:[%s808 + $0x120] sm:$0xf] %vm280, %v772
      %838 = vst.msk [vmem:[%s808 + $0x124] sm:$0xf] %vm280, %v773
      %839 = vst.msk [vmem:[%s808 + $0x134] sm:$0xf] %vm280, %v774
      %840 = vst.msk [vmem:[%s808 + $0x138] sm:$0xf] %vm280, %v775
      %v841 = vld [vmem:[%s3] sm:$0x1]
      %v842 = vld [vmem:[%s3 + $0x1] sm:$0x1]
      %v843 = vld [vmem:[%s3 + $0x2] sm:$0x1]
      %v844 = vld [vmem:[%s3 + $0x3] sm:$0x1]
      %v845 = vld [vmem:[%s3 + $0x4] sm:$0x1]
      %v846 = vld [vmem:[%s3 + $0x5] sm:$0x1]
      %v847 = vld [vmem:[%s3 + $0x6] sm:$0x1]
      %v848 = vld [vmem:[%s3 + $0x7] sm:$0x1]
      %v849 = vld [vmem:[%s3 + $0x8] sm:$0x1]
      %v850 = vld [vmem:[%s4] sm:$0x1]
      %v851 = vld [vmem:[%s5] sm:$0xf]
      %v852 = vld [vmem:[%s5 + $0x4] sm:$0xf]
      %v853 = vld [vmem:[%s5 + $0x8] sm:$0xf]
      %v854 = vld [vmem:[%s6] sm:$0x1]
      %s855 = smul.u32 0, 5
      %s856 = smul.addr %s855, 4
      %s857 = scalar_lea.vmem [#allocation2], %s856
      %v858 = vld [vmem:[%s857 + $0x4] sm:$0x8]
      %v859 = vld [vmem:[%s857 + $0x8] sm:$0xf]
      %v860 = vld [vmem:[%s857 + $0xc] sm:$0xf]
      %v861 = vld [vmem:[%s857 + $0x18] sm:$0x8]
      %v862 = vld [vmem:[%s857 + $0x1c] sm:$0xf]
      %v863 = vld [vmem:[%s857 + $0x20] sm:$0xf]
      %v864 = vld [vmem:[%s857 + $0x2c] sm:$0x8]
      %v865 = vld [vmem:[%s857 + $0x30] sm:$0xf]
      %v866 = vld [vmem:[%s857 + $0x34] sm:$0xf]
      %v867 = vld [vmem:[%s857 + $0x40] sm:$0x8]
      %v868 = vld [vmem:[%s857 + $0x44] sm:$0xf]
      %v869 = vld [vmem:[%s857 + $0x48] sm:$0xf]
      %v870 = vld [vmem:[%s857 + $0x54] sm:$0x8]
      %v871 = vld [vmem:[%s857 + $0x58] sm:$0xf]
      %v872 = vld [vmem:[%s857 + $0x5c] sm:$0xf]
      %v873 = vld [vmem:[%s857 + $0x68] sm:$0x8]
      %v874 = vld [vmem:[%s857 + $0x6c] sm:$0xf]
      %v875 = vld [vmem:[%s857 + $0x70] sm:$0xf]
      %v876 = vld [vmem:[%s857 + $0x7c] sm:$0x8]
      %v877 = vld [vmem:[%s857 + $0x80] sm:$0xf]
      %v878 = vld [vmem:[%s857 + $0x84] sm:$0xf]
      %v879 = vld [vmem:[%s857 + $0x90] sm:$0x8]
      %v880 = vld [vmem:[%s857 + $0x94] sm:$0xf]
      %v881 = vld [vmem:[%s857 + $0x98] sm:$0xf]
      %v882 = vunpack.c.l.bf16 %v858
      %v883 = vunpack.c.l.bf16 %v859
      %v884 = vunpack.c.l.bf16 %v860
      %v885 = vunpack.c.l.bf16 %v861
      %v886 = vunpack.c.l.bf16 %v862
      %v887 = vunpack.c.l.bf16 %v863
      %v888 = vunpack.c.l.bf16 %v864
      %v889 = vunpack.c.l.bf16 %v865
      %v890 = vunpack.c.l.bf16 %v866
      %v891 = vunpack.c.l.bf16 %v867
      %v892 = vunpack.c.l.bf16 %v868
      %v893 = vunpack.c.l.bf16 %v869
      %v894 = vunpack.c.l.bf16 %v870
      %v895 = vunpack.c.l.bf16 %v871
      %v896 = vunpack.c.l.bf16 %v872
      %v897 = vunpack.c.l.bf16 %v873
      %v898 = vunpack.c.l.bf16 %v874
      %v899 = vunpack.c.l.bf16 %v875
      %v900 = vunpack.c.l.bf16 %v876
      %v901 = vunpack.c.l.bf16 %v877
      %v902 = vunpack.c.l.bf16 %v878
      %v903 = vunpack.c.l.bf16 %v879
      %v904 = vunpack.c.l.bf16 %v880
      %v905 = vunpack.c.l.bf16 %v881
      %v906 = vlaneseq
      %v907 = vshrl.u32 %v906, 7
      %v908 = vsub.s32 0, %v907
      %v909 = vrot.slane %v841, %v908
      %v910 = vmul.f32 %v882, %v909
      %v911 = vmul.f32 %v883, %v909
      %v912 = vmul.f32 %v884, %v909
      %v913 = vmul.f32 %v885, %v909
      %v914 = vmul.f32 %v886, %v909
      %v915 = vmul.f32 %v887, %v909
      %v916 = vmul.f32 %v888, %v909
      %v917 = vmul.f32 %v889, %v909
      %v918 = vmul.f32 %v890, %v909
      %v919 = vmul.f32 %v891, %v909
      %v920 = vmul.f32 %v892, %v909
      %v921 = vmul.f32 %v893, %v909
      %v922 = vmul.f32 %v894, %v909
      %v923 = vmul.f32 %v895, %v909
      %v924 = vmul.f32 %v896, %v909
      %v925 = vmul.f32 %v897, %v909
      %v926 = vmul.f32 %v898, %v909
      %v927 = vmul.f32 %v899, %v909
      %v928 = vmul.f32 %v900, %v909
      %v929 = vmul.f32 %v901, %v909
      %v930 = vmul.f32 %v902, %v909
      %v931 = vmul.f32 %v903, %v909
      %v932 = vmul.f32 %v904, %v909
      %v933 = vmul.f32 %v905, %v909
      %v934 = vlaneseq
      %v935 = vshrl.u32 %v934, 7
      %v936 = vsub.s32 0, %v935
      %v937 = vrot.slane %v842, %v936
      %v938 = vmul.f32 %v883, %v937
      %v939 = vmul.f32 %v884, %v937
      %v940 = vmul.f32 %v886, %v937
      %v941 = vmul.f32 %v887, %v937
      %v942 = vmul.f32 %v889, %v937
      %v943 = vmul.f32 %v890, %v937
      %v944 = vmul.f32 %v892, %v937
      %v945 = vmul.f32 %v893, %v937
      %v946 = vmul.f32 %v895, %v937
      %v947 = vmul.f32 %v896, %v937
      %v948 = vmul.f32 %v898, %v937
      %v949 = vmul.f32 %v899, %v937
      %v950 = vmul.f32 %v901, %v937
      %v951 = vmul.f32 %v902, %v937
      %v952 = vmul.f32 %v904, %v937
      %v953 = vmul.f32 %v905, %v937
      %vm970 = vcmask 1046528
      %v971 = vrot.slane %v938, 1
      %v972 = vrot.slane %v939, 1
      %v973 = vsel %vm970, %v971, %v972
      %v974 = vrot.slane %v940, 1
      %v975 = vrot.slane %v941, 1
      %v976 = vsel %vm970, %v974, %v975
      %v977 = vrot.slane %v942, 1
      %v978 = vrot.slane %v943, 1
      %v979 = vsel %vm970, %v977, %v978
      %v980 = vrot.slane %v944, 1
      %v981 = vrot.slane %v945, 1
      %v982 = vsel %vm970, %v980, %v981
      %v983 = vrot.slane %v946, 1
      %v984 = vrot.slane %v947, 1
      %v985 = vsel %vm970, %v983, %v984
      %v986 = vrot.slane %v948, 1
      %v987 = vrot.slane %v949, 1
      %v988 = vsel %vm970, %v986, %v987
      %v989 = vrot.slane %v950, 1
      %v990 = vrot.slane %v951, 1
      %v991 = vsel %vm970, %v989, %v990
      %v992 = vrot.slane %v952, 1
      %v993 = vrot.slane %v953, 1
      %v994 = vsel %vm970, %v992, %v993
      %v1019 = vadd.f32 %v910, %v971
      %v1020 = vadd.f32 %v911, %v973
      %v1021 = vadd.f32 %v912, %v972
      %v1022 = vadd.f32 %v913, %v974
      %v1023 = vadd.f32 %v914, %v976
      %v1024 = vadd.f32 %v915, %v975
      %v1025 = vadd.f32 %v916, %v977
      %v1026 = vadd.f32 %v917, %v979
      %v1027 = vadd.f32 %v918, %v978
      %v1028 = vadd.f32 %v919, %v980
      %v1029 = vadd.f32 %v920, %v982
      %v1030 = vadd.f32 %v921, %v981
      %v1031 = vadd.f32 %v922, %v983
      %v1032 = vadd.f32 %v923, %v985
      %v1033 = vadd.f32 %v924, %v984
      %v1034 = vadd.f32 %v925, %v986
      %v1035 = vadd.f32 %v926, %v988
      %v1036 = vadd.f32 %v927, %v987
      %v1037 = vadd.f32 %v928, %v989
      %v1038 = vadd.f32 %v929, %v991
      %v1039 = vadd.f32 %v930, %v990
      %v1040 = vadd.f32 %v931, %v992
      %v1041 = vadd.f32 %v932, %v994
      %v1042 = vadd.f32 %v933, %v993
      %v1043 = vld [vmem:[%s857 + $0x10] sm:$0x1]
      %v1044 = vld [vmem:[%s857 + $0x24] sm:$0x1]
      %v1045 = vld [vmem:[%s857 + $0x38] sm:$0x1]
      %v1046 = vld [vmem:[%s857 + $0x4c] sm:$0x1]
      %v1047 = vld [vmem:[%s857 + $0x60] sm:$0x1]
      %v1048 = vld [vmem:[%s857 + $0x74] sm:$0x1]
      %v1049 = vld [vmem:[%s857 + $0x88] sm:$0x1]
      %v1050 = vld [vmem:[%s857 + $0x9c] sm:$0x1]
      %v1051 = vunpack.c.l.bf16 %v1043
      %v1052 = vunpack.c.l.bf16 %v1044
      %v1053 = vunpack.c.l.bf16 %v1045
      %v1054 = vunpack.c.l.bf16 %v1046
      %v1055 = vunpack.c.l.bf16 %v1047
      %v1056 = vunpack.c.l.bf16 %v1048
      %v1057 = vunpack.c.l.bf16 %v1049
      %v1058 = vunpack.c.l.bf16 %v1050
      %v1059 = vlaneseq
      %v1060 = vshrl.u32 %v1059, 7
      %v1061 = vsub.s32 0, %v1060
      %v1062 = vrot.slane %v843, %v1061
      %v1063 = vmul.f32 %v883, %v1062
      %v1064 = vmul.f32 %v884, %v1062
      %v1065 = vmul.f32 %v1051, %v1062
      %v1066 = vmul.f32 %v886, %v1062
      %v1067 = vmul.f32 %v887, %v1062
      %v1068 = vmul.f32 %v1052, %v1062
      %v1069 = vmul.f32 %v889, %v1062
      %v1070 = vmul.f32 %v890, %v1062
      %v1071 = vmul.f32 %v1053, %v1062
      %v1072 = vmul.f32 %v892, %v1062
      %v1073 = vmul.f32 %v893, %v1062
      %v1074 = vmul.f32 %v1054, %v1062
      %v1075 = vmul.f32 %v895, %v1062
      %v1076 = vmul.f32 %v896, %v1062
      %v1077 = vmul.f32 %v1055, %v1062
      %v1078 = vmul.f32 %v898, %v1062
      %v1079 = vmul.f32 %v899, %v1062
      %v1080 = vmul.f32 %v1056, %v1062
      %v1081 = vmul.f32 %v901, %v1062
      %v1082 = vmul.f32 %v902, %v1062
      %v1083 = vmul.f32 %v1057, %v1062
      %v1084 = vmul.f32 %v904, %v1062
      %v1085 = vmul.f32 %v905, %v1062
      %v1086 = vmul.f32 %v1058, %v1062
      %vm1111 = vcmask 1045504
      %v1112 = vrot.slane %v1063, 2
      %v1113 = vrot.slane %v1064, 2
      %v1114 = vsel %vm1111, %v1112, %v1113
      %v1115 = vrot.slane %v1065, 2
      %v1116 = vsel %vm1111, %v1113, %v1115
      %v1117 = vrot.slane %v1066, 2
      %v1118 = vrot.slane %v1067, 2
      %v1119 = vsel %vm1111, %v1117, %v1118
      %v1120 = vrot.slane %v1068, 2
      %v1121 = vsel %vm1111, %v1118, %v1120
      %v1122 = vrot.slane %v1069, 2
      %v1123 = vrot.slane %v1070, 2
      %v1124 = vsel %vm1111, %v1122, %v1123
      %v1125 = vrot.slane %v1071, 2
      %v1126 = vsel %vm1111, %v1123, %v1125
      %v1127 = vrot.slane %v1072, 2
      %v1128 = vrot.slane %v1073, 2
      %v1129 = vsel %vm1111, %v1127, %v1128
      %v1130 = vrot.slane %v1074, 2
      %v1131 = vsel %vm1111, %v1128, %v1130
      %v1132 = vrot.slane %v1075, 2
      %v1133 = vrot.slane %v1076, 2
      %v1134 = vsel %vm1111, %v1132, %v1133
      %v1135 = vrot.slane %v1077, 2
      %v1136 = vsel %vm1111, %v1133, %v1135
      %v1137 = vrot.slane %v1078, 2
      %v1138 = vrot.slane %v1079, 2
      %v1139 = vsel %vm1111, %v1137, %v1138
      %v1140 = vrot.slane %v1080, 2
      %v1141 = vsel %vm1111, %v1138, %v1140
      %v1142 = vrot.slane %v1081, 2
      %v1143 = vrot.slane %v1082, 2
      %v1144 = vsel %vm1111, %v1142, %v1143
      %v1145 = vrot.slane %v1083, 2
      %v1146 = vsel %vm1111, %v1143, %v1145
      %v1147 = vrot.slane %v1084, 2
      %v1148 = vrot.slane %v1085, 2
      %v1149 = vsel %vm1111, %v1147, %v1148
      %v1150 = vrot.slane %v1086, 2
      %v1151 = vsel %vm1111, %v1148, %v1150
      %v1176 = vadd.f32 %v1019, %v1112
      %v1177 = vadd.f32 %v1020, %v1114
      %v1178 = vadd.f32 %v1021, %v1116
      %v1179 = vadd.f32 %v1022, %v1117
      %v1180 = vadd.f32 %v1023, %v1119
      %v1181 = vadd.f32 %v1024, %v1121
      %v1182 = vadd.f32 %v1025, %v1122
      %v1183 = vadd.f32 %v1026, %v1124
      %v1184 = vadd.f32 %v1027, %v1126
      %v1185 = vadd.f32 %v1028, %v1127
      %v1186 = vadd.f32 %v1029, %v1129
      %v1187 = vadd.f32 %v1030, %v1131
      %v1188 = vadd.f32 %v1031, %v1132
      %v1189 = vadd.f32 %v1032, %v1134
      %v1190 = vadd.f32 %v1033, %v1136
      %v1191 = vadd.f32 %v1034, %v1137
      %v1192 = vadd.f32 %v1035, %v1139
      %v1193 = vadd.f32 %v1036, %v1141
      %v1194 = vadd.f32 %v1037, %v1142
      %v1195 = vadd.f32 %v1038, %v1144
      %v1196 = vadd.f32 %v1039, %v1146
      %v1197 = vadd.f32 %v1040, %v1147
      %v1198 = vadd.f32 %v1041, %v1149
      %v1199 = vadd.f32 %v1042, %v1151
      %s1200 = sadd.s32 0, 1
      %s1201 = smul.u32 %s1200, 5
      %s1202 = smul.addr %s1201, 4
      %s1203 = scalar_lea.vmem [#allocation2], %s1202
      %v1204 = vld [vmem:[%s1203 + $0x4] sm:$0x8]
      %v1205 = vld [vmem:[%s1203 + $0x8] sm:$0xf]
      %v1206 = vld [vmem:[%s1203 + $0xc] sm:$0xf]
      %v1207 = vld [vmem:[%s1203 + $0x18] sm:$0x8]
      %v1208 = vld [vmem:[%s1203 + $0x1c] sm:$0xf]
      %v1209 = vld [vmem:[%s1203 + $0x20] sm:$0xf]
      %v1210 = vld [vmem:[%s1203 + $0x2c] sm:$0x8]
      %v1211 = vld [vmem:[%s1203 + $0x30] sm:$0xf]
      %v1212 = vld [vmem:[%s1203 + $0x34] sm:$0xf]
      %v1213 = vld [vmem:[%s1203 + $0x40] sm:$0x8]
      %v1214 = vld [vmem:[%s1203 + $0x44] sm:$0xf]
      %v1215 = vld [vmem:[%s1203 + $0x48] sm:$0xf]
      %v1216 = vld [vmem:[%s1203 + $0x54] sm:$0x8]
      %v1217 = vld [vmem:[%s1203 + $0x58] sm:$0xf]
      %v1218 = vld [vmem:[%s1203 + $0x5c] sm:$0xf]
      %v1219 = vld [vmem:[%s1203 + $0x68] sm:$0x8]
      %v1220 = vld [vmem:[%s1203 + $0x6c] sm:$0xf]
      %v1221 = vld [vmem:[%s1203 + $0x70] sm:$0xf]
      %v1222 = vld [vmem:[%s1203 + $0x7c] sm:$0x8]
      %v1223 = vld [vmem:[%s1203 + $0x80] sm:$0xf]
      %v1224 = vld [vmem:[%s1203 + $0x84] sm:$0xf]
      %v1225 = vld [vmem:[%s1203 + $0x90] sm:$0x8]
      %v1226 = vld [vmem:[%s1203 + $0x94] sm:$0xf]
      %v1227 = vld [vmem:[%s1203 + $0x98] sm:$0xf]
      %v1228 = vunpack.c.l.bf16 %v1204
      %v1229 = vunpack.c.l.bf16 %v1205
      %v1230 = vunpack.c.l.bf16 %v1206
      %v1231 = vunpack.c.l.bf16 %v1207
      %v1232 = vunpack.c.l.bf16 %v1208
      %v1233 = vunpack.c.l.bf16 %v1209
      %v1234 = vunpack.c.l.bf16 %v1210
      %v1235 = vunpack.c.l.bf16 %v1211
      %v1236 = vunpack.c.l.bf16 %v1212
      %v1237 = vunpack.c.l.bf16 %v1213
      %v1238 = vunpack.c.l.bf16 %v1214
      %v1239 = vunpack.c.l.bf16 %v1215
      %v1240 = vunpack.c.l.bf16 %v1216
      %v1241 = vunpack.c.l.bf16 %v1217
      %v1242 = vunpack.c.l.bf16 %v1218
      %v1243 = vunpack.c.l.bf16 %v1219
      %v1244 = vunpack.c.l.bf16 %v1220
      %v1245 = vunpack.c.l.bf16 %v1221
      %v1246 = vunpack.c.l.bf16 %v1222
      %v1247 = vunpack.c.l.bf16 %v1223
      %v1248 = vunpack.c.l.bf16 %v1224
      %v1249 = vunpack.c.l.bf16 %v1225
      %v1250 = vunpack.c.l.bf16 %v1226
      %v1251 = vunpack.c.l.bf16 %v1227
      %v1252 = vlaneseq
      %v1253 = vshrl.u32 %v1252, 7
      %v1254 = vsub.s32 0, %v1253
      %v1255 = vrot.slane %v844, %v1254
      %v1256 = vmul.f32 %v1228, %v1255
      %v1257 = vmul.f32 %v1229, %v1255
      %v1258 = vmul.f32 %v1230, %v1255
      %v1259 = vmul.f32 %v1231, %v1255
      %v1260 = vmul.f32 %v1232, %v1255
      %v1261 = vmul.f32 %v1233, %v1255
      %v1262 = vmul.f32 %v1234, %v1255
      %v1263 = vmul.f32 %v1235, %v1255
      %v1264 = vmul.f32 %v1236, %v1255
      %v1265 = vmul.f32 %v1237, %v1255
      %v1266 = vmul.f32 %v1238, %v1255
      %v1267 = vmul.f32 %v1239, %v1255
      %v1268 = vmul.f32 %v1240, %v1255
      %v1269 = vmul.f32 %v1241, %v1255
      %v1270 = vmul.f32 %v1242, %v1255
      %v1271 = vmul.f32 %v1243, %v1255
      %v1272 = vmul.f32 %v1244, %v1255
      %v1273 = vmul.f32 %v1245, %v1255
      %v1274 = vmul.f32 %v1246, %v1255
      %v1275 = vmul.f32 %v1247, %v1255
      %v1276 = vmul.f32 %v1248, %v1255
      %v1277 = vmul.f32 %v1249, %v1255
      %v1278 = vmul.f32 %v1250, %v1255
      %v1279 = vmul.f32 %v1251, %v1255
      %v1280 = vadd.f32 %v1176, %v1256
      %v1281 = vadd.f32 %v1177, %v1257
      %v1282 = vadd.f32 %v1178, %v1258
      %v1283 = vadd.f32 %v1179, %v1259
      %v1284 = vadd.f32 %v1180, %v1260
      %v1285 = vadd.f32 %v1181, %v1261
      %v1286 = vadd.f32 %v1182, %v1262
      %v1287 = vadd.f32 %v1183, %v1263
      %v1288 = vadd.f32 %v1184, %v1264
      %v1289 = vadd.f32 %v1185, %v1265
      %v1290 = vadd.f32 %v1186, %v1266
      %v1291 = vadd.f32 %v1187, %v1267
      %v1292 = vadd.f32 %v1188, %v1268
      %v1293 = vadd.f32 %v1189, %v1269
      %v1294 = vadd.f32 %v1190, %v1270
      %v1295 = vadd.f32 %v1191, %v1271
      %v1296 = vadd.f32 %v1192, %v1272
      %v1297 = vadd.f32 %v1193, %v1273
      %v1298 = vadd.f32 %v1194, %v1274
      %v1299 = vadd.f32 %v1195, %v1275
      %v1300 = vadd.f32 %v1196, %v1276
      %v1301 = vadd.f32 %v1197, %v1277
      %v1302 = vadd.f32 %v1198, %v1278
      %v1303 = vadd.f32 %v1199, %v1279
      %v1304 = vlaneseq
      %v1305 = vshrl.u32 %v1304, 7
      %v1306 = vsub.s32 0, %v1305
      %v1307 = vrot.slane %v845, %v1306
      %v1308 = vmul.f32 %v1229, %v1307
      %v1309 = vmul.f32 %v1230, %v1307
      %v1310 = vmul.f32 %v1232, %v1307
      %v1311 = vmul.f32 %v1233, %v1307
      %v1312 = vmul.f32 %v1235, %v1307
      %v1313 = vmul.f32 %v1236, %v1307
      %v1314 = vmul.f32 %v1238, %v1307
      %v1315 = vmul.f32 %v1239, %v1307
      %v1316 = vmul.f32 %v1241, %v1307
      %v1317 = vmul.f32 %v1242, %v1307
      %v1318 = vmul.f32 %v1244, %v1307
      %v1319 = vmul.f32 %v1245, %v1307
      %v1320 = vmul.f32 %v1247, %v1307
      %v1321 = vmul.f32 %v1248, %v1307
      %v1322 = vmul.f32 %v1250, %v1307
      %v1323 = vmul.f32 %v1251, %v1307
      %v1340 = vrot.slane %v1308, 1
      %v1341 = vrot.slane %v1309, 1
      %v1342 = vsel %vm970, %v1340, %v1341
      %v1343 = vrot.slane %v1310, 1
      %v1344 = vrot.slane %v1311, 1
      %v1345 = vsel %vm970, %v1343, %v1344
      %v1346 = vrot.slane %v1312, 1
      %v1347 = vrot.slane %v1313, 1
      %v1348 = vsel %vm970, %v1346, %v1347
      %v1349 = vrot.slane %v1314, 1
      %v1350 = vrot.slane %v1315, 1
      %v1351 = vsel %vm970, %v1349, %v1350
      %v1352 = vrot.slane %v1316, 1
      %v1353 = vrot.slane %v1317, 1
      %v1354 = vsel %vm970, %v1352, %v1353
      %v1355 = vrot.slane %v1318, 1
      %v1356 = vrot.slane %v1319, 1
      %v1357 = vsel %vm970, %v1355, %v1356
      %v1358 = vrot.slane %v1320, 1
      %v1359 = vrot.slane %v1321, 1
      %v1360 = vsel %vm970, %v1358, %v1359
      %v1361 = vrot.slane %v1322, 1
      %v1362 = vrot.slane %v1323, 1
      %v1363 = vsel %vm970, %v1361, %v1362
      %v1388 = vadd.f32 %v1280, %v1340
      %v1389 = vadd.f32 %v1281, %v1342
      %v1390 = vadd.f32 %v1282, %v1341
      %v1391 = vadd.f32 %v1283, %v1343
      %v1392 = vadd.f32 %v1284, %v1345
      %v1393 = vadd.f32 %v1285, %v1344
      %v1394 = vadd.f32 %v1286, %v1346
      %v1395 = vadd.f32 %v1287, %v1348
      %v1396 = vadd.f32 %v1288, %v1347
      %v1397 = vadd.f32 %v1289, %v1349
      %v1398 = vadd.f32 %v1290, %v1351
      %v1399 = vadd.f32 %v1291, %v1350
      %v1400 = vadd.f32 %v1292, %v1352
      %v1401 = vadd.f32 %v1293, %v1354
      %v1402 = vadd.f32 %v1294, %v1353
      %v1403 = vadd.f32 %v1295, %v1355
      %v1404 = vadd.f32 %v1296, %v1357
      %v1405 = vadd.f32 %v1297, %v1356
      %v1406 = vadd.f32 %v1298, %v1358
      %v1407 = vadd.f32 %v1299, %v1360
      %v1408 = vadd.f32 %v1300, %v1359
      %v1409 = vadd.f32 %v1301, %v1361
      %v1410 = vadd.f32 %v1302, %v1363
      %v1411 = vadd.f32 %v1303, %v1362
      %v1412 = vld [vmem:[%s1203 + $0x10] sm:$0x1]
      %v1413 = vld [vmem:[%s1203 + $0x24] sm:$0x1]
      %v1414 = vld [vmem:[%s1203 + $0x38] sm:$0x1]
      %v1415 = vld [vmem:[%s1203 + $0x4c] sm:$0x1]
      %v1416 = vld [vmem:[%s1203 + $0x60] sm:$0x1]
      %v1417 = vld [vmem:[%s1203 + $0x74] sm:$0x1]
      %v1418 = vld [vmem:[%s1203 + $0x88] sm:$0x1]
      %v1419 = vld [vmem:[%s1203 + $0x9c] sm:$0x1]
      %v1420 = vunpack.c.l.bf16 %v1412
      %v1421 = vunpack.c.l.bf16 %v1413
      %v1422 = vunpack.c.l.bf16 %v1414
      %v1423 = vunpack.c.l.bf16 %v1415
      %v1424 = vunpack.c.l.bf16 %v1416
      %v1425 = vunpack.c.l.bf16 %v1417
      %v1426 = vunpack.c.l.bf16 %v1418
      %v1427 = vunpack.c.l.bf16 %v1419
      %v1428 = vlaneseq
      %v1429 = vshrl.u32 %v1428, 7
      %v1430 = vsub.s32 0, %v1429
      %v1431 = vrot.slane %v846, %v1430
      %v1432 = vmul.f32 %v1229, %v1431
      %v1433 = vmul.f32 %v1230, %v1431
      %v1434 = vmul.f32 %v1420, %v1431
      %v1435 = vmul.f32 %v1232, %v1431
      %v1436 = vmul.f32 %v1233, %v1431
      %v1437 = vmul.f32 %v1421, %v1431
      %v1438 = vmul.f32 %v1235, %v1431
      %v1439 = vmul.f32 %v1236, %v1431
      %v1440 = vmul.f32 %v1422, %v1431
      %v1441 = vmul.f32 %v1238, %v1431
      %v1442 = vmul.f32 %v1239, %v1431
      %v1443 = vmul.f32 %v1423, %v1431
      %v1444 = vmul.f32 %v1241, %v1431
      %v1445 = vmul.f32 %v1242, %v1431
      %v1446 = vmul.f32 %v1424, %v1431
      %v1447 = vmul.f32 %v1244, %v1431
      %v1448 = vmul.f32 %v1245, %v1431
      %v1449 = vmul.f32 %v1425, %v1431
      %v1450 = vmul.f32 %v1247, %v1431
      %v1451 = vmul.f32 %v1248, %v1431
      %v1452 = vmul.f32 %v1426, %v1431
      %v1453 = vmul.f32 %v1250, %v1431
      %v1454 = vmul.f32 %v1251, %v1431
      %v1455 = vmul.f32 %v1427, %v1431
      %v1480 = vrot.slane %v1432, 2
      %v1481 = vrot.slane %v1433, 2
      %v1482 = vsel %vm1111, %v1480, %v1481
      %v1483 = vrot.slane %v1434, 2
      %v1484 = vsel %vm1111, %v1481, %v1483
      %v1485 = vrot.slane %v1435, 2
      %v1486 = vrot.slane %v1436, 2
      %v1487 = vsel %vm1111, %v1485, %v1486
      %v1488 = vrot.slane %v1437, 2
      %v1489 = vsel %vm1111, %v1486, %v1488
      %v1490 = vrot.slane %v1438, 2
      %v1491 = vrot.slane %v1439, 2
      %v1492 = vsel %vm1111, %v1490, %v1491
      %v1493 = vrot.slane %v1440, 2
      %v1494 = vsel %vm1111, %v1491, %v1493
      %v1495 = vrot.slane %v1441, 2
      %v1496 = vrot.slane %v1442, 2
      %v1497 = vsel %vm1111, %v1495, %v1496
      %v1498 = vrot.slane %v1443, 2
      %v1499 = vsel %vm1111, %v1496, %v1498
      %v1500 = vrot.slane %v1444, 2
      %v1501 = vrot.slane %v1445, 2
      %v1502 = vsel %vm1111, %v1500, %v1501
      %v1503 = vrot.slane %v1446, 2
      %v1504 = vsel %vm1111, %v1501, %v1503
      %v1505 = vrot.slane %v1447, 2
      %v1506 = vrot.slane %v1448, 2
      %v1507 = vsel %vm1111, %v1505, %v1506
      %v1508 = vrot.slane %v1449, 2
      %v1509 = vsel %vm1111, %v1506, %v1508
      %v1510 = vrot.slane %v1450, 2
      %v1511 = vrot.slane %v1451, 2
      %v1512 = vsel %vm1111, %v1510, %v1511
      %v1513 = vrot.slane %v1452, 2
      %v1514 = vsel %vm1111, %v1511, %v1513
      %v1515 = vrot.slane %v1453, 2
      %v1516 = vrot.slane %v1454, 2
      %v1517 = vsel %vm1111, %v1515, %v1516
      %v1518 = vrot.slane %v1455, 2
      %v1519 = vsel %vm1111, %v1516, %v1518
      %v1544 = vadd.f32 %v1388, %v1480
      %v1545 = vadd.f32 %v1389, %v1482
      %v1546 = vadd.f32 %v1390, %v1484
      %v1547 = vadd.f32 %v1391, %v1485
      %v1548 = vadd.f32 %v1392, %v1487
      %v1549 = vadd.f32 %v1393, %v1489
      %v1550 = vadd.f32 %v1394, %v1490
      %v1551 = vadd.f32 %v1395, %v1492
      %v1552 = vadd.f32 %v1396, %v1494
      %v1553 = vadd.f32 %v1397, %v1495
      %v1554 = vadd.f32 %v1398, %v1497
      %v1555 = vadd.f32 %v1399, %v1499
      %v1556 = vadd.f32 %v1400, %v1500
      %v1557 = vadd.f32 %v1401, %v1502
      %v1558 = vadd.f32 %v1402, %v1504
      %v1559 = vadd.f32 %v1403, %v1505
      %v1560 = vadd.f32 %v1404, %v1507
      %v1561 = vadd.f32 %v1405, %v1509
      %v1562 = vadd.f32 %v1406, %v1510
      %v1563 = vadd.f32 %v1407, %v1512
      %v1564 = vadd.f32 %v1408, %v1514
      %v1565 = vadd.f32 %v1409, %v1515
      %v1566 = vadd.f32 %v1410, %v1517
      %v1567 = vadd.f32 %v1411, %v1519
      %s1568 = sadd.s32 0, 2
      %s1569 = smul.u32 %s1568, 5
      %s1570 = smul.addr %s1569, 4
      %s1571 = scalar_lea.vmem [#allocation2], %s1570
      %v1572 = vld [vmem:[%s1571 + $0x4] sm:$0x8]
      %v1573 = vld [vmem:[%s1571 + $0x8] sm:$0xf]
      %v1574 = vld [vmem:[%s1571 + $0xc] sm:$0xf]
      %v1575 = vld [vmem:[%s1571 + $0x18] sm:$0x8]
      %v1576 = vld [vmem:[%s1571 + $0x1c] sm:$0xf]
      %v1577 = vld [vmem:[%s1571 + $0x20] sm:$0xf]
      %v1578 = vld [vmem:[%s1571 + $0x2c] sm:$0x8]
      %v1579 = vld [vmem:[%s1571 + $0x30] sm:$0xf]
      %v1580 = vld [vmem:[%s1571 + $0x34] sm:$0xf]
      %v1581 = vld [vmem:[%s1571 + $0x40] sm:$0x8]
      %v1582 = vld [vmem:[%s1571 + $0x44] sm:$0xf]
      %v1583 = vld [vmem:[%s1571 + $0x48] sm:$0xf]
      %v1584 = vld [vmem:[%s1571 + $0x54] sm:$0x8]
      %v1585 = vld [vmem:[%s1571 + $0x58] sm:$0xf]
      %v1586 = vld [vmem:[%s1571 + $0x5c] sm:$0xf]
      %v1587 = vld [vmem:[%s1571 + $0x68] sm:$0x8]
      %v1588 = vld [vmem:[%s1571 + $0x6c] sm:$0xf]
      %v1589 = vld [vmem:[%s1571 + $0x70] sm:$0xf]
      %v1590 = vld [vmem:[%s1571 + $0x7c] sm:$0x8]
      %v1591 = vld [vmem:[%s1571 + $0x80] sm:$0xf]
      %v1592 = vld [vmem:[%s1571 + $0x84] sm:$0xf]
      %v1593 = vld [vmem:[%s1571 + $0x90] sm:$0x8]
      %v1594 = vld [vmem:[%s1571 + $0x94] sm:$0xf]
      %v1595 = vld [vmem:[%s1571 + $0x98] sm:$0xf]
      %v1596 = vunpack.c.l.bf16 %v1572
      %v1597 = vunpack.c.l.bf16 %v1573
      %v1598 = vunpack.c.l.bf16 %v1574
      %v1599 = vunpack.c.l.bf16 %v1575
      %v1600 = vunpack.c.l.bf16 %v1576
      %v1601 = vunpack.c.l.bf16 %v1577
      %v1602 = vunpack.c.l.bf16 %v1578
      %v1603 = vunpack.c.l.bf16 %v1579
      %v1604 = vunpack.c.l.bf16 %v1580
      %v1605 = vunpack.c.l.bf16 %v1581
      %v1606 = vunpack.c.l.bf16 %v1582
      %v1607 = vunpack.c.l.bf16 %v1583
      %v1608 = vunpack.c.l.bf16 %v1584
      %v1609 = vunpack.c.l.bf16 %v1585
      %v1610 = vunpack.c.l.bf16 %v1586
      %v1611 = vunpack.c.l.bf16 %v1587
      %v1612 = vunpack.c.l.bf16 %v1588
      %v1613 = vunpack.c.l.bf16 %v1589
      %v1614 = vunpack.c.l.bf16 %v1590
      %v1615 = vunpack.c.l.bf16 %v1591
      %v1616 = vunpack.c.l.bf16 %v1592
      %v1617 = vunpack.c.l.bf16 %v1593
      %v1618 = vunpack.c.l.bf16 %v1594
      %v1619 = vunpack.c.l.bf16 %v1595
      %v1620 = vlaneseq
      %v1621 = vshrl.u32 %v1620, 7
      %v1622 = vsub.s32 0, %v1621
      %v1623 = vrot.slane %v847, %v1622
      %v1624 = vmul.f32 %v1596, %v1623
      %v1625 = vmul.f32 %v1597, %v1623
      %v1626 = vmul.f32 %v1598, %v1623
      %v1627 = vmul.f32 %v1599, %v1623
      %v1628 = vmul.f32 %v1600, %v1623
      %v1629 = vmul.f32 %v1601, %v1623
      %v1630 = vmul.f32 %v1602, %v1623
      %v1631 = vmul.f32 %v1603, %v1623
      %v1632 = vmul.f32 %v1604, %v1623
      %v1633 = vmul.f32 %v1605, %v1623
      %v1634 = vmul.f32 %v1606, %v1623
      %v1635 = vmul.f32 %v1607, %v1623
      %v1636 = vmul.f32 %v1608, %v1623
      %v1637 = vmul.f32 %v1609, %v1623
      %v1638 = vmul.f32 %v1610, %v1623
      %v1639 = vmul.f32 %v1611, %v1623
      %v1640 = vmul.f32 %v1612, %v1623
      %v1641 = vmul.f32 %v1613, %v1623
      %v1642 = vmul.f32 %v1614, %v1623
      %v1643 = vmul.f32 %v1615, %v1623
      %v1644 = vmul.f32 %v1616, %v1623
      %v1645 = vmul.f32 %v1617, %v1623
      %v1646 = vmul.f32 %v1618, %v1623
      %v1647 = vmul.f32 %v1619, %v1623
      %v1648 = vadd.f32 %v1544, %v1624
      %v1649 = vadd.f32 %v1545, %v1625
      %v1650 = vadd.f32 %v1546, %v1626
      %v1651 = vadd.f32 %v1547, %v1627
      %v1652 = vadd.f32 %v1548, %v1628
      %v1653 = vadd.f32 %v1549, %v1629
      %v1654 = vadd.f32 %v1550, %v1630
      %v1655 = vadd.f32 %v1551, %v1631
      %v1656 = vadd.f32 %v1552, %v1632
      %v1657 = vadd.f32 %v1553, %v1633
      %v1658 = vadd.f32 %v1554, %v1634
      %v1659 = vadd.f32 %v1555, %v1635
      %v1660 = vadd.f32 %v1556, %v1636
      %v1661 = vadd.f32 %v1557, %v1637
      %v1662 = vadd.f32 %v1558, %v1638
      %v1663 = vadd.f32 %v1559, %v1639
      %v1664 = vadd.f32 %v1560, %v1640
      %v1665 = vadd.f32 %v1561, %v1641
      %v1666 = vadd.f32 %v1562, %v1642
      %v1667 = vadd.f32 %v1563, %v1643
      %v1668 = vadd.f32 %v1564, %v1644
      %v1669 = vadd.f32 %v1565, %v1645
      %v1670 = vadd.f32 %v1566, %v1646
      %v1671 = vadd.f32 %v1567, %v1647
      %v1672 = vlaneseq
      %v1673 = vshrl.u32 %v1672, 7
      %v1674 = vsub.s32 0, %v1673
      %v1675 = vrot.slane %v848, %v1674
      %v1676 = vmul.f32 %v1597, %v1675
      %v1677 = vmul.f32 %v1598, %v1675
      %v1678 = vmul.f32 %v1600, %v1675
      %v1679 = vmul.f32 %v1601, %v1675
      %v1680 = vmul.f32 %v1603, %v1675
      %v1681 = vmul.f32 %v1604, %v1675
      %v1682 = vmul.f32 %v1606, %v1675
      %v1683 = vmul.f32 %v1607, %v1675
      %v1684 = vmul.f32 %v1609, %v1675
      %v1685 = vmul.f32 %v1610, %v1675
      %v1686 = vmul.f32 %v1612, %v1675
      %v1687 = vmul.f32 %v1613, %v1675
      %v1688 = vmul.f32 %v1615, %v1675
      %v1689 = vmul.f32 %v1616, %v1675
      %v1690 = vmul.f32 %v1618, %v1675
      %v1691 = vmul.f32 %v1619, %v1675
      %v1708 = vrot.slane %v1676, 1
      %v1709 = vrot.slane %v1677, 1
      %v1710 = vsel %vm970, %v1708, %v1709
      %v1711 = vrot.slane %v1678, 1
      %v1712 = vrot.slane %v1679, 1
      %v1713 = vsel %vm970, %v1711, %v1712
      %v1714 = vrot.slane %v1680, 1
      %v1715 = vrot.slane %v1681, 1
      %v1716 = vsel %vm970, %v1714, %v1715
      %v1717 = vrot.slane %v1682, 1
      %v1718 = vrot.slane %v1683, 1
      %v1719 = vsel %vm970, %v1717, %v1718
      %v1720 = vrot.slane %v1684, 1
      %v1721 = vrot.slane %v1685, 1
      %v1722 = vsel %vm970, %v1720, %v1721
      %v1723 = vrot.slane %v1686, 1
      %v1724 = vrot.slane %v1687, 1
      %v1725 = vsel %vm970, %v1723, %v1724
      %v1726 = vrot.slane %v1688, 1
      %v1727 = vrot.slane %v1689, 1
      %v1728 = vsel %vm970, %v1726, %v1727
      %v1729 = vrot.slane %v1690, 1
      %v1730 = vrot.slane %v1691, 1
      %v1731 = vsel %vm970, %v1729, %v1730
      %v1756 = vadd.f32 %v1648, %v1708
      %v1757 = vadd.f32 %v1649, %v1710
      %v1758 = vadd.f32 %v1650, %v1709
      %v1759 = vadd.f32 %v1651, %v1711
      %v1760 = vadd.f32 %v1652, %v1713
      %v1761 = vadd.f32 %v1653, %v1712
      %v1762 = vadd.f32 %v1654, %v1714
      %v1763 = vadd.f32 %v1655, %v1716
      %v1764 = vadd.f32 %v1656, %v1715
      %v1765 = vadd.f32 %v1657, %v1717
      %v1766 = vadd.f32 %v1658, %v1719
      %v1767 = vadd.f32 %v1659, %v1718
      %v1768 = vadd.f32 %v1660, %v1720
      %v1769 = vadd.f32 %v1661, %v1722
      %v1770 = vadd.f32 %v1662, %v1721
      %v1771 = vadd.f32 %v1663, %v1723
      %v1772 = vadd.f32 %v1664, %v1725
      %v1773 = vadd.f32 %v1665, %v1724
      %v1774 = vadd.f32 %v1666, %v1726
      %v1775 = vadd.f32 %v1667, %v1728
      %v1776 = vadd.f32 %v1668, %v1727
      %v1777 = vadd.f32 %v1669, %v1729
      %v1778 = vadd.f32 %v1670, %v1731
      %v1779 = vadd.f32 %v1671, %v1730
      %v1780 = vld [vmem:[%s1571 + $0x10] sm:$0x1]
      %v1781 = vld [vmem:[%s1571 + $0x24] sm:$0x1]
      %v1782 = vld [vmem:[%s1571 + $0x38] sm:$0x1]
      %v1783 = vld [vmem:[%s1571 + $0x4c] sm:$0x1]
      %v1784 = vld [vmem:[%s1571 + $0x60] sm:$0x1]
      %v1785 = vld [vmem:[%s1571 + $0x74] sm:$0x1]
      %v1786 = vld [vmem:[%s1571 + $0x88] sm:$0x1]
      %v1787 = vld [vmem:[%s1571 + $0x9c] sm:$0x1]
      %v1788 = vunpack.c.l.bf16 %v1780
      %v1789 = vunpack.c.l.bf16 %v1781
      %v1790 = vunpack.c.l.bf16 %v1782
      %v1791 = vunpack.c.l.bf16 %v1783
      %v1792 = vunpack.c.l.bf16 %v1784
      %v1793 = vunpack.c.l.bf16 %v1785
      %v1794 = vunpack.c.l.bf16 %v1786
      %v1795 = vunpack.c.l.bf16 %v1787
      %v1796 = vlaneseq
      %v1797 = vshrl.u32 %v1796, 7
      %v1798 = vsub.s32 0, %v1797
      %v1799 = vrot.slane %v849, %v1798
      %v1800 = vmul.f32 %v1597, %v1799
      %v1801 = vmul.f32 %v1598, %v1799
      %v1802 = vmul.f32 %v1788, %v1799
      %v1803 = vmul.f32 %v1600, %v1799
      %v1804 = vmul.f32 %v1601, %v1799
      %v1805 = vmul.f32 %v1789, %v1799
      %v1806 = vmul.f32 %v1603, %v1799
      %v1807 = vmul.f32 %v1604, %v1799
      %v1808 = vmul.f32 %v1790, %v1799
      %v1809 = vmul.f32 %v1606, %v1799
      %v1810 = vmul.f32 %v1607, %v1799
      %v1811 = vmul.f32 %v1791, %v1799
      %v1812 = vmul.f32 %v1609, %v1799
      %v1813 = vmul.f32 %v1610, %v1799
      %v1814 = vmul.f32 %v1792, %v1799
      %v1815 = vmul.f32 %v1612, %v1799
      %v1816 = vmul.f32 %v1613, %v1799
      %v1817 = vmul.f32 %v1793, %v1799
      %v1818 = vmul.f32 %v1615, %v1799
      %v1819 = vmul.f32 %v1616, %v1799
      %v1820 = vmul.f32 %v1794, %v1799
      %v1821 = vmul.f32 %v1618, %v1799
      %v1822 = vmul.f32 %v1619, %v1799
      %v1823 = vmul.f32 %v1795, %v1799
      %v1848 = vrot.slane %v1800, 2
      %v1849 = vrot.slane %v1801, 2
      %v1850 = vsel %vm1111, %v1848, %v1849
      %v1851 = vrot.slane %v1802, 2
      %v1852 = vsel %vm1111, %v1849, %v1851
      %v1853 = vrot.slane %v1803, 2
      %v1854 = vrot.slane %v1804, 2
      %v1855 = vsel %vm1111, %v1853, %v1854
      %v1856 = vrot.slane %v1805, 2
      %v1857 = vsel %vm1111, %v1854, %v1856
      %v1858 = vrot.slane %v1806, 2
      %v1859 = vrot.slane %v1807, 2
      %v1860 = vsel %vm1111, %v1858, %v1859
      %v1861 = vrot.slane %v1808, 2
      %v1862 = vsel %vm1111, %v1859, %v1861
      %v1863 = vrot.slane %v1809, 2
      %v1864 = vrot.slane %v1810, 2
      %v1865 = vsel %vm1111, %v1863, %v1864
      %v1866 = vrot.slane %v1811, 2
      %v1867 = vsel %vm1111, %v1864, %v1866
      %v1868 = vrot.slane %v1812, 2
      %v1869 = vrot.slane %v1813, 2
      %v1870 = vsel %vm1111, %v1868, %v1869
      %v1871 = vrot.slane %v1814, 2
      %v1872 = vsel %vm1111, %v1869, %v1871
      %v1873 = vrot.slane %v1815, 2
      %v1874 = vrot.slane %v1816, 2
      %v1875 = vsel %vm1111, %v1873, %v1874
      %v1876 = vrot.slane %v1817, 2
      %v1877 = vsel %vm1111, %v1874, %v1876
      %v1878 = vrot.slane %v1818, 2
      %v1879 = vrot.slane %v1819, 2
      %v1880 = vsel %vm1111, %v1878, %v1879
      %v1881 = vrot.slane %v1820, 2
      %v1882 = vsel %vm1111, %v1879, %v1881
      %v1883 = vrot.slane %v1821, 2
      %v1884 = vrot.slane %v1822, 2
      %v1885 = vsel %vm1111, %v1883, %v1884
      %v1886 = vrot.slane %v1823, 2
      %v1887 = vsel %vm1111, %v1884, %v1886
      %v1912 = vadd.f32 %v1756, %v1848
      %v1913 = vadd.f32 %v1757, %v1850
      %v1914 = vadd.f32 %v1758, %v1852
      %v1915 = vadd.f32 %v1759, %v1853
      %v1916 = vadd.f32 %v1760, %v1855
      %v1917 = vadd.f32 %v1761, %v1857
      %v1918 = vadd.f32 %v1762, %v1858
      %v1919 = vadd.f32 %v1763, %v1860
      %v1920 = vadd.f32 %v1764, %v1862
      %v1921 = vadd.f32 %v1765, %v1863
      %v1922 = vadd.f32 %v1766, %v1865
      %v1923 = vadd.f32 %v1767, %v1867
      %v1924 = vadd.f32 %v1768, %v1868
      %v1925 = vadd.f32 %v1769, %v1870
      %v1926 = vadd.f32 %v1770, %v1872
      %v1927 = vadd.f32 %v1771, %v1873
      %v1928 = vadd.f32 %v1772, %v1875
      %v1929 = vadd.f32 %v1773, %v1877
      %v1930 = vadd.f32 %v1774, %v1878
      %v1931 = vadd.f32 %v1775, %v1880
      %v1932 = vadd.f32 %v1776, %v1882
      %v1933 = vadd.f32 %v1777, %v1883
      %v1934 = vadd.f32 %v1778, %v1885
      %v1935 = vadd.f32 %v1779, %v1887
      %v1937 = vlaneseq
      %v1938 = vshrl.u32 %v1937, 7
      %v1939 = vsub.s32 0, %v1938
      %v1940 = vrot.slane %v850, %v1939
      %v1942 = vadd.f32 %v1912, %v1940
      %v1943 = vadd.f32 %v1913, %v1940
      %v1944 = vadd.f32 %v1914, %v1940
      %v1945 = vadd.f32 %v1915, %v1940
      %v1946 = vadd.f32 %v1916, %v1940
      %v1947 = vadd.f32 %v1917, %v1940
      %v1948 = vadd.f32 %v1918, %v1940
      %v1949 = vadd.f32 %v1919, %v1940
      %v1950 = vadd.f32 %v1920, %v1940
      %v1951 = vadd.f32 %v1921, %v1940
      %v1952 = vadd.f32 %v1922, %v1940
      %v1953 = vadd.f32 %v1923, %v1940
      %v1954 = vadd.f32 %v1924, %v1940
      %v1955 = vadd.f32 %v1925, %v1940
      %v1956 = vadd.f32 %v1926, %v1940
      %v1957 = vadd.f32 %v1927, %v1940
      %v1958 = vadd.f32 %v1928, %v1940
      %v1959 = vadd.f32 %v1929, %v1940
      %v1960 = vadd.f32 %v1930, %v1940
      %v1961 = vadd.f32 %v1931, %v1940
      %v1962 = vadd.f32 %v1932, %v1940
      %v1963 = vadd.f32 %v1933, %v1940
      %v1964 = vadd.f32 %v1934, %v1940
      %v1965 = vadd.f32 %v1935, %v1940
      %v1966 = vmax.f32 %v1942, 0.0
      %v1967 = vmax.f32 %v1943, 0.0
      %v1968 = vmax.f32 %v1944, 0.0
      %v1969 = vmax.f32 %v1945, 0.0
      %v1970 = vmax.f32 %v1946, 0.0
      %v1971 = vmax.f32 %v1947, 0.0
      %v1972 = vmax.f32 %v1948, 0.0
      %v1973 = vmax.f32 %v1949, 0.0
      %v1974 = vmax.f32 %v1950, 0.0
      %v1975 = vmax.f32 %v1951, 0.0
      %v1976 = vmax.f32 %v1952, 0.0
      %v1977 = vmax.f32 %v1953, 0.0
      %v1978 = vmax.f32 %v1954, 0.0
      %v1979 = vmax.f32 %v1955, 0.0
      %v1980 = vmax.f32 %v1956, 0.0
      %v1981 = vmax.f32 %v1957, 0.0
      %v1982 = vmax.f32 %v1958, 0.0
      %v1983 = vmax.f32 %v1959, 0.0
      %v1984 = vmax.f32 %v1960, 0.0
      %v1985 = vmax.f32 %v1961, 0.0
      %v1986 = vmax.f32 %v1962, 0.0
      %v1987 = vmax.f32 %v1963, 0.0
      %v1988 = vmax.f32 %v1964, 0.0
      %v1989 = vmax.f32 %v1965, 0.0
      %v1990 = vmin.f32 %v1966, 6.0
      %v1991 = vmin.f32 %v1967, 6.0
      %v1992 = vmin.f32 %v1968, 6.0
      %v1993 = vmin.f32 %v1969, 6.0
      %v1994 = vmin.f32 %v1970, 6.0
      %v1995 = vmin.f32 %v1971, 6.0
      %v1996 = vmin.f32 %v1972, 6.0
      %v1997 = vmin.f32 %v1973, 6.0
      %v1998 = vmin.f32 %v1974, 6.0
      %v1999 = vmin.f32 %v1975, 6.0
      %v2000 = vmin.f32 %v1976, 6.0
      %v2001 = vmin.f32 %v1977, 6.0
      %v2002 = vmin.f32 %v1978, 6.0
      %v2003 = vmin.f32 %v1979, 6.0
      %v2004 = vmin.f32 %v1980, 6.0
      %v2005 = vmin.f32 %v1981, 6.0
      %v2006 = vmin.f32 %v1982, 6.0
      %v2007 = vmin.f32 %v1983, 6.0
      %v2008 = vmin.f32 %v1984, 6.0
      %v2009 = vmin.f32 %v1985, 6.0
      %v2010 = vmin.f32 %v1986, 6.0
      %v2011 = vmin.f32 %v1987, 6.0
      %v2012 = vmin.f32 %v1988, 6.0
      %v2013 = vmin.f32 %v1989, 6.0
      %vm2038 = vcmask 1040384
      %v2039 = vrot.slane %v1990, 7
      %v2040 = vrot.slane %v1991, 7
      %v2041 = vsel %vm2038, %v2039, %v2040
      %v2042 = vrot.slane %v1992, 7
      %v2043 = vsel %vm2038, %v2040, %v2042
      %v2044 = vrot.slane %v1993, 7
      %v2045 = vrot.slane %v1994, 7
      %v2046 = vsel %vm2038, %v2044, %v2045
      %v2047 = vrot.slane %v1995, 7
      %v2048 = vsel %vm2038, %v2045, %v2047
      %v2049 = vrot.slane %v1996, 7
      %v2050 = vrot.slane %v1997, 7
      %v2051 = vsel %vm2038, %v2049, %v2050
      %v2052 = vrot.slane %v1998, 7
      %v2053 = vsel %vm2038, %v2050, %v2052
      %v2054 = vrot.slane %v1999, 7
      %v2055 = vrot.slane %v2000, 7
      %v2056 = vsel %vm2038, %v2054, %v2055
      %v2057 = vrot.slane %v2001, 7
      %v2058 = vsel %vm2038, %v2055, %v2057
      %v2059 = vrot.slane %v2002, 7
      %v2060 = vrot.slane %v2003, 7
      %v2061 = vsel %vm2038, %v2059, %v2060
      %v2062 = vrot.slane %v2004, 7
      %v2063 = vsel %vm2038, %v2060, %v2062
      %v2064 = vrot.slane %v2005, 7
      %v2065 = vrot.slane %v2006, 7
      %v2066 = vsel %vm2038, %v2064, %v2065
      %v2067 = vrot.slane %v2007, 7
      %v2068 = vsel %vm2038, %v2065, %v2067
      %v2069 = vrot.slane %v2008, 7
      %v2070 = vrot.slane %v2009, 7
      %v2071 = vsel %vm2038, %v2069, %v2070
      %v2072 = vrot.slane %v2010, 7
      %v2073 = vsel %vm2038, %v2070, %v2072
      %v2074 = vrot.slane %v2011, 7
      %v2075 = vrot.slane %v2012, 7
      %v2076 = vsel %vm2038, %v2074, %v2075
      %v2077 = vrot.slane %v2013, 7
      %v2078 = vsel %vm2038, %v2075, %v2077
      %v2095 = vpack.c.bf16 %v2043, %v2041
      %v2096 = vpack.c.bf16 %v2048, %v2046
      %v2097 = vpack.c.bf16 %v2053, %v2051
      %v2098 = vpack.c.bf16 %v2058, %v2056
      %v2099 = vpack.c.bf16 %v2063, %v2061
      %v2100 = vpack.c.bf16 %v2068, %v2066
      %v2101 = vpack.c.bf16 %v2073, %v2071
      %v2102 = vpack.c.bf16 %v2078, %v2076
      %v2104 = vlaneseq
      %v2105 = vshrl.u32 %v2104, 7
      %v2106 = vsub.s32 0, %v2105
      %v2107 = vrot.slane %v854, %v2106
      %v2112 = vunpack.c.l.b16 %v851
      %v2113 = vunpack.c.l.b16 %v852
      %v2114 = vunpack.c.l.b16 %v853
      %v2115 = vpack.c.b16 %v2113, %v2112
      %v2116 = vpack.c.b16 %v2114, %v2114
      %vm2118 = vcmask 195584
      %v2120 = vsel %vm2118, %v2095, 0
      %v2123 = vsel %vm2118, %v2096, 0
      %v2126 = vsel %vm2118, %v2097, 0
      %v2129 = vsel %vm2118, %v2098, 0
      %v2132 = vsel %vm2118, %v2099, 0
      %v2135 = vsel %vm2118, %v2100, 0
      %v2138 = vsel %vm2118, %v2101, 0
      %v2141 = vsel %vm2118, %v2102, 0
      %vm2143 = vcmask 1043456
      %v2145 = vsel %vm2143, %v2116, 0
      %2147 = vmatprep.subr.bf16.mxu0 0
      %2148 = vmatpush1.bf16.msra.mxu0 %v2115
      %2149 = vmatprep.subr.bf16.mxu0 0
      %2150 = vmatpush1.bf16.msra.mxu0 %v2145
      %2151 = vmatprep.subr.bf16.mxu0 0
      %2152 = vmatpush1.bf16.msra.mxu0 0
      %2153 = vmatprep.subr.bf16.mxu0 0
      %2154 = vmatpush1.bf16.msra.mxu0 0
      %2155 = vmatprep.subr.bf16.mxu0 0
      %2156 = vmatpush1.bf16.msra.mxu0 0
      %2157 = vmatprep.subr.bf16.mxu0 0
      %2158 = vmatpush1.bf16.msra.mxu0 0
      %2159 = vmatprep.subr.bf16.mxu0 0
      %2160 = vmatpush1.bf16.msra.mxu0 0
      %2161 = vmatprep.subr.bf16.mxu0 0
      %2162 = vmatpush1.bf16.msra.mxu0 0
      %2163 = vmatprep.subr.bf16.mxu0 0
      %2164 = vmatpush1.bf16.msra.mxu0 0
      %2165 = vmatprep.subr.bf16.mxu0 0
      %2166 = vmatpush1.bf16.msra.mxu0 0
      %2167 = vmatprep.subr.bf16.mxu0 0
      %2168 = vmatpush1.bf16.msra.mxu0 0
      %2169 = vmatprep.subr.bf16.mxu0 0
      %2170 = vmatpush1.bf16.msra.mxu0 0
      %2171 = vmatprep.subr.bf16.mxu0 0
      %2172 = vmatpush1.bf16.msra.mxu0 0
      %2173 = vmatprep.subr.bf16.mxu0 0
      %2174 = vmatpush1.bf16.msra.mxu0 0
      %2175 = vmatprep.subr.bf16.mxu0 0
      %2176 = vmatpush1.bf16.msra.mxu0 0
      %2177 = vmatprep.subr.bf16.mxu0 0
      %2178 = vmatpush1.bf16.msra.mxu0 0
      %2179 = vmatprep.mubr.bf16.mxu0 0
      %2180 = vmatmul.mubr.bf16.gmra.mrb[0].mxu0 %v2120
      %v2181 = vpop.f32.mrb[0].mxu0
      %v2182 = vadd.f32 %v2107, %v2181
      %v2183 = vpop.f32.mrb[0].mxu0
      %v2184 = vpop.f32.mrb[0].mxu0
      %v2185 = vadd.f32 %v2107, %v2184
      %v2186 = vpop.f32.mrb[0].mxu0
      %2187 = vmatprep.mubr.bf16.mxu0 0
      %2188 = vmatmul.mubr.bf16.gmra.mrb[0].mxu0 %v2123
      %v2189 = vpop.f32.mrb[0].mxu0
      %v2190 = vadd.f32 %v2107, %v2189
      %v2191 = vpop.f32.mrb[0].mxu0
      %v2192 = vpop.f32.mrb[0].mxu0
      %v2193 = vadd.f32 %v2107, %v2192
      %v2194 = vpop.f32.mrb[0].mxu0
      %2195 = vmatprep.mubr.bf16.mxu0 0
      %2196 = vmatmul.mubr.bf16.gmra.mrb[0].mxu0 %v2126
      %v2197 = vpop.f32.mrb[0].mxu0
      %v2198 = vadd.f32 %v2107, %v2197
      %v2199 = vpop.f32.mrb[0].mxu0
      %v2200 = vpop.f32.mrb[0].mxu0
      %v2201 = vadd.f32 %v2107, %v2200
      %v2202 = vpop.f32.mrb[0].mxu0
      %2203 = vmatprep.mubr.bf16.mxu0 0
      %2204 = vmatmul.mubr.bf16.gmra.mrb[0].mxu0 %v2129
      %v2205 = vpop.f32.mrb[0].mxu0
      %v2206 = vadd.f32 %v2107, %v2205
      %v2207 = vpop.f32.mrb[0].mxu0
      %v2208 = vpop.f32.mrb[0].mxu0
      %v2209 = vadd.f32 %v2107, %v2208
      %v2210 = vpop.f32.mrb[0].mxu0
      %2211 = vmatprep.mubr.bf16.mxu0 0
      %2212 = vmatmul.mubr.bf16.gmra.mrb[0].mxu0 %v2132
      %v2213 = vpop.f32.mrb[0].mxu0
      %v2214 = vadd.f32 %v2107, %v2213
      %v2215 = vpop.f32.mrb[0].mxu0
      %v2216 = vpop.f32.mrb[0].mxu0
      %v2217 = vadd.f32 %v2107, %v2216
      %v2218 = vpop.f32.mrb[0].mxu0
      %2219 = vmatprep.mubr.bf16.mxu0 0
      %2220 = vmatmul.mubr.bf16.gmra.mrb[0].mxu0 %v2135
      %v2221 = vpop.f32.mrb[0].mxu0
      %v2222 = vadd.f32 %v2107, %v2221
      %v2223 = vpop.f32.mrb[0].mxu0
      %v2224 = vpop.f32.mrb[0].mxu0
      %v2225 = vadd.f32 %v2107, %v2224
      %v2226 = vpop.f32.mrb[0].mxu0
      %2227 = vmatprep.mubr.bf16.mxu0 0
      %2228 = vmatmul.mubr.bf16.gmra.mrb[0].mxu0 %v2138
      %v2229 = vpop.f32.mrb[0].mxu0
      %v2230 = vadd.f32 %v2107, %v2229
      %v2231 = vpop.f32.mrb[0].mxu0
      %v2232 = vpop.f32.mrb[0].mxu0
      %v2233 = vadd.f32 %v2107, %v2232
      %v2234 = vpop.f32.mrb[0].mxu0
      %2235 = vmatprep.mubr.bf16.mxu0 0
      %2236 = vmatmul.mubr.bf16.gmra.mrb[0].mxu0 %v2141
      %v2237 = vpop.f32.mrb[0].mxu0
      %v2238 = vadd.f32 %v2107, %v2237
      %v2239 = vpop.f32.mrb[0].mxu0
      %v2240 = vpop.f32.mrb[0].mxu0
      %v2241 = vadd.f32 %v2107, %v2240
      %v2242 = vpop.f32.mrb[0].mxu0
      %2243 = vdwg.mxu0
      %s2244 = smul.u32 0, 16
      %s2245 = scalar_lea.vmem %s273, %s2244
      %v2246 = vld [vmem:[%s2245] sm:$0xff]
      %v2247 = vld [vmem:[%s2245 + $0x8] sm:$0xff]
      %v2248 = vld [vmem:[%s2245 + $0x10] sm:$0xff]
      %v2249 = vld [vmem:[%s2245 + $0x18] sm:$0xff]
      %v2250 = vld [vmem:[%s2245 + $0x20] sm:$0xff]
      %v2251 = vld [vmem:[%s2245 + $0x28] sm:$0xff]
      %v2252 = vld [vmem:[%s2245 + $0x30] sm:$0xff]
      %v2253 = vld [vmem:[%s2245 + $0x38] sm:$0xff]
      %v2254 = vld [vmem:[%s2245 + $0x40] sm:$0xff]
      %v2255 = vld [vmem:[%s2245 + $0x48] sm:$0xff]
      %v2256 = vld [vmem:[%s2245 + $0x50] sm:$0xff]
      %v2257 = vld [vmem:[%s2245 + $0x58] sm:$0xff]
      %v2258 = vld [vmem:[%s2245 + $0x60] sm:$0xff]
      %v2259 = vld [vmem:[%s2245 + $0x68] sm:$0xff]
      %v2260 = vld [vmem:[%s2245 + $0x70] sm:$0xff]
      %v2261 = vld [vmem:[%s2245 + $0x78] sm:$0xff]
      %v2262 = vadd.f32 %v2182, %v2246
      %v2263 = vadd.f32 %v2185, %v2247
      %v2264 = vadd.f32 %v2190, %v2248
      %v2265 = vadd.f32 %v2193, %v2249
      %v2266 = vadd.f32 %v2198, %v2250
      %v2267 = vadd.f32 %v2201, %v2251
      %v2268 = vadd.f32 %v2206, %v2252
      %v2269 = vadd.f32 %v2209, %v2253
      %v2270 = vadd.f32 %v2214, %v2254
      %v2271 = vadd.f32 %v2217, %v2255
      %v2272 = vadd.f32 %v2222, %v2256
      %v2273 = vadd.f32 %v2225, %v2257
      %v2274 = vadd.f32 %v2230, %v2258
      %v2275 = vadd.f32 %v2233, %v2259
      %v2276 = vadd.f32 %v2238, %v2260
      %v2277 = vadd.f32 %v2241, %v2261
      %s2278 = scalar_lea.vmem %s278, %s2244
      %2279 = vst.msk [vmem:[%s2278] sm:$0xff] %vm402, %v2262
      %2280 = vst.msk [vmem:[%s2278 + $0x8] sm:$0xff] %vm402, %v2263
      %2281 = vst.msk [vmem:[%s2278 + $0x10] sm:$0xff] %vm402, %v2264
      %2282 = vst.msk [vmem:[%s2278 + $0x18] sm:$0xff] %vm402, %v2265
      %2283 = vst.msk [vmem:[%s2278 + $0x20] sm:$0xff] %vm402, %v2266
      %2284 = vst.msk [vmem:[%s2278 + $0x28] sm:$0xff] %vm402, %v2267
      %2285 = vst.msk [vmem:[%s2278 + $0x30] sm:$0xff] %vm402, %v2268
      %2286 = vst.msk [vmem:[%s2278 + $0x38] sm:$0xff] %vm402, %v2269
      %2287 = vst.msk [vmem:[%s2278 + $0x40] sm:$0xff] %vm402, %v2270
      %2288 = vst.msk [vmem:[%s2278 + $0x48] sm:$0xff] %vm402, %v2271
      %2289 = vst.msk [vmem:[%s2278 + $0x50] sm:$0xff] %vm402, %v2272
      %2290 = vst.msk [vmem:[%s2278 + $0x58] sm:$0xff] %vm402, %v2273
      %2291 = vst.msk [vmem:[%s2278 + $0x60] sm:$0xff] %vm402, %v2274
      %2292 = vst.msk [vmem:[%s2278 + $0x68] sm:$0xff] %vm402, %v2275
      %2293 = vst.msk [vmem:[%s2278 + $0x70] sm:$0xff] %vm402, %v2276
      %2294 = vst.msk [vmem:[%s2278 + $0x78] sm:$0xff] %vm402, %v2277
      %s2295 = smul.u32 8, 5
      %s2296 = smul.addr %s2295, 4
      %s2297 = scalar_lea.vmem [#allocation2], %s2296
      %v2298 = vld [vmem:[%s2297 + $0x4] sm:$0x8]
      %v2299 = vld [vmem:[%s2297 + $0x8] sm:$0xf]
      %v2300 = vld [vmem:[%s2297 + $0xc] sm:$0xf]
      %v2301 = vld [vmem:[%s2297 + $0x18] sm:$0x8]
      %v2302 = vld [vmem:[%s2297 + $0x1c] sm:$0xf]
      %v2303 = vld [vmem:[%s2297 + $0x20] sm:$0xf]
      %v2304 = vld [vmem:[%s2297 + $0x2c] sm:$0x8]
      %v2305 = vld [vmem:[%s2297 + $0x30] sm:$0xf]
      %v2306 = vld [vmem:[%s2297 + $0x34] sm:$0xf]
      %v2307 = vld [vmem:[%s2297 + $0x40] sm:$0x8]
      %v2308 = vld [vmem:[%s2297 + $0x44] sm:$0xf]
      %v2309 = vld [vmem:[%s2297 + $0x48] sm:$0xf]
      %v2310 = vld [vmem:[%s2297 + $0x54] sm:$0x8]
      %v2311 = vld [vmem:[%s2297 + $0x58] sm:$0xf]
      %v2312 = vld [vmem:[%s2297 + $0x5c] sm:$0xf]
      %v2313 = vld [vmem:[%s2297 + $0x68] sm:$0x8]
      %v2314 = vld [vmem:[%s2297 + $0x6c] sm:$0xf]
      %v2315 = vld [vmem:[%s2297 + $0x70] sm:$0xf]
      %v2316 = vld [vmem:[%s2297 + $0x7c] sm:$0x8]
      %v2317 = vld [vmem:[%s2297 + $0x80] sm:$0xf]
      %v2318 = vld [vmem:[%s2297 + $0x84] sm:$0xf]
      %v2319 = vld [vmem:[%s2297 + $0x90] sm:$0x8]
      %v2320 = vld [vmem:[%s2297 + $0x94] sm:$0xf]
      %v2321 = vld [vmem:[%s2297 + $0x98] sm:$0xf]
      %v2322 = vunpack.c.l.bf16 %v2298
      %v2323 = vunpack.c.l.bf16 %v2299
      %v2324 = vunpack.c.l.bf16 %v2300
      %v2325 = vunpack.c.l.bf16 %v2301
      %v2326 = vunpack.c.l.bf16 %v2302
      %v2327 = vunpack.c.l.bf16 %v2303
      %v2328 = vunpack.c.l.bf16 %v2304
      %v2329 = vunpack.c.l.bf16 %v2305
      %v2330 = vunpack.c.l.bf16 %v2306
      %v2331 = vunpack.c.l.bf16 %v2307
      %v2332 = vunpack.c.l.bf16 %v2308
      %v2333 = vunpack.c.l.bf16 %v2309
      %v2334 = vunpack.c.l.bf16 %v2310
      %v2335 = vunpack.c.l.bf16 %v2311
      %v2336 = vunpack.c.l.bf16 %v2312
      %v2337 = vunpack.c.l.bf16 %v2313
      %v2338 = vunpack.c.l.bf16 %v2314
      %v2339 = vunpack.c.l.bf16 %v2315
      %v2340 = vunpack.c.l.bf16 %v2316
      %v2341 = vunpack.c.l.bf16 %v2317
      %v2342 = vunpack.c.l.bf16 %v2318
      %v2343 = vunpack.c.l.bf16 %v2319
      %v2344 = vunpack.c.l.bf16 %v2320
      %v2345 = vunpack.c.l.bf16 %v2321
      %v2346 = vmul.f32 %v2322, %v909
      %v2347 = vmul.f32 %v2323, %v909
      %v2348 = vmul.f32 %v2324, %v909
      %v2349 = vmul.f32 %v2325, %v909
      %v2350 = vmul.f32 %v2326, %v909
      %v2351 = vmul.f32 %v2327, %v909
      %v2352 = vmul.f32 %v2328, %v909
      %v2353 = vmul.f32 %v2329, %v909
      %v2354 = vmul.f32 %v2330, %v909
      %v2355 = vmul.f32 %v2331, %v909
      %v2356 = vmul.f32 %v2332, %v909
      %v2357 = vmul.f32 %v2333, %v909
      %v2358 = vmul.f32 %v2334, %v909
      %v2359 = vmul.f32 %v2335, %v909
      %v2360 = vmul.f32 %v2336, %v909
      %v2361 = vmul.f32 %v2337, %v909
      %v2362 = vmul.f32 %v2338, %v909
      %v2363 = vmul.f32 %v2339, %v909
      %v2364 = vmul.f32 %v2340, %v909
      %v2365 = vmul.f32 %v2341, %v909
      %v2366 = vmul.f32 %v2342, %v909
      %v2367 = vmul.f32 %v2343, %v909
      %v2368 = vmul.f32 %v2344, %v909
      %v2369 = vmul.f32 %v2345, %v909
      %v2370 = vmul.f32 %v2323, %v937
      %v2371 = vmul.f32 %v2324, %v937
      %v2372 = vmul.f32 %v2326, %v937
      %v2373 = vmul.f32 %v2327, %v937
      %v2374 = vmul.f32 %v2329, %v937
      %v2375 = vmul.f32 %v2330, %v937
      %v2376 = vmul.f32 %v2332, %v937
      %v2377 = vmul.f32 %v2333, %v937
      %v2378 = vmul.f32 %v2335, %v937
      %v2379 = vmul.f32 %v2336, %v937
      %v2380 = vmul.f32 %v2338, %v937
      %v2381 = vmul.f32 %v2339, %v937
      %v2382 = vmul.f32 %v2341, %v937
      %v2383 = vmul.f32 %v2342, %v937
      %v2384 = vmul.f32 %v2344, %v937
      %v2385 = vmul.f32 %v2345, %v937
      %v2402 = vrot.slane %v2370, 1
      %v2403 = vrot.slane %v2371, 1
      %v2404 = vsel %vm970, %v2402, %v2403
      %v2405 = vrot.slane %v2372, 1
      %v2406 = vrot.slane %v2373, 1
      %v2407 = vsel %vm970, %v2405, %v2406
      %v2408 = vrot.slane %v2374, 1
      %v2409 = vrot.slane %v2375, 1
      %v2410 = vsel %vm970, %v2408, %v2409
      %v2411 = vrot.slane %v2376, 1
      %v2412 = vrot.slane %v2377, 1
      %v2413 = vsel %vm970, %v2411, %v2412
      %v2414 = vrot.slane %v2378, 1
      %v2415 = vrot.slane %v2379, 1
      %v2416 = vsel %vm970, %v2414, %v2415
      %v2417 = vrot.slane %v2380, 1
      %v2418 = vrot.slane %v2381, 1
      %v2419 = vsel %vm970, %v2417, %v2418
      %v2420 = vrot.slane %v2382, 1
      %v2421 = vrot.slane %v2383, 1
      %v2422 = vsel %vm970, %v2420, %v2421
      %v2423 = vrot.slane %v2384, 1
      %v2424 = vrot.slane %v2385, 1
      %v2425 = vsel %vm970, %v2423, %v2424
      %v2450 = vadd.f32 %v2346, %v2402
      %v2451 = vadd.f32 %v2347, %v2404
      %v2452 = vadd.f32 %v2348, %v2403
      %v2453 = vadd.f32 %v2349, %v2405
      %v2454 = vadd.f32 %v2350, %v2407
      %v2455 = vadd.f32 %v2351, %v2406
      %v2456 = vadd.f32 %v2352, %v2408
      %v2457 = vadd.f32 %v2353, %v2410
      %v2458 = vadd.f32 %v2354, %v2409
      %v2459 = vadd.f32 %v2355, %v2411
      %v2460 = vadd.f32 %v2356, %v2413
      %v2461 = vadd.f32 %v2357, %v2412
      %v2462 = vadd.f32 %v2358, %v2414
      %v2463 = vadd.f32 %v2359, %v2416
      %v2464 = vadd.f32 %v2360, %v2415
      %v2465 = vadd.f32 %v2361, %v2417
      %v2466 = vadd.f32 %v2362, %v2419
      %v2467 = vadd.f32 %v2363, %v2418
      %v2468 = vadd.f32 %v2364, %v2420
      %v2469 = vadd.f32 %v2365, %v2422
      %v2470 = vadd.f32 %v2366, %v2421
      %v2471 = vadd.f32 %v2367, %v2423
      %v2472 = vadd.f32 %v2368, %v2425
      %v2473 = vadd.f32 %v2369, %v2424
      %v2474 = vld [vmem:[%s2297 + $0x10] sm:$0x1]
      %v2475 = vld [vmem:[%s2297 + $0x24] sm:$0x1]
      %v2476 = vld [vmem:[%s2297 + $0x38] sm:$0x1]
      %v2477 = vld [vmem:[%s2297 + $0x4c] sm:$0x1]
      %v2478 = vld [vmem:[%s2297 + $0x60] sm:$0x1]
      %v2479 = vld [vmem:[%s2297 + $0x74] sm:$0x1]
      %v2480 = vld [vmem:[%s2297 + $0x88] sm:$0x1]
      %v2481 = vld [vmem:[%s2297 + $0x9c] sm:$0x1]
      %v2482 = vunpack.c.l.bf16 %v2474
      %v2483 = vunpack.c.l.bf16 %v2475
      %v2484 = vunpack.c.l.bf16 %v2476
      %v2485 = vunpack.c.l.bf16 %v2477
      %v2486 = vunpack.c.l.bf16 %v2478
      %v2487 = vunpack.c.l.bf16 %v2479
      %v2488 = vunpack.c.l.bf16 %v2480
      %v2489 = vunpack.c.l.bf16 %v2481
      %v2490 = vmul.f32 %v2323, %v1062
      %v2491 = vmul.f32 %v2324, %v1062
      %v2492 = vmul.f32 %v2482, %v1062
      %v2493 = vmul.f32 %v2326, %v1062
      %v2494 = vmul.f32 %v2327, %v1062
      %v2495 = vmul.f32 %v2483, %v1062
      %v2496 = vmul.f32 %v2329, %v1062
      %v2497 = vmul.f32 %v2330, %v1062
      %v2498 = vmul.f32 %v2484, %v1062
      %v2499 = vmul.f32 %v2332, %v1062
      %v2500 = vmul.f32 %v2333, %v1062
      %v2501 = vmul.f32 %v2485, %v1062
      %v2502 = vmul.f32 %v2335, %v1062
      %v2503 = vmul.f32 %v2336, %v1062
      %v2504 = vmul.f32 %v2486, %v1062
      %v2505 = vmul.f32 %v2338, %v1062
      %v2506 = vmul.f32 %v2339, %v1062
      %v2507 = vmul.f32 %v2487, %v1062
      %v2508 = vmul.f32 %v2341, %v1062
      %v2509 = vmul.f32 %v2342, %v1062
      %v2510 = vmul.f32 %v2488, %v1062
      %v2511 = vmul.f32 %v2344, %v1062
      %v2512 = vmul.f32 %v2345, %v1062
      %v2513 = vmul.f32 %v2489, %v1062
      %v2538 = vrot.slane %v2490, 2
      %v2539 = vrot.slane %v2491, 2
      %v2540 = vsel %vm1111, %v2538, %v2539
      %v2541 = vrot.slane %v2492, 2
      %v2542 = vsel %vm1111, %v2539, %v2541
      %v2543 = vrot.slane %v2493, 2
      %v2544 = vrot.slane %v2494, 2
      %v2545 = vsel %vm1111, %v2543, %v2544
      %v2546 = vrot.slane %v2495, 2
      %v2547 = vsel %vm1111, %v2544, %v2546
      %v2548 = vrot.slane %v2496, 2
      %v2549 = vrot.slane %v2497, 2
      %v2550 = vsel %vm1111, %v2548, %v2549
      %v2551 = vrot.slane %v2498, 2
      %v2552 = vsel %vm1111, %v2549, %v2551
      %v2553 = vrot.slane %v2499, 2
      %v2554 = vrot.slane %v2500, 2
      %v2555 = vsel %vm1111, %v2553, %v2554
      %v2556 = vrot.slane %v2501, 2
      %v2557 = vsel %vm1111, %v2554, %v2556
      %v2558 = vrot.slane %v2502, 2
      %v2559 = vrot.slane %v2503, 2
      %v2560 = vsel %vm1111, %v2558, %v2559
      %v2561 = vrot.slane %v2504, 2
      %v2562 = vsel %vm1111, %v2559, %v2561
      %v2563 = vrot.slane %v2505, 2
      %v2564 = vrot.slane %v2506, 2
      %v2565 = vsel %vm1111, %v2563, %v2564
      %v2566 = vrot.slane %v2507, 2
      %v2567 = vsel %vm1111, %v2564, %v2566
      %v2568 = vrot.slane %v2508, 2
      %v2569 = vrot.slane %v2509, 2
      %v2570 = vsel %vm1111, %v2568, %v2569
      %v2571 = vrot.slane %v2510, 2
      %v2572 = vsel %vm1111, %v2569, %v2571
      %v2573 = vrot.slane %v2511, 2
      %v2574 = vrot.slane %v2512, 2
      %v2575 = vsel %vm1111, %v2573, %v2574
      %v2576 = vrot.slane %v2513, 2
      %v2577 = vsel %vm1111, %v2574, %v2576
      %v2602 = vadd.f32 %v2450, %v2538
      %v2603 = vadd.f32 %v2451, %v2540
      %v2604 = vadd.f32 %v2452, %v2542
      %v2605 = vadd.f32 %v2453, %v2543
      %v2606 = vadd.f32 %v2454, %v2545
      %v2607 = vadd.f32 %v2455, %v2547
      %v2608 = vadd.f32 %v2456, %v2548
      %v2609 = vadd.f32 %v2457, %v2550
      %v2610 = vadd.f32 %v2458, %v2552
      %v2611 = vadd.f32 %v2459, %v2553
      %v2612 = vadd.f32 %v2460, %v2555
      %v2613 = vadd.f32 %v2461, %v2557
      %v2614 = vadd.f32 %v2462, %v2558
      %v2615 = vadd.f32 %v2463, %v2560
      %v2616 = vadd.f32 %v2464, %v2562
      %v2617 = vadd.f32 %v2465, %v2563
      %v2618 = vadd.f32 %v2466, %v2565
      %v2619 = vadd.f32 %v2467, %v2567
      %v2620 = vadd.f32 %v2468, %v2568
      %v2621 = vadd.f32 %v2469, %v2570
      %v2622 = vadd.f32 %v2470, %v2572
      %v2623 = vadd.f32 %v2471, %v2573
      %v2624 = vadd.f32 %v2472, %v2575
      %v2625 = vadd.f32 %v2473, %v2577
      %s2626 = sadd.s32 8, 1
      %s2627 = smul.u32 %s2626, 5
      %s2628 = smul.addr %s2627, 4
      %s2629 = scalar_lea.vmem [#allocation2], %s2628
      %v2630 = vld [vmem:[%s2629 + $0x4] sm:$0x8]
      %v2631 = vld [vmem:[%s2629 + $0x8] sm:$0xf]
      %v2632 = vld [vmem:[%s2629 + $0xc] sm:$0xf]
      %v2633 = vld [vmem:[%s2629 + $0x18] sm:$0x8]
      %v2634 = vld [vmem:[%s2629 + $0x1c] sm:$0xf]
      %v2635 = vld [vmem:[%s2629 + $0x20] sm:$0xf]
      %v2636 = vld [vmem:[%s2629 + $0x2c] sm:$0x8]
      %v2637 = vld [vmem:[%s2629 + $0x30] sm:$0xf]
      %v2638 = vld [vmem:[%s2629 + $0x34] sm:$0xf]
      %v2639 = vld [vmem:[%s2629 + $0x40] sm:$0x8]
      %v2640 = vld [vmem:[%s2629 + $0x44] sm:$0xf]
      %v2641 = vld [vmem:[%s2629 + $0x48] sm:$0xf]
      %v2642 = vld [vmem:[%s2629 + $0x54] sm:$0x8]
      %v2643 = vld [vmem:[%s2629 + $0x58] sm:$0xf]
      %v2644 = vld [vmem:[%s2629 + $0x5c] sm:$0xf]
      %v2645 = vld [vmem:[%s2629 + $0x68] sm:$0x8]
      %v2646 = vld [vmem:[%s2629 + $0x6c] sm:$0xf]
      %v2647 = vld [vmem:[%s2629 + $0x70] sm:$0xf]
      %v2648 = vld [vmem:[%s2629 + $0x7c] sm:$0x8]
      %v2649 = vld [vmem:[%s2629 + $0x80] sm:$0xf]
      %v2650 = vld [vmem:[%s2629 + $0x84] sm:$0xf]
      %v2651 = vld [vmem:[%s2629 + $0x90] sm:$0x8]
      %v2652 = vld [vmem:[%s2629 + $0x94] sm:$0xf]
      %v2653 = vld [vmem:[%s2629 + $0x98] sm:$0xf]
      %v2654 = vunpack.c.l.bf16 %v2630
      %v2655 = vunpack.c.l.bf16 %v2631
      %v2656 = vunpack.c.l.bf16 %v2632
      %v2657 = vunpack.c.l.bf16 %v2633
      %v2658 = vunpack.c.l.bf16 %v2634
      %v2659 = vunpack.c.l.bf16 %v2635
      %v2660 = vunpack.c.l.bf16 %v2636
      %v2661 = vunpack.c.l.bf16 %v2637
      %v2662 = vunpack.c.l.bf16 %v2638
      %v2663 = vunpack.c.l.bf16 %v2639
      %v2664 = vunpack.c.l.bf16 %v2640
      %v2665 = vunpack.c.l.bf16 %v2641
      %v2666 = vunpack.c.l.bf16 %v2642
      %v2667 = vunpack.c.l.bf16 %v2643
      %v2668 = vunpack.c.l.bf16 %v2644
      %v2669 = vunpack.c.l.bf16 %v2645
      %v2670 = vunpack.c.l.bf16 %v2646
      %v2671 = vunpack.c.l.bf16 %v2647
      %v2672 = vunpack.c.l.bf16 %v2648
      %v2673 = vunpack.c.l.bf16 %v2649
      %v2674 = vunpack.c.l.bf16 %v2650
      %v2675 = vunpack.c.l.bf16 %v2651
      %v2676 = vunpack.c.l.bf16 %v2652
      %v2677 = vunpack.c.l.bf16 %v2653
      %v2678 = vmul.f32 %v2654, %v1255
      %v2679 = vmul.f32 %v2655, %v1255
      %v2680 = vmul.f32 %v2656, %v1255
      %v2681 = vmul.f32 %v2657, %v1255
      %v2682 = vmul.f32 %v2658, %v1255
      %v2683 = vmul.f32 %v2659, %v1255
      %v2684 = vmul.f32 %v2660, %v1255
      %v2685 = vmul.f32 %v2661, %v1255
      %v2686 = vmul.f32 %v2662, %v1255
      %v2687 = vmul.f32 %v2663, %v1255
      %v2688 = vmul.f32 %v2664, %v1255
      %v2689 = vmul.f32 %v2665, %v1255
      %v2690 = vmul.f32 %v2666, %v1255
      %v2691 = vmul.f32 %v2667, %v1255
      %v2692 = vmul.f32 %v2668, %v1255
      %v2693 = vmul.f32 %v2669, %v1255
      %v2694 = vmul.f32 %v2670, %v1255
      %v2695 = vmul.f32 %v2671, %v1255
      %v2696 = vmul.f32 %v2672, %v1255
      %v2697 = vmul.f32 %v2673, %v1255
      %v2698 = vmul.f32 %v2674, %v1255
      %v2699 = vmul.f32 %v2675, %v1255
      %v2700 = vmul.f32 %v2676, %v1255
      %v2701 = vmul.f32 %v2677, %v1255
      %v2702 = vadd.f32 %v2602, %v2678
      %v2703 = vadd.f32 %v2603, %v2679
      %v2704 = vadd.f32 %v2604, %v2680
      %v2705 = vadd.f32 %v2605, %v2681
      %v2706 = vadd.f32 %v2606, %v2682
      %v2707 = vadd.f32 %v2607, %v2683
      %v2708 = vadd.f32 %v2608, %v2684
      %v2709 = vadd.f32 %v2609, %v2685
      %v2710 = vadd.f32 %v2610, %v2686
      %v2711 = vadd.f32 %v2611, %v2687
      %v2712 = vadd.f32 %v2612, %v2688
      %v2713 = vadd.f32 %v2613, %v2689
      %v2714 = vadd.f32 %v2614, %v2690
      %v2715 = vadd.f32 %v2615, %v2691
      %v2716 = vadd.f32 %v2616, %v2692
      %v2717 = vadd.f32 %v2617, %v2693
      %v2718 = vadd.f32 %v2618, %v2694
      %v2719 = vadd.f32 %v2619, %v2695
      %v2720 = vadd.f32 %v2620, %v2696
      %v2721 = vadd.f32 %v2621, %v2697
      %v2722 = vadd.f32 %v2622, %v2698
      %v2723 = vadd.f32 %v2623, %v2699
      %v2724 = vadd.f32 %v2624, %v2700
      %v2725 = vadd.f32 %v2625, %v2701
      %v2726 = vmul.f32 %v2655, %v1307
      %v2727 = vmul.f32 %v2656, %v1307
      %v2728 = vmul.f32 %v2658, %v1307
      %v2729 = vmul.f32 %v2659, %v1307
      %v2730 = vmul.f32 %v2661, %v1307
      %v2731 = vmul.f32 %v2662, %v1307
      %v2732 = vmul.f32 %v2664, %v1307
      %v2733 = vmul.f32 %v2665, %v1307
      %v2734 = vmul.f32 %v2667, %v1307
      %v2735 = vmul.f32 %v2668, %v1307
      %v2736 = vmul.f32 %v2670, %v1307
      %v2737 = vmul.f32 %v2671, %v1307
      %v2738 = vmul.f32 %v2673, %v1307
      %v2739 = vmul.f32 %v2674, %v1307
      %v2740 = vmul.f32 %v2676, %v1307
      %v2741 = vmul.f32 %v2677, %v1307
      %v2758 = vrot.slane %v2726, 1
      %v2759 = vrot.slane %v2727, 1
      %v2760 = vsel %vm970, %v2758, %v2759
      %v2761 = vrot.slane %v2728, 1
      %v2762 = vrot.slane %v2729, 1
      %v2763 = vsel %vm970, %v2761, %v2762
      %v2764 = vrot.slane %v2730, 1
      %v2765 = vrot.slane %v2731, 1
      %v2766 = vsel %vm970, %v2764, %v2765
      %v2767 = vrot.slane %v2732, 1
      %v2768 = vrot.slane %v2733, 1
      %v2769 = vsel %vm970, %v2767, %v2768
      %v2770 = vrot.slane %v2734, 1
      %v2771 = vrot.slane %v2735, 1
      %v2772 = vsel %vm970, %v2770, %v2771
      %v2773 = vrot.slane %v2736, 1
      %v2774 = vrot.slane %v2737, 1
      %v2775 = vsel %vm970, %v2773, %v2774
      %v2776 = vrot.slane %v2738, 1
      %v2777 = vrot.slane %v2739, 1
      %v2778 = vsel %vm970, %v2776, %v2777
      %v2779 = vrot.slane %v2740, 1
      %v2780 = vrot.slane %v2741, 1
      %v2781 = vsel %vm970, %v2779, %v2780
      %v2806 = vadd.f32 %v2702, %v2758
      %v2807 = vadd.f32 %v2703, %v2760
      %v2808 = vadd.f32 %v2704, %v2759
      %v2809 = vadd.f32 %v2705, %v2761
      %v2810 = vadd.f32 %v2706, %v2763
      %v2811 = vadd.f32 %v2707, %v2762
      %v2812 = vadd.f32 %v2708, %v2764
      %v2813 = vadd.f32 %v2709, %v2766
      %v2814 = vadd.f32 %v2710, %v2765
      %v2815 = vadd.f32 %v2711, %v2767
      %v2816 = vadd.f32 %v2712, %v2769
      %v2817 = vadd.f32 %v2713, %v2768
      %v2818 = vadd.f32 %v2714, %v2770
      %v2819 = vadd.f32 %v2715, %v2772
      %v2820 = vadd.f32 %v2716, %v2771
      %v2821 = vadd.f32 %v2717, %v2773
      %v2822 = vadd.f32 %v2718, %v2775
      %v2823 = vadd.f32 %v2719, %v2774
      %v2824 = vadd.f32 %v2720, %v2776
      %v2825 = vadd.f32 %v2721, %v2778
      %v2826 = vadd.f32 %v2722, %v2777
      %v2827 = vadd.f32 %v2723, %v2779
      %v2828 = vadd.f32 %v2724, %v2781
      %v2829 = vadd.f32 %v2725, %v2780
      %v2830 = vld [vmem:[%s2629 + $0x10] sm:$0x1]
      %v2831 = vld [vmem:[%s2629 + $0x24] sm:$0x1]
      %v2832 = vld [vmem:[%s2629 + $0x38] sm:$0x1]
      %v2833 = vld [vmem:[%s2629 + $0x4c] sm:$0x1]
      %v2834 = vld [vmem:[%s2629 + $0x60] sm:$0x1]
      %v2835 = vld [vmem:[%s2629 + $0x74] sm:$0x1]
      %v2836 = vld [vmem:[%s2629 + $0x88] sm:$0x1]
      %v2837 = vld [vmem:[%s2629 + $0x9c] sm:$0x1]
      %v2838 = vunpack.c.l.bf16 %v2830
      %v2839 = vunpack.c.l.bf16 %v2831
      %v2840 = vunpack.c.l.bf16 %v2832
      %v2841 = vunpack.c.l.bf16 %v2833
      %v2842 = vunpack.c.l.bf16 %v2834
      %v2843 = vunpack.c.l.bf16 %v2835
      %v2844 = vunpack.c.l.bf16 %v2836
      %v2845 = vunpack.c.l.bf16 %v2837
      %v2846 = vmul.f32 %v2655, %v1431
      %v2847 = vmul.f32 %v2656, %v1431
      %v2848 = vmul.f32 %v2838, %v1431
      %v2849 = vmul.f32 %v2658, %v1431
      %v2850 = vmul.f32 %v2659, %v1431
      %v2851 = vmul.f32 %v2839, %v1431
      %v2852 = vmul.f32 %v2661, %v1431
      %v2853 = vmul.f32 %v2662, %v1431
      %v2854 = vmul.f32 %v2840, %v1431
      %v2855 = vmul.f32 %v2664, %v1431
      %v2856 = vmul.f32 %v2665, %v1431
      %v2857 = vmul.f32 %v2841, %v1431
      %v2858 = vmul.f32 %v2667, %v1431
      %v2859 = vmul.f32 %v2668, %v1431
      %v2860 = vmul.f32 %v2842, %v1431
      %v2861 = vmul.f32 %v2670, %v1431
      %v2862 = vmul.f32 %v2671, %v1431
      %v2863 = vmul.f32 %v2843, %v1431
      %v2864 = vmul.f32 %v2673, %v1431
      %v2865 = vmul.f32 %v2674, %v1431
      %v2866 = vmul.f32 %v2844, %v1431
      %v2867 = vmul.f32 %v2676, %v1431
      %v2868 = vmul.f32 %v2677, %v1431
      %v2869 = vmul.f32 %v2845, %v1431
      %v2894 = vrot.slane %v2846, 2
      %v2895 = vrot.slane %v2847, 2
      %v2896 = vsel %vm1111, %v2894, %v2895
      %v2897 = vrot.slane %v2848, 2
      %v2898 = vsel %vm1111, %v2895, %v2897
      %v2899 = vrot.slane %v2849, 2
      %v2900 = vrot.slane %v2850, 2
      %v2901 = vsel %vm1111, %v2899, %v2900
      %v2902 = vrot.slane %v2851, 2
      %v2903 = vsel %vm1111, %v2900, %v2902
      %v2904 = vrot.slane %v2852, 2
      %v2905 = vrot.slane %v2853, 2
      %v2906 = vsel %vm1111, %v2904, %v2905
      %v2907 = vrot.slane %v2854, 2
      %v2908 = vsel %vm1111, %v2905, %v2907
      %v2909 = vrot.slane %v2855, 2
      %v2910 = vrot.slane %v2856, 2
      %v2911 = vsel %vm1111, %v2909, %v2910
      %v2912 = vrot.slane %v2857, 2
      %v2913 = vsel %vm1111, %v2910, %v2912
      %v2914 = vrot.slane %v2858, 2
      %v2915 = vrot.slane %v2859, 2
      %v2916 = vsel %vm1111, %v2914, %v2915
      %v2917 = vrot.slane %v2860, 2
      %v2918 = vsel %vm1111, %v2915, %v2917
      %v2919 = vrot.slane %v2861, 2
      %v2920 = vrot.slane %v2862, 2
      %v2921 = vsel %vm1111, %v2919, %v2920
      %v2922 = vrot.slane %v2863, 2
      %v2923 = vsel %vm1111, %v2920, %v2922
      %v2924 = vrot.slane %v2864, 2
      %v2925 = vrot.slane %v2865, 2
      %v2926 = vsel %vm1111, %v2924, %v2925
      %v2927 = vrot.slane %v2866, 2
      %v2928 = vsel %vm1111, %v2925, %v2927
      %v2929 = vrot.slane %v2867, 2
      %v2930 = vrot.slane %v2868, 2
      %v2931 = vsel %vm1111, %v2929, %v2930
      %v2932 = vrot.slane %v2869, 2
      %v2933 = vsel %vm1111, %v2930, %v2932
      %v2958 = vadd.f32 %v2806, %v2894
      %v2959 = vadd.f32 %v2807, %v2896
      %v2960 = vadd.f32 %v2808, %v2898
      %v2961 = vadd.f32 %v2809, %v2899
      %v2962 = vadd.f32 %v2810, %v2901
      %v2963 = vadd.f32 %v2811, %v2903
      %v2964 = vadd.f32 %v2812, %v2904
      %v2965 = vadd.f32 %v2813, %v2906
      %v2966 = vadd.f32 %v2814, %v2908
      %v2967 = vadd.f32 %v2815, %v2909
      %v2968 = vadd.f32 %v2816, %v2911
      %v2969 = vadd.f32 %v2817, %v2913
      %v2970 = vadd.f32 %v2818, %v2914
      %v2971 = vadd.f32 %v2819, %v2916
      %v2972 = vadd.f32 %v2820, %v2918
      %v2973 = vadd.f32 %v2821, %v2919
      %v2974 = vadd.f32 %v2822, %v2921
      %v2975 = vadd.f32 %v2823, %v2923
      %v2976 = vadd.f32 %v2824, %v2924
      %v2977 = vadd.f32 %v2825, %v2926
      %v2978 = vadd.f32 %v2826, %v2928
      %v2979 = vadd.f32 %v2827, %v2929
      %v2980 = vadd.f32 %v2828, %v2931
      %v2981 = vadd.f32 %v2829, %v2933
      %s2982 = sadd.s32 8, 2
      %s2983 = smul.u32 %s2982, 5
      %s2984 = smul.addr %s2983, 4
      %s2985 = scalar_lea.vmem [#allocation2], %s2984
      %v2986 = vld [vmem:[%s2985 + $0x4] sm:$0x8]
      %v2987 = vld [vmem:[%s2985 + $0x8] sm:$0xf]
      %v2988 = vld [vmem:[%s2985 + $0xc] sm:$0xf]
      %v2989 = vld [vmem:[%s2985 + $0x18] sm:$0x8]
      %v2990 = vld [vmem:[%s2985 + $0x1c] sm:$0xf]
      %v2991 = vld [vmem:[%s2985 + $0x20] sm:$0xf]
      %v2992 = vld [vmem:[%s2985 + $0x2c] sm:$0x8]
      %v2993 = vld [vmem:[%s2985 + $0x30] sm:$0xf]
      %v2994 = vld [vmem:[%s2985 + $0x34] sm:$0xf]
      %v2995 = vld [vmem:[%s2985 + $0x40] sm:$0x8]
      %v2996 = vld [vmem:[%s2985 + $0x44] sm:$0xf]
      %v2997 = vld [vmem:[%s2985 + $0x48] sm:$0xf]
      %v2998 = vld [vmem:[%s2985 + $0x54] sm:$0x8]
      %v2999 = vld [vmem:[%s2985 + $0x58] sm:$0xf]
      %v3000 = vld [vmem:[%s2985 + $0x5c] sm:$0xf]
      %v3001 = vld [vmem:[%s2985 + $0x68] sm:$0x8]
      %v3002 = vld [vmem:[%s2985 + $0x6c] sm:$0xf]
      %v3003 = vld [vmem:[%s2985 + $0x70] sm:$0xf]
      %v3004 = vld [vmem:[%s2985 + $0x7c] sm:$0x8]
      %v3005 = vld [vmem:[%s2985 + $0x80] sm:$0xf]
      %v3006 = vld [vmem:[%s2985 + $0x84] sm:$0xf]
      %v3007 = vld [vmem:[%s2985 + $0x90] sm:$0x8]
      %v3008 = vld [vmem:[%s2985 + $0x94] sm:$0xf]
      %v3009 = vld [vmem:[%s2985 + $0x98] sm:$0xf]
      %v3010 = vunpack.c.l.bf16 %v2986
      %v3011 = vunpack.c.l.bf16 %v2987
      %v3012 = vunpack.c.l.bf16 %v2988
      %v3013 = vunpack.c.l.bf16 %v2989
      %v3014 = vunpack.c.l.bf16 %v2990
      %v3015 = vunpack.c.l.bf16 %v2991
      %v3016 = vunpack.c.l.bf16 %v2992
      %v3017 = vunpack.c.l.bf16 %v2993
      %v3018 = vunpack.c.l.bf16 %v2994
      %v3019 = vunpack.c.l.bf16 %v2995
      %v3020 = vunpack.c.l.bf16 %v2996
      %v3021 = vunpack.c.l.bf16 %v2997
      %v3022 = vunpack.c.l.bf16 %v2998
      %v3023 = vunpack.c.l.bf16 %v2999
      %v3024 = vunpack.c.l.bf16 %v3000
      %v3025 = vunpack.c.l.bf16 %v3001
      %v3026 = vunpack.c.l.bf16 %v3002
      %v3027 = vunpack.c.l.bf16 %v3003
      %v3028 = vunpack.c.l.bf16 %v3004
      %v3029 = vunpack.c.l.bf16 %v3005
      %v3030 = vunpack.c.l.bf16 %v3006
      %v3031 = vunpack.c.l.bf16 %v3007
      %v3032 = vunpack.c.l.bf16 %v3008
      %v3033 = vunpack.c.l.bf16 %v3009
      %v3034 = vmul.f32 %v3010, %v1623
      %v3035 = vmul.f32 %v3011, %v1623
      %v3036 = vmul.f32 %v3012, %v1623
      %v3037 = vmul.f32 %v3013, %v1623
      %v3038 = vmul.f32 %v3014, %v1623
      %v3039 = vmul.f32 %v3015, %v1623
      %v3040 = vmul.f32 %v3016, %v1623
      %v3041 = vmul.f32 %v3017, %v1623
      %v3042 = vmul.f32 %v3018, %v1623
      %v3043 = vmul.f32 %v3019, %v1623
      %v3044 = vmul.f32 %v3020, %v1623
      %v3045 = vmul.f32 %v3021, %v1623
      %v3046 = vmul.f32 %v3022, %v1623
      %v3047 = vmul.f32 %v3023, %v1623
      %v3048 = vmul.f32 %v3024, %v1623
      %v3049 = vmul.f32 %v3025, %v1623
      %v3050 = vmul.f32 %v3026, %v1623
      %v3051 = vmul.f32 %v3027, %v1623
      %v3052 = vmul.f32 %v3028, %v1623
      %v3053 = vmul.f32 %v3029, %v1623
      %v3054 = vmul.f32 %v3030, %v1623
      %v3055 = vmul.f32 %v3031, %v1623
      %v3056 = vmul.f32 %v3032, %v1623
      %v3057 = vmul.f32 %v3033, %v1623
      %v3058 = vadd.f32 %v2958, %v3034
      %v3059 = vadd.f32 %v2959, %v3035
      %v3060 = vadd.f32 %v2960, %v3036
      %v3061 = vadd.f32 %v2961, %v3037
      %v3062 = vadd.f32 %v2962, %v3038
      %v3063 = vadd.f32 %v2963, %v3039
      %v3064 = vadd.f32 %v2964, %v3040
      %v3065 = vadd.f32 %v2965, %v3041
      %v3066 = vadd.f32 %v2966, %v3042
      %v3067 = vadd.f32 %v2967, %v3043
      %v3068 = vadd.f32 %v2968, %v3044
      %v3069 = vadd.f32 %v2969, %v3045
      %v3070 = vadd.f32 %v2970, %v3046
      %v3071 = vadd.f32 %v2971, %v3047
      %v3072 = vadd.f32 %v2972, %v3048
      %v3073 = vadd.f32 %v2973, %v3049
      %v3074 = vadd.f32 %v2974, %v3050
      %v3075 = vadd.f32 %v2975, %v3051
      %v3076 = vadd.f32 %v2976, %v3052
      %v3077 = vadd.f32 %v2977, %v3053
      %v3078 = vadd.f32 %v2978, %v3054
      %v3079 = vadd.f32 %v2979, %v3055
      %v3080 = vadd.f32 %v2980, %v3056
      %v3081 = vadd.f32 %v2981, %v3057
      %v3082 = vmul.f32 %v3011, %v1675
      %v3083 = vmul.f32 %v3012, %v1675
      %v3084 = vmul.f32 %v3014, %v1675
      %v3085 = vmul.f32 %v3015, %v1675
      %v3086 = vmul.f32 %v3017, %v1675
      %v3087 = vmul.f32 %v3018, %v1675
      %v3088 = vmul.f32 %v3020, %v1675
      %v3089 = vmul.f32 %v3021, %v1675
      %v3090 = vmul.f32 %v3023, %v1675
      %v3091 = vmul.f32 %v3024, %v1675
      %v3092 = vmul.f32 %v3026, %v1675
      %v3093 = vmul.f32 %v3027, %v1675
      %v3094 = vmul.f32 %v3029, %v1675
      %v3095 = vmul.f32 %v3030, %v1675
      %v3096 = vmul.f32 %v3032, %v1675
      %v3097 = vmul.f32 %v3033, %v1675
      %v3114 = vrot.slane %v3082, 1
      %v3115 = vrot.slane %v3083, 1
      %v3116 = vsel %vm970, %v3114, %v3115
      %v3117 = vrot.slane %v3084, 1
      %v3118 = vrot.slane %v3085, 1
      %v3119 = vsel %vm970, %v3117, %v3118
      %v3120 = vrot.slane %v3086, 1
      %v3121 = vrot.slane %v3087, 1
      %v3122 = vsel %vm970, %v3120, %v3121
      %v3123 = vrot.slane %v3088, 1
      %v3124 = vrot.slane %v3089, 1
      %v3125 = vsel %vm970, %v3123, %v3124
      %v3126 = vrot.slane %v3090, 1
      %v3127 = vrot.slane %v3091, 1
      %v3128 = vsel %vm970, %v3126, %v3127
      %v3129 = vrot.slane %v3092, 1
      %v3130 = vrot.slane %v3093, 1
      %v3131 = vsel %vm970, %v3129, %v3130
      %v3132 = vrot.slane %v3094, 1
      %v3133 = vrot.slane %v3095, 1
      %v3134 = vsel %vm970, %v3132, %v3133
      %v3135 = vrot.slane %v3096, 1
      %v3136 = vrot.slane %v3097, 1
      %v3137 = vsel %vm970, %v3135, %v3136
      %v3162 = vadd.f32 %v3058, %v3114
      %v3163 = vadd.f32 %v3059, %v3116
      %v3164 = vadd.f32 %v3060, %v3115
      %v3165 = vadd.f32 %v3061, %v3117
      %v3166 = vadd.f32 %v3062, %v3119
      %v3167 = vadd.f32 %v3063, %v3118
      %v3168 = vadd.f32 %v3064, %v3120
      %v3169 = vadd.f32 %v3065, %v3122
      %v3170 = vadd.f32 %v3066, %v3121
      %v3171 = vadd.f32 %v3067, %v3123
      %v3172 = vadd.f32 %v3068, %v3125
      %v3173 = vadd.f32 %v3069, %v3124
      %v3174 = vadd.f32 %v3070, %v3126
      %v3175 = vadd.f32 %v3071, %v3128
      %v3176 = vadd.f32 %v3072, %v3127
      %v3177 = vadd.f32 %v3073, %v3129
      %v3178 = vadd.f32 %v3074, %v3131
      %v3179 = vadd.f32 %v3075, %v3130
      %v3180 = vadd.f32 %v3076, %v3132
      %v3181 = vadd.f32 %v3077, %v3134
      %v3182 = vadd.f32 %v3078, %v3133
      %v3183 = vadd.f32 %v3079, %v3135
      %v3184 = vadd.f32 %v3080, %v3137
      %v3185 = vadd.f32 %v3081, %v3136
      %v3186 = vld [vmem:[%s2985 + $0x10] sm:$0x1]
      %v3187 = vld [vmem:[%s2985 + $0x24] sm:$0x1]
      %v3188 = vld [vmem:[%s2985 + $0x38] sm:$0x1]
      %v3189 = vld [vmem:[%s2985 + $0x4c] sm:$0x1]
      %v3190 = vld [vmem:[%s2985 + $0x60] sm:$0x1]
      %v3191 = vld [vmem:[%s2985 + $0x74] sm:$0x1]
      %v3192 = vld [vmem:[%s2985 + $0x88] sm:$0x1]
      %v3193 = vld [vmem:[%s2985 + $0x9c] sm:$0x1]
      %v3194 = vunpack.c.l.bf16 %v3186
      %v3195 = vunpack.c.l.bf16 %v3187
      %v3196 = vunpack.c.l.bf16 %v3188
      %v3197 = vunpack.c.l.bf16 %v3189
      %v3198 = vunpack.c.l.bf16 %v3190
      %v3199 = vunpack.c.l.bf16 %v3191
      %v3200 = vunpack.c.l.bf16 %v3192
      %v3201 = vunpack.c.l.bf16 %v3193
      %v3202 = vmul.f32 %v3011, %v1799
      %v3203 = vmul.f32 %v3012, %v1799
      %v3204 = vmul.f32 %v3194, %v1799
      %v3205 = vmul.f32 %v3014, %v1799
      %v3206 = vmul.f32 %v3015, %v1799
      %v3207 = vmul.f32 %v3195, %v1799
      %v3208 = vmul.f32 %v3017, %v1799
      %v3209 = vmul.f32 %v3018, %v1799
      %v3210 = vmul.f32 %v3196, %v1799
      %v3211 = vmul.f32 %v3020, %v1799
      %v3212 = vmul.f32 %v3021, %v1799
      %v3213 = vmul.f32 %v3197, %v1799
      %v3214 = vmul.f32 %v3023, %v1799
      %v3215 = vmul.f32 %v3024, %v1799
      %v3216 = vmul.f32 %v3198, %v1799
      %v3217 = vmul.f32 %v3026, %v1799
      %v3218 = vmul.f32 %v3027, %v1799
      %v3219 = vmul.f32 %v3199, %v1799
      %v3220 = vmul.f32 %v3029, %v1799
      %v3221 = vmul.f32 %v3030, %v1799
      %v3222 = vmul.f32 %v3200, %v1799
      %v3223 = vmul.f32 %v3032, %v1799
      %v3224 = vmul.f32 %v3033, %v1799
      %v3225 = vmul.f32 %v3201, %v1799
      %v3250 = vrot.slane %v3202, 2
      %v3251 = vrot.slane %v3203, 2
      %v3252 = vsel %vm1111, %v3250, %v3251
      %v3253 = vrot.slane %v3204, 2
      %v3254 = vsel %vm1111, %v3251, %v3253
      %v3255 = vrot.slane %v3205, 2
      %v3256 = vrot.slane %v3206, 2
      %v3257 = vsel %vm1111, %v3255, %v3256
      %v3258 = vrot.slane %v3207, 2
      %v3259 = vsel %vm1111, %v3256, %v3258
      %v3260 = vrot.slane %v3208, 2
      %v3261 = vrot.slane %v3209, 2
      %v3262 = vsel %vm1111, %v3260, %v3261
      %v3263 = vrot.slane %v3210, 2
      %v3264 = vsel %vm1111, %v3261, %v3263
      %v3265 = vrot.slane %v3211, 2
      %v3266 = vrot.slane %v3212, 2
      %v3267 = vsel %vm1111, %v3265, %v3266
      %v3268 = vrot.slane %v3213, 2
      %v3269 = vsel %vm1111, %v3266, %v3268
      %v3270 = vrot.slane %v3214, 2
      %v3271 = vrot.slane %v3215, 2
      %v3272 = vsel %vm1111, %v3270, %v3271
      %v3273 = vrot.slane %v3216, 2
      %v3274 = vsel %vm1111, %v3271, %v3273
      %v3275 = vrot.slane %v3217, 2
      %v3276 = vrot.slane %v3218, 2
      %v3277 = vsel %vm1111, %v3275, %v3276
      %v3278 = vrot.slane %v3219, 2
      %v3279 = vsel %vm1111, %v3276, %v3278
      %v3280 = vrot.slane %v3220, 2
      %v3281 = vrot.slane %v3221, 2
      %v3282 = vsel %vm1111, %v3280, %v3281
      %v3283 = vrot.slane %v3222, 2
      %v3284 = vsel %vm1111, %v3281, %v3283
      %v3285 = vrot.slane %v3223, 2
      %v3286 = vrot.slane %v3224, 2
      %v3287 = vsel %vm1111, %v3285, %v3286
      %v3288 = vrot.slane %v3225, 2
      %v3289 = vsel %vm1111, %v3286, %v3288
      %v3314 = vadd.f32 %v3162, %v3250
      %v3315 = vadd.f32 %v3163, %v3252
      %v3316 = vadd.f32 %v3164, %v3254
      %v3317 = vadd.f32 %v3165, %v3255
      %v3318 = vadd.f32 %v3166, %v3257
      %v3319 = vadd.f32 %v3167, %v3259
      %v3320 = vadd.f32 %v3168, %v3260
      %v3321 = vadd.f32 %v3169, %v3262
      %v3322 = vadd.f32 %v3170, %v3264
      %v3323 = vadd.f32 %v3171, %v3265
      %v3324 = vadd.f32 %v3172, %v3267
      %v3325 = vadd.f32 %v3173, %v3269
      %v3326 = vadd.f32 %v3174, %v3270
      %v3327 = vadd.f32 %v3175, %v3272
      %v3328 = vadd.f32 %v3176, %v3274
      %v3329 = vadd.f32 %v3177, %v3275
      %v3330 = vadd.f32 %v3178, %v3277
      %v3331 = vadd.f32 %v3179, %v3279
      %v3332 = vadd.f32 %v3180, %v3280
      %v3333 = vadd.f32 %v3181, %v3282
      %v3334 = vadd.f32 %v3182, %v3284
      %v3335 = vadd.f32 %v3183, %v3285
      %v3336 = vadd.f32 %v3184, %v3287
      %v3337 = vadd.f32 %v3185, %v3289
      %v3338 = vadd.f32 %v3314, %v1940
      %v3339 = vadd.f32 %v3315, %v1940
      %v3340 = vadd.f32 %v3316, %v1940
      %v3341 = vadd.f32 %v3317, %v1940
      %v3342 = vadd.f32 %v3318, %v1940
      %v3343 = vadd.f32 %v3319, %v1940
      %v3344 = vadd.f32 %v3320, %v1940
      %v3345 = vadd.f32 %v3321, %v1940
      %v3346 = vadd.f32 %v3322, %v1940
      %v3347 = vadd.f32 %v3323, %v1940
      %v3348 = vadd.f32 %v3324, %v1940
      %v3349 = vadd.f32 %v3325, %v1940
      %v3350 = vadd.f32 %v3326, %v1940
      %v3351 = vadd.f32 %v3327, %v1940
      %v3352 = vadd.f32 %v3328, %v1940
      %v3353 = vadd.f32 %v3329, %v1940
      %v3354 = vadd.f32 %v3330, %v1940
      %v3355 = vadd.f32 %v3331, %v1940
      %v3356 = vadd.f32 %v3332, %v1940
      %v3357 = vadd.f32 %v3333, %v1940
      %v3358 = vadd.f32 %v3334, %v1940
      %v3359 = vadd.f32 %v3335, %v1940
      %v3360 = vadd.f32 %v3336, %v1940
      %v3361 = vadd.f32 %v3337, %v1940
      %v3362 = vmax.f32 %v3338, 0.0
      %v3363 = vmax.f32 %v3339, 0.0
      %v3364 = vmax.f32 %v3340, 0.0
      %v3365 = vmax.f32 %v3341, 0.0
      %v3366 = vmax.f32 %v3342, 0.0
      %v3367 = vmax.f32 %v3343, 0.0
      %v3368 = vmax.f32 %v3344, 0.0
      %v3369 = vmax.f32 %v3345, 0.0
      %v3370 = vmax.f32 %v3346, 0.0
      %v3371 = vmax.f32 %v3347, 0.0
      %v3372 = vmax.f32 %v3348, 0.0
      %v3373 = vmax.f32 %v3349, 0.0
      %v3374 = vmax.f32 %v3350, 0.0
      %v3375 = vmax.f32 %v3351, 0.0
      %v3376 = vmax.f32 %v3352, 0.0
      %v3377 = vmax.f32 %v3353, 0.0
      %v3378 = vmax.f32 %v3354, 0.0
      %v3379 = vmax.f32 %v3355, 0.0
      %v3380 = vmax.f32 %v3356, 0.0
      %v3381 = vmax.f32 %v3357, 0.0
      %v3382 = vmax.f32 %v3358, 0.0
      %v3383 = vmax.f32 %v3359, 0.0
      %v3384 = vmax.f32 %v3360, 0.0
      %v3385 = vmax.f32 %v3361, 0.0
      %v3386 = vmin.f32 %v3362, 6.0
      %v3387 = vmin.f32 %v3363, 6.0
      %v3388 = vmin.f32 %v3364, 6.0
      %v3389 = vmin.f32 %v3365, 6.0
      %v3390 = vmin.f32 %v3366, 6.0
      %v3391 = vmin.f32 %v3367, 6.0
      %v3392 = vmin.f32 %v3368, 6.0
      %v3393 = vmin.f32 %v3369, 6.0
      %v3394 = vmin.f32 %v3370, 6.0
      %v3395 = vmin.f32 %v3371, 6.0
      %v3396 = vmin.f32 %v3372, 6.0
      %v3397 = vmin.f32 %v3373, 6.0
      %v3398 = vmin.f32 %v3374, 6.0
      %v3399 = vmin.f32 %v3375, 6.0
      %v3400 = vmin.f32 %v3376, 6.0
      %v3401 = vmin.f32 %v3377, 6.0
      %v3402 = vmin.f32 %v3378, 6.0
      %v3403 = vmin.f32 %v3379, 6.0
      %v3404 = vmin.f32 %v3380, 6.0
      %v3405 = vmin.f32 %v3381, 6.0
      %v3406 = vmin.f32 %v3382, 6.0
      %v3407 = vmin.f32 %v3383, 6.0
      %v3408 = vmin.f32 %v3384, 6.0
      %v3409 = vmin.f32 %v3385, 6.0
      %v3434 = vrot.slane %v3386, 7
      %v3435 = vrot.slane %v3387, 7
      %v3436 = vsel %vm2038, %v3434, %v3435
      %v3437 = vrot.slane %v3388, 7
      %v3438 = vsel %vm2038, %v3435, %v3437
      %v3439 = vrot.slane %v3389, 7
      %v3440 = vrot.slane %v3390, 7
      %v3441 = vsel %vm2038, %v3439, %v3440
      %v3442 = vrot.slane %v3391, 7
      %v3443 = vsel %vm2038, %v3440, %v3442
      %v3444 = vrot.slane %v3392, 7
      %v3445 = vrot.slane %v3393, 7
      %v3446 = vsel %vm2038, %v3444, %v3445
      %v3447 = vrot.slane %v3394, 7
      %v3448 = vsel %vm2038, %v3445, %v3447
      %v3449 = vrot.slane %v3395, 7
      %v3450 = vrot.slane %v3396, 7
      %v3451 = vsel %vm2038, %v3449, %v3450
      %v3452 = vrot.slane %v3397, 7
      %v3453 = vsel %vm2038, %v3450, %v3452
      %v3454 = vrot.slane %v3398, 7
      %v3455 = vrot.slane %v3399, 7
      %v3456 = vsel %vm2038, %v3454, %v3455
      %v3457 = vrot.slane %v3400, 7
      %v3458 = vsel %vm2038, %v3455, %v3457
      %v3459 = vrot.slane %v3401, 7
      %v3460 = vrot.slane %v3402, 7
      %v3461 = vsel %vm2038, %v3459, %v3460
      %v3462 = vrot.slane %v3403, 7
      %v3463 = vsel %vm2038, %v3460, %v3462
      %v3464 = vrot.slane %v3404, 7
      %v3465 = vrot.slane %v3405, 7
      %v3466 = vsel %vm2038, %v3464, %v3465
      %v3467 = vrot.slane %v3406, 7
      %v3468 = vsel %vm2038, %v3465, %v3467
      %v3469 = vrot.slane %v3407, 7
      %v3470 = vrot.slane %v3408, 7
      %v3471 = vsel %vm2038, %v3469, %v3470
      %v3472 = vrot.slane %v3409, 7
      %v3473 = vsel %vm2038, %v3470, %v3472
      %v3490 = vpack.c.bf16 %v3438, %v3436
      %v3491 = vpack.c.bf16 %v3443, %v3441
      %v3492 = vpack.c.bf16 %v3448, %v3446
      %v3493 = vpack.c.bf16 %v3453, %v3451
      %v3494 = vpack.c.bf16 %v3458, %v3456
      %v3495 = vpack.c.bf16 %v3463, %v3461
      %v3496 = vpack.c.bf16 %v3468, %v3466
      %v3497 = vpack.c.bf16 %v3473, %v3471
      %v3499 = vsel %vm2118, %v3490, 0
      %v3502 = vsel %vm2118, %v3491, 0
      %v3505 = vsel %vm2118, %v3492, 0
      %v3508 = vsel %vm2118, %v3493, 0
      %v3511 = vsel %vm2118, %v3494, 0
      %v3514 = vsel %vm2118, %v3495, 0
      %v3517 = vsel %vm2118, %v3496, 0
      %v3520 = vsel %vm2118, %v3497, 0
      %3522 = vmatprep.subr.bf16.mxu0 0
      %3523 = vmatpush1.bf16.msra.mxu0 %v2115
      %3524 = vmatprep.subr.bf16.mxu0 0
      %3525 = vmatpush1.bf16.msra.mxu0 %v2145
      %3526 = vmatprep.subr.bf16.mxu0 0
      %3527 = vmatpush1.bf16.msra.mxu0 0
      %3528 = vmatprep.subr.bf16.mxu0 0
      %3529 = vmatpush1.bf16.msra.mxu0 0
      %3530 = vmatprep.subr.bf16.mxu0 0
      %3531 = vmatpush1.bf16.msra.mxu0 0
      %3532 = vmatprep.subr.bf16.mxu0 0
      %3533 = vmatpush1.bf16.msra.mxu0 0
      %3534 = vmatprep.subr.bf16.mxu0 0
      %3535 = vmatpush1.bf16.msra.mxu0 0
      %3536 = vmatprep.subr.bf16.mxu0 0
      %3537 = vmatpush1.bf16.msra.mxu0 0
      %3538 = vmatprep.subr.bf16.mxu0 0
      %3539 = vmatpush1.bf16.msra.mxu0 0
      %3540 = vmatprep.subr.bf16.mxu0 0
      %3541 = vmatpush1.bf16.msra.mxu0 0
      %3542 = vmatprep.subr.bf16.mxu0 0
      %3543 = vmatpush1.bf16.msra.mxu0 0
      %3544 = vmatprep.subr.bf16.mxu0 0
      %3545 = vmatpush1.bf16.msra.mxu0 0
      %3546 = vmatprep.subr.bf16.mxu0 0
      %3547 = vmatpush1.bf16.msra.mxu0 0
      %3548 = vmatprep.subr.bf16.mxu0 0
      %3549 = vmatpush1.bf16.msra.mxu0 0
      %3550 = vmatprep.subr.bf16.mxu0 0
      %3551 = vmatpush1.bf16.msra.mxu0 0
      %3552 = vmatprep.subr.bf16.mxu0 0
      %3553 = vmatpush1.bf16.msra.mxu0 0
      %3554 = vmatprep.mubr.bf16.mxu0 0
      %3555 = vmatmul.mubr.bf16.gmra.mrb[0].mxu0 %v3499
      %v3556 = vpop.f32.mrb[0].mxu0
      %v3557 = vadd.f32 %v2107, %v3556
      %v3558 = vpop.f32.mrb[0].mxu0
      %v3559 = vpop.f32.mrb[0].mxu0
      %v3560 = vadd.f32 %v2107, %v3559
      %v3561 = vpop.f32.mrb[0].mxu0
      %3562 = vmatprep.mubr.bf16.mxu0 0
      %3563 = vmatmul.mubr.bf16.gmra.mrb[0].mxu0 %v3502
      %v3564 = vpop.f32.mrb[0].mxu0
      %v3565 = vadd.f32 %v2107, %v3564
      %v3566 = vpop.f32.mrb[0].mxu0
      %v3567 = vpop.f32.mrb[0].mxu0
      %v3568 = vadd.f32 %v2107, %v3567
      %v3569 = vpop.f32.mrb[0].mxu0
      %3570 = vmatprep.mubr.bf16.mxu0 0
      %3571 = vmatmul.mubr.bf16.gmra.mrb[0].mxu0 %v3505
      %v3572 = vpop.f32.mrb[0].mxu0
      %v3573 = vadd.f32 %v2107, %v3572
      %v3574 = vpop.f32.mrb[0].mxu0
      %v3575 = vpop.f32.mrb[0].mxu0
      %v3576 = vadd.f32 %v2107, %v3575
      %v3577 = vpop.f32.mrb[0].mxu0
      %3578 = vmatprep.mubr.bf16.mxu0 0
      %3579 = vmatmul.mubr.bf16.gmra.mrb[0].mxu0 %v3508
      %v3580 = vpop.f32.mrb[0].mxu0
      %v3581 = vadd.f32 %v2107, %v3580
      %v3582 = vpop.f32.mrb[0].mxu0
      %v3583 = vpop.f32.mrb[0].mxu0
      %v3584 = vadd.f32 %v2107, %v3583
      %v3585 = vpop.f32.mrb[0].mxu0
      %3586 = vmatprep.mubr.bf16.mxu0 0
      %3587 = vmatmul.mubr.bf16.gmra.mrb[0].mxu0 %v3511
      %v3588 = vpop.f32.mrb[0].mxu0
      %v3589 = vadd.f32 %v2107, %v3588
      %v3590 = vpop.f32.mrb[0].mxu0
      %v3591 = vpop.f32.mrb[0].mxu0
      %v3592 = vadd.f32 %v2107, %v3591
      %v3593 = vpop.f32.mrb[0].mxu0
      %3594 = vmatprep.mubr.bf16.mxu0 0
      %3595 = vmatmul.mubr.bf16.gmra.mrb[0].mxu0 %v3514
      %v3596 = vpop.f32.mrb[0].mxu0
      %v3597 = vadd.f32 %v2107, %v3596
      %v3598 = vpop.f32.mrb[0].mxu0
      %v3599 = vpop.f32.mrb[0].mxu0
      %v3600 = vadd.f32 %v2107, %v3599
      %v3601 = vpop.f32.mrb[0].mxu0
      %3602 = vmatprep.mubr.bf16.mxu0 0
      %3603 = vmatmul.mubr.bf16.gmra.mrb[0].mxu0 %v3517
      %v3604 = vpop.f32.mrb[0].mxu0
      %v3605 = vadd.f32 %v2107, %v3604
      %v3606 = vpop.f32.mrb[0].mxu0
      %v3607 = vpop.f32.mrb[0].mxu0
      %v3608 = vadd.f32 %v2107, %v3607
      %v3609 = vpop.f32.mrb[0].mxu0
      %3610 = vmatprep.mubr.bf16.mxu0 0
      %3611 = vmatmul.mubr.bf16.gmra.mrb[0].mxu0 %v3520
      %v3612 = vpop.f32.mrb[0].mxu0
      %v3613 = vadd.f32 %v2107, %v3612
      %v3614 = vpop.f32.mrb[0].mxu0
      %v3615 = vpop.f32.mrb[0].mxu0
      %v3616 = vadd.f32 %v2107, %v3615
      %v3617 = vpop.f32.mrb[0].mxu0
      %3618 = vdwg.mxu0
      %s3619 = smul.u32 8, 16
      %s3620 = scalar_lea.vmem %s273, %s3619
      %v3621 = vld [vmem:[%s3620] sm:$0xff]
      %v3622 = vld [vmem:[%s3620 + $0x8] sm:$0xff]
      %v3623 = vld [vmem:[%s3620 + $0x10] sm:$0xff]
      %v3624 = vld [vmem:[%s3620 + $0x18] sm:$0xff]
      %v3625 = vld [vmem:[%s3620 + $0x20] sm:$0xff]
      %v3626 = vld [vmem:[%s3620 + $0x28] sm:$0xff]
      %v3627 = vld [vmem:[%s3620 + $0x30] sm:$0xff]
      %v3628 = vld [vmem:[%s3620 + $0x38] sm:$0xff]
      %v3629 = vld [vmem:[%s3620 + $0x40] sm:$0xff]
      %v3630 = vld [vmem:[%s3620 + $0x48] sm:$0xff]
      %v3631 = vld [vmem:[%s3620 + $0x50] sm:$0xff]
      %v3632 = vld [vmem:[%s3620 + $0x58] sm:$0xff]
      %v3633 = vld [vmem:[%s3620 + $0x60] sm:$0xff]
      %v3634 = vld [vmem:[%s3620 + $0x68] sm:$0xff]
      %v3635 = vld [vmem:[%s3620 + $0x70] sm:$0xff]
      %v3636 = vld [vmem:[%s3620 + $0x78] sm:$0xff]
      %v3637 = vadd.f32 %v3557, %v3621
      %v3638 = vadd.f32 %v3560, %v3622
      %v3639 = vadd.f32 %v3565, %v3623
      %v3640 = vadd.f32 %v3568, %v3624
      %v3641 = vadd.f32 %v3573, %v3625
      %v3642 = vadd.f32 %v3576, %v3626
      %v3643 = vadd.f32 %v3581, %v3627
      %v3644 = vadd.f32 %v3584, %v3628
      %v3645 = vadd.f32 %v3589, %v3629
      %v3646 = vadd.f32 %v3592, %v3630
      %v3647 = vadd.f32 %v3597, %v3631
      %v3648 = vadd.f32 %v3600, %v3632
      %v3649 = vadd.f32 %v3605, %v3633
      %v3650 = vadd.f32 %v3608, %v3634
      %v3651 = vadd.f32 %v3613, %v3635
      %v3652 = vadd.f32 %v3616, %v3636
      %s3653 = scalar_lea.vmem %s278, %s3619
      %3654 = vst.msk [vmem:[%s3653] sm:$0xff] %vm402, %v3637
      %3655 = vst.msk [vmem:[%s3653 + $0x8] sm:$0xff] %vm402, %v3638
      %3656 = vst.msk [vmem:[%s3653 + $0x10] sm:$0xff] %vm402, %v3639
      %3657 = vst.msk [vmem:[%s3653 + $0x18] sm:$0xff] %vm402, %v3640
      %3658 = vst.msk [vmem:[%s3653 + $0x20] sm:$0xff] %vm402, %v3641
      %3659 = vst.msk [vmem:[%s3653 + $0x28] sm:$0xff] %vm402, %v3642
      %3660 = vst.msk [vmem:[%s3653 + $0x30] sm:$0xff] %vm402, %v3643
      %3661 = vst.msk [vmem:[%s3653 + $0x38] sm:$0xff] %vm402, %v3644
      %3662 = vst.msk [vmem:[%s3653 + $0x40] sm:$0xff] %vm402, %v3645
      %3663 = vst.msk [vmem:[%s3653 + $0x48] sm:$0xff] %vm402, %v3646
      %3664 = vst.msk [vmem:[%s3653 + $0x50] sm:$0xff] %vm402, %v3647
      %3665 = vst.msk [vmem:[%s3653 + $0x58] sm:$0xff] %vm402, %v3648
      %3666 = vst.msk [vmem:[%s3653 + $0x60] sm:$0xff] %vm402, %v3649
      %3667 = vst.msk [vmem:[%s3653 + $0x68] sm:$0xff] %vm402, %v3650
      %3668 = vst.msk [vmem:[%s3653 + $0x70] sm:$0xff] %vm402, %v3651
      %3669 = vst.msk [vmem:[%s3653 + $0x78] sm:$0xff] %vm402, %v3652
      %p3670 = scmp.lt.s32.totalorder %s18, 1
      %s3671 = scalar_select %p3670, %s18, 1
      %s3672 = smul.addr %s3671, 32
      %s3673 = smul.addr %s3672, 8
      %s3674 = scalar_lea.vmem %s7, %s3673
      // Predicated region
      $region49: #{tpu_custom_call.1} parent=47 // pred_check
        %p3675 = pneg %p188
      $region50: #{tpu_custom_call.1} parent=47 // pred_check_branch
        %3677 = sbr.rel (%p3675) target = $region52
      $region51: #{tpu_custom_call.1} parent=47 // pred_region
        _
      $region52: #{tpu_custom_call.1} parent=47 // pred_fallthru
        _
    $region48: #{tpu_custom_call.1} parent=5 // pred_fallthru
      _
    %p3678 = scmp.le.s32.totalorder 2, %s13
    // Predicated region
    $region53: #{tpu_custom_call.1} parent=5 // pred_check
      %p3679 = pneg %p3678
    $region54: #{tpu_custom_call.1} parent=5 // pred_check_branch
      %3681 = sbr.rel (%p3679) target = $region56
    $region55: #{tpu_custom_call.1} parent=5 // pred_region
      %s3682 = ssub.s32 %s13, 2
      // Predicated region
      $region57: #{tpu_custom_call.1} parent=55 // pred_check
        %p3683 = pneg %p194
      $region58: #{tpu_custom_call.1} parent=55 // pred_check_branch
        %3685 = sbr.rel (%p3683) target = $region60
      $region59: #{tpu_custom_call.1} parent=55 // pred_region
        %p3686 = scmp.lt.s32.totalorder %s19, 1
        %s3687 = scalar_select %p3686, %s19, 1
        %s3688 = smul.addr %s3687, 32
        %s3689 = smul.addr %s3688, 8
        %s3690 = scalar_lea.vmem %s7, %s3689
      $region60: #{tpu_custom_call.1} parent=55 // pred_fallthru
        _
    $region56: #{tpu_custom_call.1} parent=5 // pred_fallthru
      _
  $region6: #{tpu_custom_call.1} parent=0 // loop_footer
    %s17 = sadd.s32 1, %s13
  $region7: #{tpu_custom_call.1} parent=0 // loop_footer_branch
    %12 = sbr.rel target = $region3
  $region8: #{tpu_custom_call.1} parent=0 // loop_exit
    _

</llo_original>
